<compile_context>
chip_gen: v7x
topology: tpu7x:2x2x1
jax: 0.10.0
libtpu: 0.0.40
codegen_flags: <defaults>
</compile_context>

<pallas_src>
import functools

import numpy as np
import jax
import jax.numpy as jnp
from jax.experimental import pallas as pl
from jax.experimental.pallas import tpu as pltpu

# ----------------------------------------------------------------------------
# Deterministic "parameters" of GatedCRFLoss (what the module's __init__ reads
# from `params`).  kernel0 = {weight, xy, rgb}, kernel1 = {weight, xy}.
# ----------------------------------------------------------------------------
RADIUS       = 2
WEIGHT0      = 1.0
SIGMA_XY0    = 6.0
SIGMA_RGB    = 0.1
WEIGHT1      = 1.0
SIGMA_XY1    = 6.0
LOSS_SOFTMAX = True


# ----------------------------------------------------------------------------
# Pallas kernel (one batch element per grid step).
#
# All spatial planes arrive flattened:  flat index p = h*Wp + w  over the
# zero-padded (Hp, Wp) grid, zero-extended on the right to Pp (multiple of
# 128) so every VPU op / roll is lane-dense and 128-aligned.
#
# For neighbor offset (dy, dx), the flat offset is d = dy*Wp + dx and a single
# lane roll brings y(q), rgb(q), mask(q) into register alignment with the
# center pixel.  For interior centers this is exact (no wrap); wrapped lanes
# only land on non-interior positions which are masked out of the result.
# ----------------------------------------------------------------------------
def _gcrf_kernel(y_ref, img_ref, mask_ref, inter_ref, out_ref, *, Wp, R):
    yp   = y_ref[0]       # (C, Pp)  zero-padded softmax prediction
    isc  = img_ref[0]     # (3, Pp)  zero-padded rgb, prescaled by 1/sigma_rgb
    mp   = mask_ref[0]    # (1, Pp)  zero-padded "fixed" validity mask
    intr = inter_ref[0]   # (1, Pp)  1.0 on real (non-pad) pixels, else 0.0

    C  = yp.shape[0]
    Pp = yp.shape[-1]

    ksum = jnp.zeros((1, Pp), jnp.float32)   # sum_q K(p,q)*m(q)
    acc  = jnp.zeros((C, Pp), jnp.float32)   # sum_q K(p,q)*m(q)*y_c(q)

    for dy in range(-R, R + 1):
        for dx in range(-R, R + 1):
            if dy == 0 and dx == 0:
                continue  # kernel center is zeroed in the reference impl
            d = dy * Wp + dx
            shift = (-d) % Pp

            yq = pltpu.roll(yp,  shift, axis=1)   # y(q)
            iq = pltpu.roll(isc, shift, axis=1)   # rgb(q)/sigma_rgb
            mq = pltpu.roll(mp,  shift, axis=1)   # mask(q)

            diff = iq - isc
            rgb_part = jnp.sum(diff * diff, axis=0, keepdims=True)   # (1, Pp)

            xy_sq = float(dx * dx + dy * dy)
            k0_c = np.float32(
                WEIGHT0 * np.exp(-0.5 * xy_sq / (SIGMA_XY0 * SIGMA_XY0)))
            k1_c = np.float32(
                WEIGHT1 * np.exp(-0.5 * xy_sq / (SIGMA_XY1 * SIGMA_XY1)))

            # gated kernel value, (1, Pp)
            kg = (k0_c * jnp.exp(-0.5 * rgb_part) + k1_c) * mq

            ksum = ksum + kg
            acc  = acc + kg * yq

    # ksum must only count real (interior) center pixels; the cross term is
    # already zero outside the interior because yp is zero-padded there.
    ksum_tot  = jnp.sum(ksum * intr, axis=(0, 1), keepdims=True)   # (1, 1)
    cross_tot = jnp.sum(yp * acc,    axis=(0, 1), keepdims=True)   # (1, 1)
    out_ref[0] = ksum_tot - cross_tot


# ----------------------------------------------------------------------------
# Glue
# ----------------------------------------------------------------------------
def _adaptive_avg_pool_nchw(x, h_out, w_out):
    # matches F.adaptive_avg_pool2d for evenly divisible sizes (identity here)
    n, c, h, w = x.shape
    if h == h_out and w == w_out:
        return x
    assert h % h_out == 0 and w % w_out == 0
    x = x.reshape(n, c, h_out, h // h_out, w_out, w // w_out)
    return x.mean(axis=(3, 5))


def _flatten_spatial_pad(x, Pp):
    """(N, C, Hp, Wp) -> (N, C, Pp) with zero right-padding on the flat axis."""
    n, c, hp, wp = x.shape
    p = hp * wp
    xf = x.reshape(n, c, p)
    if Pp > p:
        xf = jnp.pad(xf, ((0, 0), (0, 0), (0, Pp - p)))
    return xf


def gated_crf_loss(prediction, image, scribbles, validity_mask):
    """prediction (N,C,H,W) logits, image (N,3,Hi,Wi), validity_mask (N,1,Hi,Wi).
    scribbles are accepted (as in the torch module) but these kernels only use
    the 'xy' and 'rgb' modalities, so they do not enter the computation."""
    del scribbles
    N, C, H, W = prediction.shape
    R = RADIUS
    Hp, Wp = H + 2 * R, W + 2 * R
    P = Hp * Wp
    Pp = ((P + 127) // 128) * 128          # lane-dense, 128-aligned flat axis

    y = jax.nn.softmax(prediction, axis=1) if LOSS_SOFTMAX else prediction
    y = y.astype(jnp.float32)

    # rgb at prediction resolution, prescaled ONCE by 1/sigma_rgb (hoisted out
    # of the 24-offset loop).
    img = _adaptive_avg_pool_nchw(image.astype(jnp.float32), H, W)
    img = img * np.float32(1.0 / SIGMA_RGB)

    mask = _adaptive_avg_pool_nchw(validity_mask.astype(jnp.float32), H, W)
    mask = mask[:, :1]                                            # (N,1,H,W)
    # resize_fix_mask: NaN -> 0, values < 1 -> 0
    mask = jnp.where(jnp.isnan(mask) | (mask < 1.0), 0.0, mask)
    denom = jnp.maximum(jnp.sum(mask), 1.0)

    pad4 = ((0, 0), (0, 0), (R, R), (R, R))
    y_f    = _flatten_spatial_pad(jnp.pad(y, pad4), Pp)           # (N,C,Pp)
    img_f  = _flatten_spatial_pad(jnp.pad(img, pad4), Pp)         # (N,3,Pp)
    mask_f = _flatten_spatial_pad(jnp.pad(mask, pad4), Pp)        # (N,1,Pp)

    # interior-indicator over the padded grid (shared by all batch elements)
    inter2d = np.zeros((Hp, Wp), np.float32)
    inter2d[R:R + H, R:R + W] = 1.0
    inter_np = np.zeros((1, 1, Pp), np.float32)
    inter_np[0, 0, :P] = inter2d.reshape(-1)
    interior = jnp.asarray(inter_np)

    kernel = functools.partial(_gcrf_kernel, Wp=Wp, R=R)

    # TODO(synk): for production-size images add a spatial grid axis with
    # halo'd blocks (and a bf16-compute path on v6e/v7x); the small test
    # image fits comfortably in a single per-batch block.
    per_batch = pl.pallas_call(
        kernel,
        out_shape=jax.ShapeDtypeStruct((N, 1, 1), jnp.float32),
        grid_spec=pltpu.PrefetchScalarGridSpec(
            num_scalar_prefetch=0,
            grid=(N,),
            in_specs=[
                pl.BlockSpec((1, C, Pp), lambda b: (b, 0, 0)),
                pl.BlockSpec((1, 3, Pp), lambda b: (b, 0, 0)),
                pl.BlockSpec((1, 1, Pp), lambda b: (b, 0, 0)),
                pl.BlockSpec((1, 1, Pp), lambda b: (0, 0, 0)),   # shared
            ],
            out_specs=pl.BlockSpec((1, 1, 1), lambda b: (b, 0, 0)),
        ),
        compiler_params=pltpu.CompilerParams(
            dimension_semantics=("parallel",),
            vmem_limit_bytes=32 * 1024 * 1024,
        ),
    )(y_f, img_f, mask_f, interior)

    # loss = kernels.sum() - (product_kernel_x_y_hat * y_hat).sum(), / denom
    loss = jnp.sum(per_batch) / denom
    return loss


# ----------------------------------------------------------------------------
# Pure-numpy reference that mirrors the torch ModelLossSemsegGatedCRF code
# (unfold with zero padding, per-descriptor Gaussian kernels, mask gating).
# ----------------------------------------------------------------------------
def _unfold_np(x, r):
    n, c, h, w = x.shape
    d = 2 * r + 1
    xp = np.pad(x, ((0, 0), (0, 0), (r, r), (r, r)))
    out = np.zeros((n, c, d, d, h, w), dtype=x.dtype)
    for i in range(d):
        for j in range(d):
            out[:, :, i, j] = xp[:, :, i:i + h, j:j + w]
    return out


def _reference_loss(pred, img, vmask):
    N, C, H, W = pred.shape
    R = RADIUS
    d = 2 * R + 1
    # softmax
    e = np.exp(pred - pred.max(axis=1, keepdims=True))
    y = e / e.sum(axis=1, keepdims=True)
    # xy mesh (x=col idx, y=row idx)
    gy, gx = np.meshgrid(np.arange(H, dtype=np.float32),
                         np.arange(W, dtype=np.float32), indexing="ij")
    mesh = np.broadcast_to(np.stack([gx, gy], 0)[None], (N, 2, H, W)).astype(np.float32)

    def make_kernel(feat):
        unf = _unfold_np(feat, R)
        diff = unf - feat[:, :, None, None]
        k = np.exp(-0.5 * (diff ** 2).sum(axis=1, keepdims=True))
        k[:, :, R, R] = 0.0
        return k

    feat0 = np.concatenate([mesh / SIGMA_XY0, img / SIGMA_RGB], axis=1)
    feat1 = mesh / SIGMA_XY1
    kernels = WEIGHT0 * make_kernel(feat0) + WEIGHT1 * make_kernel(feat1)

    m = vmask.astype(np.float32).copy()
    m[np.isnan(m)] = 0.0
    m[m < 1.0] = 0.0
    denom = max(float(m.sum()), 1.0)
    kernels = kernels * _unfold_np(m, R)

    y_unf = _unfold_np(y, R)
    prod = (kernels * y_unf).reshape(N, C, d * d, H, W).sum(axis=2)
    loss = kernels.sum() - (prod * y).sum()
    return loss / denom


if __name__ == "__main__":
    key = jax.random.PRNGKey(0)
    k1, k2, k3, k4 = jax.random.split(key, 4)
    N, C, H, W = 2, 4, 16, 16

    prediction = jax.random.normal(k1, (N, C, H, W), dtype=jnp.float32)
    image = jax.random.uniform(k2, (N, 3, H, W), dtype=jnp.float32)
    scribbles = jax.random.randint(k3, (N, 1, H, W), 0, C + 1).astype(jnp.float32)
    validity_mask = (jax.random.uniform(k4, (N, 1, H, W)) > 0.2).astype(jnp.float32)

    loss = gated_crf_loss(prediction, image, scribbles, validity_mask)
    loss = jax.block_until_ready(loss)

    ref = _reference_loss(np.asarray(prediction), np.asarray(image),
                          np.asarray(validity_mask))
    assert np.isfinite(float(loss))
    assert abs(float(loss) - float(ref)) <= 1e-3 * max(1.0, abs(float(ref))), (
        float(loss), float(ref))
    print("KERNEL_OK")
</pallas_src>

<mosaic_0001>
module attributes {stable_mosaic.version = 11 : i64} {
  func.func @_gcrf_kernel(%arg0: i32, %arg1: memref<1x4x512xf32, #tpu.memory_space<vmem>>, %arg2: memref<1x3x512xf32, #tpu.memory_space<vmem>>, %arg3: memref<1x1x512xf32, #tpu.memory_space<vmem>>, %arg4: memref<1x1x512xf32, #tpu.memory_space<vmem>>, %arg5: memref<1x1x1xf32, #tpu.memory_space<vmem>>) attributes {dimension_semantics = [#tpu.dimension_semantics<parallel>], iteration_bounds = array<i64: 2>, scalar_prefetch = 0 : i64, scratch_operands = 0 : i64, tpu.core_type = #tpu.core_type<tc>, window_params = [{transform_indices = @transform_0, window_bounds = array<i64: 1, 4, 512>}, {transform_indices = @transform_1, window_bounds = array<i64: 1, 3, 512>}, {transform_indices = @transform_2, window_bounds = array<i64: 1, 1, 512>}, {pipeline_mode = #tpu.pipeline_mode<synchronous>, transform_indices = @transform_3, window_bounds = array<i64: 1, 1, 512>}, {transform_indices = @transform_4, window_bounds = array<i64: 1, 1, 1>}]} {
    %c0 = arith.constant 0 : index
    %c0_0 = arith.constant 0 : index
    %c0_1 = arith.constant 0 : index
    %0 = vector.load %arg1[%c0, %c0_0, %c0_1] : memref<1x4x512xf32, #tpu.memory_space<vmem>>, vector<1x4x512xf32>
    %1 = vector.shape_cast %0 : vector<1x4x512xf32> to vector<4x512xf32>
    %c0_2 = arith.constant 0 : index
    %c0_3 = arith.constant 0 : index
    %c0_4 = arith.constant 0 : index
    %2 = vector.load %arg2[%c0_2, %c0_3, %c0_4] : memref<1x3x512xf32, #tpu.memory_space<vmem>>, vector<1x3x512xf32>
    %3 = vector.shape_cast %2 : vector<1x3x512xf32> to vector<3x512xf32>
    %c0_5 = arith.constant 0 : index
    %c0_6 = arith.constant 0 : index
    %c0_7 = arith.constant 0 : index
    %4 = vector.load %arg3[%c0_5, %c0_6, %c0_7] : memref<1x1x512xf32, #tpu.memory_space<vmem>>, vector<1x1x512xf32>
    %5 = vector.shape_cast %4 : vector<1x1x512xf32> to vector<1x512xf32>
    %c0_8 = arith.constant 0 : index
    %c0_9 = arith.constant 0 : index
    %c0_10 = arith.constant 0 : index
    %6 = vector.load %arg4[%c0_8, %c0_9, %c0_10] : memref<1x1x512xf32, #tpu.memory_space<vmem>>, vector<1x1x512xf32>
    %7 = vector.shape_cast %6 : vector<1x1x512xf32> to vector<1x512xf32>
    %cst = arith.constant 0.000000e+00 : f32
    %8 = vector.broadcast %cst : f32 to vector<1x512xf32>
    %cst_11 = arith.constant 0.000000e+00 : f32
    %9 = vector.broadcast %cst_11 : f32 to vector<4x512xf32>
    %c42_i32 = arith.constant 42 : i32
    %10 = tpu.dynamic_rotate %1 by %c42_i32 dim 1 : vector<4x512xf32>, i32 -> vector<4x512xf32>
    %c42_i32_12 = arith.constant 42 : i32
    %11 = tpu.dynamic_rotate %3 by %c42_i32_12 dim 1 : vector<3x512xf32>, i32 -> vector<3x512xf32>
    %c42_i32_13 = arith.constant 42 : i32
    %12 = tpu.dynamic_rotate %5 by %c42_i32_13 dim 1 : vector<1x512xf32>, i32 -> vector<1x512xf32>
    %13 = arith.subf %11, %3 : vector<3x512xf32>
    %14 = arith.mulf %13, %13 : vector<3x512xf32>
    %cst_14 = arith.constant dense<0.000000e+00> : vector<512xf32>
    %15 = vector.multi_reduction <add>, %14, %cst_14 [0] : vector<3x512xf32> to vector<512xf32>
    %16 = vector.shape_cast %15 : vector<512xf32> to vector<1x512xf32>
    %cst_15 = arith.constant -5.000000e-01 : f32
    %17 = vector.broadcast %cst_15 : f32 to vector<1x512xf32>
    %18 = arith.mulf %17, %16 : vector<1x512xf32>
    %19 = math.exp %18 : vector<1x512xf32>
    %cst_16 = arith.constant 0.894839346 : f32
    %20 = vector.broadcast %cst_16 : f32 to vector<1x512xf32>
    %21 = arith.mulf %20, %19 : vector<1x512xf32>
    %cst_17 = arith.constant 0.894839346 : f32
    %22 = vector.broadcast %cst_17 : f32 to vector<1x512xf32>
    %23 = arith.addf %21, %22 : vector<1x512xf32>
    %24 = arith.mulf %23, %12 : vector<1x512xf32>
    %25 = arith.addf %8, %24 : vector<1x512xf32>
    %26 = vector.broadcast %24 : vector<1x512xf32> to vector<4x512xf32>
    %27 = arith.mulf %26, %10 : vector<4x512xf32>
    %28 = arith.addf %9, %27 : vector<4x512xf32>
    %c41_i32 = arith.constant 41 : i32
    %29 = tpu.dynamic_rotate %1 by %c41_i32 dim 1 : vector<4x512xf32>, i32 -> vector<4x512xf32>
    %c41_i32_18 = arith.constant 41 : i32
    %30 = tpu.dynamic_rotate %3 by %c41_i32_18 dim 1 : vector<3x512xf32>, i32 -> vector<3x512xf32>
    %c41_i32_19 = arith.constant 41 : i32
    %31 = tpu.dynamic_rotate %5 by %c41_i32_19 dim 1 : vector<1x512xf32>, i32 -> vector<1x512xf32>
    %32 = arith.subf %30, %3 : vector<3x512xf32>
    %33 = arith.mulf %32, %32 : vector<3x512xf32>
    %cst_20 = arith.constant dense<0.000000e+00> : vector<512xf32>
    %34 = vector.multi_reduction <add>, %33, %cst_20 [0] : vector<3x512xf32> to vector<512xf32>
    %35 = vector.shape_cast %34 : vector<512xf32> to vector<1x512xf32>
    %cst_21 = arith.constant -5.000000e-01 : f32
    %36 = vector.broadcast %cst_21 : f32 to vector<1x512xf32>
    %37 = arith.mulf %36, %35 : vector<1x512xf32>
    %38 = math.exp %37 : vector<1x512xf32>
    %cst_22 = arith.constant 0.932911932 : f32
    %39 = vector.broadcast %cst_22 : f32 to vector<1x512xf32>
    %40 = arith.mulf %39, %38 : vector<1x512xf32>
    %cst_23 = arith.constant 0.932911932 : f32
    %41 = vector.broadcast %cst_23 : f32 to vector<1x512xf32>
    %42 = arith.addf %40, %41 : vector<1x512xf32>
    %43 = arith.mulf %42, %31 : vector<1x512xf32>
    %44 = arith.addf %25, %43 : vector<1x512xf32>
    %45 = vector.broadcast %43 : vector<1x512xf32> to vector<4x512xf32>
    %46 = arith.mulf %45, %29 : vector<4x512xf32>
    %47 = arith.addf %28, %46 : vector<4x512xf32>
    %c40_i32 = arith.constant 40 : i32
    %48 = tpu.dynamic_rotate %1 by %c40_i32 dim 1 : vector<4x512xf32>, i32 -> vector<4x512xf32>
    %c40_i32_24 = arith.constant 40 : i32
    %49 = tpu.dynamic_rotate %3 by %c40_i32_24 dim 1 : vector<3x512xf32>, i32 -> vector<3x512xf32>
    %c40_i32_25 = arith.constant 40 : i32
    %50 = tpu.dynamic_rotate %5 by %c40_i32_25 dim 1 : vector<1x512xf32>, i32 -> vector<1x512xf32>
    %51 = arith.subf %49, %3 : vector<3x512xf32>
    %52 = arith.mulf %51, %51 : vector<3x512xf32>
    %cst_26 = arith.constant dense<0.000000e+00> : vector<512xf32>
    %53 = vector.multi_reduction <add>, %52, %cst_26 [0] : vector<3x512xf32> to vector<512xf32>
    %54 = vector.shape_cast %53 : vector<512xf32> to vector<1x512xf32>
    %cst_27 = arith.constant -5.000000e-01 : f32
    %55 = vector.broadcast %cst_27 : f32 to vector<1x512xf32>
    %56 = arith.mulf %55, %54 : vector<1x512xf32>
    %57 = math.exp %56 : vector<1x512xf32>
    %cst_28 = arith.constant 0.945959448 : f32
    %58 = vector.broadcast %cst_28 : f32 to vector<1x512xf32>
    %59 = arith.mulf %58, %57 : vector<1x512xf32>
    %cst_29 = arith.constant 0.945959448 : f32
    %60 = vector.broadcast %cst_29 : f32 to vector<1x512xf32>
    %61 = arith.addf %59, %60 : vector<1x512xf32>
    %62 = arith.mulf %61, %50 : vector<1x512xf32>
    %63 = arith.addf %44, %62 : vector<1x512xf32>
    %64 = vector.broadcast %62 : vector<1x512xf32> to vector<4x512xf32>
    %65 = arith.mulf %64, %48 : vector<4x512xf32>
    %66 = arith.addf %47, %65 : vector<4x512xf32>
    %c39_i32 = arith.constant 39 : i32
    %67 = tpu.dynamic_rotate %1 by %c39_i32 dim 1 : vector<4x512xf32>, i32 -> vector<4x512xf32>
    %c39_i32_30 = arith.constant 39 : i32
    %68 = tpu.dynamic_rotate %3 by %c39_i32_30 dim 1 : vector<3x512xf32>, i32 -> vector<3x512xf32>
    %c39_i32_31 = arith.constant 39 : i32
    %69 = tpu.dynamic_rotate %5 by %c39_i32_31 dim 1 : vector<1x512xf32>, i32 -> vector<1x512xf32>
    %70 = arith.subf %68, %3 : vector<3x512xf32>
    %71 = arith.mulf %70, %70 : vector<3x512xf32>
    %cst_32 = arith.constant dense<0.000000e+00> : vector<512xf32>
    %72 = vector.multi_reduction <add>, %71, %cst_32 [0] : vector<3x512xf32> to vector<512xf32>
    %73 = vector.shape_cast %72 : vector<512xf32> to vector<1x512xf32>
    %cst_33 = arith.constant -5.000000e-01 : f32
    %74 = vector.broadcast %cst_33 : f32 to vector<1x512xf32>
    %75 = arith.mulf %74, %73 : vector<1x512xf32>
    %76 = math.exp %75 : vector<1x512xf32>
    %cst_34 = arith.constant 0.932911932 : f32
    %77 = vector.broadcast %cst_34 : f32 to vector<1x512xf32>
    %78 = arith.mulf %77, %76 : vector<1x512xf32>
    %cst_35 = arith.constant 0.932911932 : f32
    %79 = vector.broadcast %cst_35 : f32 to vector<1x512xf32>
    %80 = arith.addf %78, %79 : vector<1x512xf32>
    %81 = arith.mulf %80, %69 : vector<1x512xf32>
    %82 = arith.addf %63, %81 : vector<1x512xf32>
    %83 = vector.broadcast %81 : vector<1x512xf32> to vector<4x512xf32>
    %84 = arith.mulf %83, %67 : vector<4x512xf32>
    %85 = arith.addf %66, %84 : vector<4x512xf32>
    %c38_i32 = arith.constant 38 : i32
    %86 = tpu.dynamic_rotate %1 by %c38_i32 dim 1 : vector<4x512xf32>, i32 -> vector<4x512xf32>
    %c38_i32_36 = arith.constant 38 : i32
    %87 = tpu.dynamic_rotate %3 by %c38_i32_36 dim 1 : vector<3x512xf32>, i32 -> vector<3x512xf32>
    %c38_i32_37 = arith.constant 38 : i32
    %88 = tpu.dynamic_rotate %5 by %c38_i32_37 dim 1 : vector<1x512xf32>, i32 -> vector<1x512xf32>
    %89 = arith.subf %87, %3 : vector<3x512xf32>
    %90 = arith.mulf %89, %89 : vector<3x512xf32>
    %cst_38 = arith.constant dense<0.000000e+00> : vector<512xf32>
    %91 = vector.multi_reduction <add>, %90, %cst_38 [0] : vector<3x512xf32> to vector<512xf32>
    %92 = vector.shape_cast %91 : vector<512xf32> to vector<1x512xf32>
    %cst_39 = arith.constant -5.000000e-01 : f32
    %93 = vector.broadcast %cst_39 : f32 to vector<1x512xf32>
    %94 = arith.mulf %93, %92 : vector<1x512xf32>
    %95 = math.exp %94 : vector<1x512xf32>
    %cst_40 = arith.constant 0.894839346 : f32
    %96 = vector.broadcast %cst_40 : f32 to vector<1x512xf32>
    %97 = arith.mulf %96, %95 : vector<1x512xf32>
    %cst_41 = arith.constant 0.894839346 : f32
    %98 = vector.broadcast %cst_41 : f32 to vector<1x512xf32>
    %99 = arith.addf %97, %98 : vector<1x512xf32>
    %100 = arith.mulf %99, %88 : vector<1x512xf32>
    %101 = arith.addf %82, %100 : vector<1x512xf32>
    %102 = vector.broadcast %100 : vector<1x512xf32> to vector<4x512xf32>
    %103 = arith.mulf %102, %86 : vector<4x512xf32>
    %104 = arith.addf %85, %103 : vector<4x512xf32>
    %c22_i32 = arith.constant 22 : i32
    %105 = tpu.dynamic_rotate %1 by %c22_i32 dim 1 : vector<4x512xf32>, i32 -> vector<4x512xf32>
    %c22_i32_42 = arith.constant 22 : i32
    %106 = tpu.dynamic_rotate %3 by %c22_i32_42 dim 1 : vector<3x512xf32>, i32 -> vector<3x512xf32>
    %c22_i32_43 = arith.constant 22 : i32
    %107 = tpu.dynamic_rotate %5 by %c22_i32_43 dim 1 : vector<1x512xf32>, i32 -> vector<1x512xf32>
    %108 = arith.subf %106, %3 : vector<3x512xf32>
    %109 = arith.mulf %108, %108 : vector<3x512xf32>
    %cst_44 = arith.constant dense<0.000000e+00> : vector<512xf32>
    %110 = vector.multi_reduction <add>, %109, %cst_44 [0] : vector<3x512xf32> to vector<512xf32>
    %111 = vector.shape_cast %110 : vector<512xf32> to vector<1x512xf32>
    %cst_45 = arith.constant -5.000000e-01 : f32
    %112 = vector.broadcast %cst_45 : f32 to vector<1x512xf32>
    %113 = arith.mulf %112, %111 : vector<1x512xf32>
    %114 = math.exp %113 : vector<1x512xf32>
    %cst_46 = arith.constant 0.932911932 : f32
    %115 = vector.broadcast %cst_46 : f32 to vector<1x512xf32>
    %116 = arith.mulf %115, %114 : vector<1x512xf32>
    %cst_47 = arith.constant 0.932911932 : f32
    %117 = vector.broadcast %cst_47 : f32 to vector<1x512xf32>
    %118 = arith.addf %116, %117 : vector<1x512xf32>
    %119 = arith.mulf %118, %107 : vector<1x512xf32>
    %120 = arith.addf %101, %119 : vector<1x512xf32>
    %121 = vector.broadcast %119 : vector<1x512xf32> to vector<4x512xf32>
    %122 = arith.mulf %121, %105 : vector<4x512xf32>
    %123 = arith.addf %104, %122 : vector<4x512xf32>
    %c21_i32 = arith.constant 21 : i32
    %124 = tpu.dynamic_rotate %1 by %c21_i32 dim 1 : vector<4x512xf32>, i32 -> vector<4x512xf32>
    %c21_i32_48 = arith.constant 21 : i32
    %125 = tpu.dynamic_rotate %3 by %c21_i32_48 dim 1 : vector<3x512xf32>, i32 -> vector<3x512xf32>
    %c21_i32_49 = arith.constant 21 : i32
    %126 = tpu.dynamic_rotate %5 by %c21_i32_49 dim 1 : vector<1x512xf32>, i32 -> vector<1x512xf32>
    %127 = arith.subf %125, %3 : vector<3x512xf32>
    %128 = arith.mulf %127, %127 : vector<3x512xf32>
    %cst_50 = arith.constant dense<0.000000e+00> : vector<512xf32>
    %129 = vector.multi_reduction <add>, %128, %cst_50 [0] : vector<3x512xf32> to vector<512xf32>
    %130 = vector.shape_cast %129 : vector<512xf32> to vector<1x512xf32>
    %cst_51 = arith.constant -5.000000e-01 : f32
    %131 = vector.broadcast %cst_51 : f32 to vector<1x512xf32>
    %132 = arith.mulf %131, %130 : vector<1x512xf32>
    %133 = math.exp %132 : vector<1x512xf32>
    %cst_52 = arith.constant 0.972604453 : f32
    %134 = vector.broadcast %cst_52 : f32 to vector<1x512xf32>
    %135 = arith.mulf %134, %133 : vector<1x512xf32>
    %cst_53 = arith.constant 0.972604453 : f32
    %136 = vector.broadcast %cst_53 : f32 to vector<1x512xf32>
    %137 = arith.addf %135, %136 : vector<1x512xf32>
    %138 = arith.mulf %137, %126 : vector<1x512xf32>
    %139 = arith.addf %120, %138 : vector<1x512xf32>
    %140 = vector.broadcast %138 : vector<1x512xf32> to vector<4x512xf32>
    %141 = arith.mulf %140, %124 : vector<4x512xf32>
    %142 = arith.addf %123, %141 : vector<4x512xf32>
    %c20_i32 = arith.constant 20 : i32
    %143 = tpu.dynamic_rotate %1 by %c20_i32 dim 1 : vector<4x512xf32>, i32 -> vector<4x512xf32>
    %c20_i32_54 = arith.constant 20 : i32
    %144 = tpu.dynamic_rotate %3 by %c20_i32_54 dim 1 : vector<3x512xf32>, i32 -> vector<3x512xf32>
    %c20_i32_55 = arith.constant 20 : i32
    %145 = tpu.dynamic_rotate %5 by %c20_i32_55 dim 1 : vector<1x512xf32>, i32 -> vector<1x512xf32>
    %146 = arith.subf %144, %3 : vector<3x512xf32>
    %147 = arith.mulf %146, %146 : vector<3x512xf32>
    %cst_56 = arith.constant dense<0.000000e+00> : vector<512xf32>
    %148 = vector.multi_reduction <add>, %147, %cst_56 [0] : vector<3x512xf32> to vector<512xf32>
    %149 = vector.shape_cast %148 : vector<512xf32> to vector<1x512xf32>
    %cst_57 = arith.constant -5.000000e-01 : f32
    %150 = vector.broadcast %cst_57 : f32 to vector<1x512xf32>
    %151 = arith.mulf %150, %149 : vector<1x512xf32>
    %152 = math.exp %151 : vector<1x512xf32>
    %cst_58 = arith.constant 0.986207127 : f32
    %153 = vector.broadcast %cst_58 : f32 to vector<1x512xf32>
    %154 = arith.mulf %153, %152 : vector<1x512xf32>
    %cst_59 = arith.constant 0.986207127 : f32
    %155 = vector.broadcast %cst_59 : f32 to vector<1x512xf32>
    %156 = arith.addf %154, %155 : vector<1x512xf32>
    %157 = arith.mulf %156, %145 : vector<1x512xf32>
    %158 = arith.addf %139, %157 : vector<1x512xf32>
    %159 = vector.broadcast %157 : vector<1x512xf32> to vector<4x512xf32>
    %160 = arith.mulf %159, %143 : vector<4x512xf32>
    %161 = arith.addf %142, %160 : vector<4x512xf32>
    %c19_i32 = arith.constant 19 : i32
    %162 = tpu.dynamic_rotate %1 by %c19_i32 dim 1 : vector<4x512xf32>, i32 -> vector<4x512xf32>
    %c19_i32_60 = arith.constant 19 : i32
    %163 = tpu.dynamic_rotate %3 by %c19_i32_60 dim 1 : vector<3x512xf32>, i32 -> vector<3x512xf32>
    %c19_i32_61 = arith.constant 19 : i32
    %164 = tpu.dynamic_rotate %5 by %c19_i32_61 dim 1 : vector<1x512xf32>, i32 -> vector<1x512xf32>
    %165 = arith.subf %163, %3 : vector<3x512xf32>
    %166 = arith.mulf %165, %165 : vector<3x512xf32>
    %cst_62 = arith.constant dense<0.000000e+00> : vector<512xf32>
    %167 = vector.multi_reduction <add>, %166, %cst_62 [0] : vector<3x512xf32> to vector<512xf32>
    %168 = vector.shape_cast %167 : vector<512xf32> to vector<1x512xf32>
    %cst_63 = arith.constant -5.000000e-01 : f32
    %169 = vector.broadcast %cst_63 : f32 to vector<1x512xf32>
    %170 = arith.mulf %169, %168 : vector<1x512xf32>
    %171 = math.exp %170 : vector<1x512xf32>
    %cst_64 = arith.constant 0.972604453 : f32
    %172 = vector.broadcast %cst_64 : f32 to vector<1x512xf32>
    %173 = arith.mulf %172, %171 : vector<1x512xf32>
    %cst_65 = arith.constant 0.972604453 : f32
    %174 = vector.broadcast %cst_65 : f32 to vector<1x512xf32>
    %175 = arith.addf %173, %174 : vector<1x512xf32>
    %176 = arith.mulf %175, %164 : vector<1x512xf32>
    %177 = arith.addf %158, %176 : vector<1x512xf32>
    %178 = vector.broadcast %176 : vector<1x512xf32> to vector<4x512xf32>
    %179 = arith.mulf %178, %162 : vector<4x512xf32>
    %180 = arith.addf %161, %179 : vector<4x512xf32>
    %c18_i32 = arith.constant 18 : i32
    %181 = tpu.dynamic_rotate %1 by %c18_i32 dim 1 : vector<4x512xf32>, i32 -> vector<4x512xf32>
    %c18_i32_66 = arith.constant 18 : i32
    %182 = tpu.dynamic_rotate %3 by %c18_i32_66 dim 1 : vector<3x512xf32>, i32 -> vector<3x512xf32>
    %c18_i32_67 = arith.constant 18 : i32
    %183 = tpu.dynamic_rotate %5 by %c18_i32_67 dim 1 : vector<1x512xf32>, i32 -> vector<1x512xf32>
    %184 = arith.subf %182, %3 : vector<3x512xf32>
    %185 = arith.mulf %184, %184 : vector<3x512xf32>
    %cst_68 = arith.constant dense<0.000000e+00> : vector<512xf32>
    %186 = vector.multi_reduction <add>, %185, %cst_68 [0] : vector<3x512xf32> to vector<512xf32>
    %187 = vector.shape_cast %186 : vector<512xf32> to vector<1x512xf32>
    %cst_69 = arith.constant -5.000000e-01 : f32
    %188 = vector.broadcast %cst_69 : f32 to vector<1x512xf32>
    %189 = arith.mulf %188, %187 : vector<1x512xf32>
    %190 = math.exp %189 : vector<1x512xf32>
    %cst_70 = arith.constant 0.932911932 : f32
    %191 = vector.broadcast %cst_70 : f32 to vector<1x512xf32>
    %192 = arith.mulf %191, %190 : vector<1x512xf32>
    %cst_71 = arith.constant 0.932911932 : f32
    %193 = vector.broadcast %cst_71 : f32 to vector<1x512xf32>
    %194 = arith.addf %192, %193 : vector<1x512xf32>
    %195 = arith.mulf %194, %183 : vector<1x512xf32>
    %196 = arith.addf %177, %195 : vector<1x512xf32>
    %197 = vector.broadcast %195 : vector<1x512xf32> to vector<4x512xf32>
    %198 = arith.mulf %197, %181 : vector<4x512xf32>
    %199 = arith.addf %180, %198 : vector<4x512xf32>
    %c2_i32 = arith.constant 2 : i32
    %200 = tpu.dynamic_rotate %1 by %c2_i32 dim 1 : vector<4x512xf32>, i32 -> vector<4x512xf32>
    %c2_i32_72 = arith.constant 2 : i32
    %201 = tpu.dynamic_rotate %3 by %c2_i32_72 dim 1 : vector<3x512xf32>, i32 -> vector<3x512xf32>
    %c2_i32_73 = arith.constant 2 : i32
    %202 = tpu.dynamic_rotate %5 by %c2_i32_73 dim 1 : vector<1x512xf32>, i32 -> vector<1x512xf32>
    %203 = arith.subf %201, %3 : vector<3x512xf32>
    %204 = arith.mulf %203, %203 : vector<3x512xf32>
    %cst_74 = arith.constant dense<0.000000e+00> : vector<512xf32>
    %205 = vector.multi_reduction <add>, %204, %cst_74 [0] : vector<3x512xf32> to vector<512xf32>
    %206 = vector.shape_cast %205 : vector<512xf32> to vector<1x512xf32>
    %cst_75 = arith.constant -5.000000e-01 : f32
    %207 = vector.broadcast %cst_75 : f32 to vector<1x512xf32>
    %208 = arith.mulf %207, %206 : vector<1x512xf32>
    %209 = math.exp %208 : vector<1x512xf32>
    %cst_76 = arith.constant 0.945959448 : f32
    %210 = vector.broadcast %cst_76 : f32 to vector<1x512xf32>
    %211 = arith.mulf %210, %209 : vector<1x512xf32>
    %cst_77 = arith.constant 0.945959448 : f32
    %212 = vector.broadcast %cst_77 : f32 to vector<1x512xf32>
    %213 = arith.addf %211, %212 : vector<1x512xf32>
    %214 = arith.mulf %213, %202 : vector<1x512xf32>
    %215 = arith.addf %196, %214 : vector<1x512xf32>
    %216 = vector.broadcast %214 : vector<1x512xf32> to vector<4x512xf32>
    %217 = arith.mulf %216, %200 : vector<4x512xf32>
    %218 = arith.addf %199, %217 : vector<4x512xf32>
    %c1_i32 = arith.constant 1 : i32
    %219 = tpu.dynamic_rotate %1 by %c1_i32 dim 1 : vector<4x512xf32>, i32 -> vector<4x512xf32>
    %c1_i32_78 = arith.constant 1 : i32
    %220 = tpu.dynamic_rotate %3 by %c1_i32_78 dim 1 : vector<3x512xf32>, i32 -> vector<3x512xf32>
    %c1_i32_79 = arith.constant 1 : i32
    %221 = tpu.dynamic_rotate %5 by %c1_i32_79 dim 1 : vector<1x512xf32>, i32 -> vector<1x512xf32>
    %222 = arith.subf %220, %3 : vector<3x512xf32>
    %223 = arith.mulf %222, %222 : vector<3x512xf32>
    %cst_80 = arith.constant dense<0.000000e+00> : vector<512xf32>
    %224 = vector.multi_reduction <add>, %223, %cst_80 [0] : vector<3x512xf32> to vector<512xf32>
    %225 = vector.shape_cast %224 : vector<512xf32> to vector<1x512xf32>
    %cst_81 = arith.constant -5.000000e-01 : f32
    %226 = vector.broadcast %cst_81 : f32 to vector<1x512xf32>
    %227 = arith.mulf %226, %225 : vector<1x512xf32>
    %228 = math.exp %227 : vector<1x512xf32>
    %cst_82 = arith.constant 0.986207127 : f32
    %229 = vector.broadcast %cst_82 : f32 to vector<1x512xf32>
    %230 = arith.mulf %229, %228 : vector<1x512xf32>
    %cst_83 = arith.constant 0.986207127 : f32
    %231 = vector.broadcast %cst_83 : f32 to vector<1x512xf32>
    %232 = arith.addf %230, %231 : vector<1x512xf32>
    %233 = arith.mulf %232, %221 : vector<1x512xf32>
    %234 = arith.addf %215, %233 : vector<1x512xf32>
    %235 = vector.broadcast %233 : vector<1x512xf32> to vector<4x512xf32>
    %236 = arith.mulf %235, %219 : vector<4x512xf32>
    %237 = arith.addf %218, %236 : vector<4x512xf32>
    %c511_i32 = arith.constant 511 : i32
    %238 = tpu.dynamic_rotate %1 by %c511_i32 dim 1 : vector<4x512xf32>, i32 -> vector<4x512xf32>
    %c511_i32_84 = arith.constant 511 : i32
    %239 = tpu.dynamic_rotate %3 by %c511_i32_84 dim 1 : vector<3x512xf32>, i32 -> vector<3x512xf32>
    %c511_i32_85 = arith.constant 511 : i32
    %240 = tpu.dynamic_rotate %5 by %c511_i32_85 dim 1 : vector<1x512xf32>, i32 -> vector<1x512xf32>
    %241 = arith.subf %239, %3 : vector<3x512xf32>
    %242 = arith.mulf %241, %241 : vector<3x512xf32>
    %cst_86 = arith.constant dense<0.000000e+00> : vector<512xf32>
    %243 = vector.multi_reduction <add>, %242, %cst_86 [0] : vector<3x512xf32> to vector<512xf32>
    %244 = vector.shape_cast %243 : vector<512xf32> to vector<1x512xf32>
    %cst_87 = arith.constant -5.000000e-01 : f32
    %245 = vector.broadcast %cst_87 : f32 to vector<1x512xf32>
    %246 = arith.mulf %245, %244 : vector<1x512xf32>
    %247 = math.exp %246 : vector<1x512xf32>
    %cst_88 = arith.constant 0.986207127 : f32
    %248 = vector.broadcast %cst_88 : f32 to vector<1x512xf32>
    %249 = arith.mulf %248, %247 : vector<1x512xf32>
    %cst_89 = arith.constant 0.986207127 : f32
    %250 = vector.broadcast %cst_89 : f32 to vector<1x512xf32>
    %251 = arith.addf %249, %250 : vector<1x512xf32>
    %252 = arith.mulf %251, %240 : vector<1x512xf32>
    %253 = arith.addf %234, %252 : vector<1x512xf32>
    %254 = vector.broadcast %252 : vector<1x512xf32> to vector<4x512xf32>
    %255 = arith.mulf %254, %238 : vector<4x512xf32>
    %256 = arith.addf %237, %255 : vector<4x512xf32>
    %c510_i32 = arith.constant 510 : i32
    %257 = tpu.dynamic_rotate %1 by %c510_i32 dim 1 : vector<4x512xf32>, i32 -> vector<4x512xf32>
    %c510_i32_90 = arith.constant 510 : i32
    %258 = tpu.dynamic_rotate %3 by %c510_i32_90 dim 1 : vector<3x512xf32>, i32 -> vector<3x512xf32>
    %c510_i32_91 = arith.constant 510 : i32
    %259 = tpu.dynamic_rotate %5 by %c510_i32_91 dim 1 : vector<1x512xf32>, i32 -> vector<1x512xf32>
    %260 = arith.subf %258, %3 : vector<3x512xf32>
    %261 = arith.mulf %260, %260 : vector<3x512xf32>
    %cst_92 = arith.constant dense<0.000000e+00> : vector<512xf32>
    %262 = vector.multi_reduction <add>, %261, %cst_92 [0] : vector<3x512xf32> to vector<512xf32>
    %263 = vector.shape_cast %262 : vector<512xf32> to vector<1x512xf32>
    %cst_93 = arith.constant -5.000000e-01 : f32
    %264 = vector.broadcast %cst_93 : f32 to vector<1x512xf32>
    %265 = arith.mulf %264, %263 : vector<1x512xf32>
    %266 = math.exp %265 : vector<1x512xf32>
    %cst_94 = arith.constant 0.945959448 : f32
    %267 = vector.broadcast %cst_94 : f32 to vector<1x512xf32>
    %268 = arith.mulf %267, %266 : vector<1x512xf32>
    %cst_95 = arith.constant 0.945959448 : f32
    %269 = vector.broadcast %cst_95 : f32 to vector<1x512xf32>
    %270 = arith.addf %268, %269 : vector<1x512xf32>
    %271 = arith.mulf %270, %259 : vector<1x512xf32>
    %272 = arith.addf %253, %271 : vector<1x512xf32>
    %273 = vector.broadcast %271 : vector<1x512xf32> to vector<4x512xf32>
    %274 = arith.mulf %273, %257 : vector<4x512xf32>
    %275 = arith.addf %256, %274 : vector<4x512xf32>
    %c494_i32 = arith.constant 494 : i32
    %276 = tpu.dynamic_rotate %1 by %c494_i32 dim 1 : vector<4x512xf32>, i32 -> vector<4x512xf32>
    %c494_i32_96 = arith.constant 494 : i32
    %277 = tpu.dynamic_rotate %3 by %c494_i32_96 dim 1 : vector<3x512xf32>, i32 -> vector<3x512xf32>
    %c494_i32_97 = arith.constant 494 : i32
    %278 = tpu.dynamic_rotate %5 by %c494_i32_97 dim 1 : vector<1x512xf32>, i32 -> vector<1x512xf32>
    %279 = arith.subf %277, %3 : vector<3x512xf32>
    %280 = arith.mulf %279, %279 : vector<3x512xf32>
    %cst_98 = arith.constant dense<0.000000e+00> : vector<512xf32>
    %281 = vector.multi_reduction <add>, %280, %cst_98 [0] : vector<3x512xf32> to vector<512xf32>
    %282 = vector.shape_cast %281 : vector<512xf32> to vector<1x512xf32>
    %cst_99 = arith.constant -5.000000e-01 : f32
    %283 = vector.broadcast %cst_99 : f32 to vector<1x512xf32>
    %284 = arith.mulf %283, %282 : vector<1x512xf32>
    %285 = math.exp %284 : vector<1x512xf32>
    %cst_100 = arith.constant 0.932911932 : f32
    %286 = vector.broadcast %cst_100 : f32 to vector<1x512xf32>
    %287 = arith.mulf %286, %285 : vector<1x512xf32>
    %cst_101 = arith.constant 0.932911932 : f32
    %288 = vector.broadcast %cst_101 : f32 to vector<1x512xf32>
    %289 = arith.addf %287, %288 : vector<1x512xf32>
    %290 = arith.mulf %289, %278 : vector<1x512xf32>
    %291 = arith.addf %272, %290 : vector<1x512xf32>
    %292 = vector.broadcast %290 : vector<1x512xf32> to vector<4x512xf32>
    %293 = arith.mulf %292, %276 : vector<4x512xf32>
    %294 = arith.addf %275, %293 : vector<4x512xf32>
    %c493_i32 = arith.constant 493 : i32
    %295 = tpu.dynamic_rotate %1 by %c493_i32 dim 1 : vector<4x512xf32>, i32 -> vector<4x512xf32>
    %c493_i32_102 = arith.constant 493 : i32
    %296 = tpu.dynamic_rotate %3 by %c493_i32_102 dim 1 : vector<3x512xf32>, i32 -> vector<3x512xf32>
    %c493_i32_103 = arith.constant 493 : i32
    %297 = tpu.dynamic_rotate %5 by %c493_i32_103 dim 1 : vector<1x512xf32>, i32 -> vector<1x512xf32>
    %298 = arith.subf %296, %3 : vector<3x512xf32>
    %299 = arith.mulf %298, %298 : vector<3x512xf32>
    %cst_104 = arith.constant dense<0.000000e+00> : vector<512xf32>
    %300 = vector.multi_reduction <add>, %299, %cst_104 [0] : vector<3x512xf32> to vector<512xf32>
    %301 = vector.shape_cast %300 : vector<512xf32> to vector<1x512xf32>
    %cst_105 = arith.constant -5.000000e-01 : f32
    %302 = vector.broadcast %cst_105 : f32 to vector<1x512xf32>
    %303 = arith.mulf %302, %301 : vector<1x512xf32>
    %304 = math.exp %303 : vector<1x512xf32>
    %cst_106 = arith.constant 0.972604453 : f32
    %305 = vector.broadcast %cst_106 : f32 to vector<1x512xf32>
    %306 = arith.mulf %305, %304 : vector<1x512xf32>
    %cst_107 = arith.constant 0.972604453 : f32
    %307 = vector.broadcast %cst_107 : f32 to vector<1x512xf32>
    %308 = arith.addf %306, %307 : vector<1x512xf32>
    %309 = arith.mulf %308, %297 : vector<1x512xf32>
    %310 = arith.addf %291, %309 : vector<1x512xf32>
    %311 = vector.broadcast %309 : vector<1x512xf32> to vector<4x512xf32>
    %312 = arith.mulf %311, %295 : vector<4x512xf32>
    %313 = arith.addf %294, %312 : vector<4x512xf32>
    %c492_i32 = arith.constant 492 : i32
    %314 = tpu.dynamic_rotate %1 by %c492_i32 dim 1 : vector<4x512xf32>, i32 -> vector<4x512xf32>
    %c492_i32_108 = arith.constant 492 : i32
    %315 = tpu.dynamic_rotate %3 by %c492_i32_108 dim 1 : vector<3x512xf32>, i32 -> vector<3x512xf32>
    %c492_i32_109 = arith.constant 492 : i32
    %316 = tpu.dynamic_rotate %5 by %c492_i32_109 dim 1 : vector<1x512xf32>, i32 -> vector<1x512xf32>
    %317 = arith.subf %315, %3 : vector<3x512xf32>
    %318 = arith.mulf %317, %317 : vector<3x512xf32>
    %cst_110 = arith.constant dense<0.000000e+00> : vector<512xf32>
    %319 = vector.multi_reduction <add>, %318, %cst_110 [0] : vector<3x512xf32> to vector<512xf32>
    %320 = vector.shape_cast %319 : vector<512xf32> to vector<1x512xf32>
    %cst_111 = arith.constant -5.000000e-01 : f32
    %321 = vector.broadcast %cst_111 : f32 to vector<1x512xf32>
    %322 = arith.mulf %321, %320 : vector<1x512xf32>
    %323 = math.exp %322 : vector<1x512xf32>
    %cst_112 = arith.constant 0.986207127 : f32
    %324 = vector.broadcast %cst_112 : f32 to vector<1x512xf32>
    %325 = arith.mulf %324, %323 : vector<1x512xf32>
    %cst_113 = arith.constant 0.986207127 : f32
    %326 = vector.broadcast %cst_113 : f32 to vector<1x512xf32>
    %327 = arith.addf %325, %326 : vector<1x512xf32>
    %328 = arith.mulf %327, %316 : vector<1x512xf32>
    %329 = arith.addf %310, %328 : vector<1x512xf32>
    %330 = vector.broadcast %328 : vector<1x512xf32> to vector<4x512xf32>
    %331 = arith.mulf %330, %314 : vector<4x512xf32>
    %332 = arith.addf %313, %331 : vector<4x512xf32>
    %c491_i32 = arith.constant 491 : i32
    %333 = tpu.dynamic_rotate %1 by %c491_i32 dim 1 : vector<4x512xf32>, i32 -> vector<4x512xf32>
    %c491_i32_114 = arith.constant 491 : i32
    %334 = tpu.dynamic_rotate %3 by %c491_i32_114 dim 1 : vector<3x512xf32>, i32 -> vector<3x512xf32>
    %c491_i32_115 = arith.constant 491 : i32
    %335 = tpu.dynamic_rotate %5 by %c491_i32_115 dim 1 : vector<1x512xf32>, i32 -> vector<1x512xf32>
    %336 = arith.subf %334, %3 : vector<3x512xf32>
    %337 = arith.mulf %336, %336 : vector<3x512xf32>
    %cst_116 = arith.constant dense<0.000000e+00> : vector<512xf32>
    %338 = vector.multi_reduction <add>, %337, %cst_116 [0] : vector<3x512xf32> to vector<512xf32>
    %339 = vector.shape_cast %338 : vector<512xf32> to vector<1x512xf32>
    %cst_117 = arith.constant -5.000000e-01 : f32
    %340 = vector.broadcast %cst_117 : f32 to vector<1x512xf32>
    %341 = arith.mulf %340, %339 : vector<1x512xf32>
    %342 = math.exp %341 : vector<1x512xf32>
    %cst_118 = arith.constant 0.972604453 : f32
    %343 = vector.broadcast %cst_118 : f32 to vector<1x512xf32>
    %344 = arith.mulf %343, %342 : vector<1x512xf32>
    %cst_119 = arith.constant 0.972604453 : f32
    %345 = vector.broadcast %cst_119 : f32 to vector<1x512xf32>
    %346 = arith.addf %344, %345 : vector<1x512xf32>
    %347 = arith.mulf %346, %335 : vector<1x512xf32>
    %348 = arith.addf %329, %347 : vector<1x512xf32>
    %349 = vector.broadcast %347 : vector<1x512xf32> to vector<4x512xf32>
    %350 = arith.mulf %349, %333 : vector<4x512xf32>
    %351 = arith.addf %332, %350 : vector<4x512xf32>
    %c490_i32 = arith.constant 490 : i32
    %352 = tpu.dynamic_rotate %1 by %c490_i32 dim 1 : vector<4x512xf32>, i32 -> vector<4x512xf32>
    %c490_i32_120 = arith.constant 490 : i32
    %353 = tpu.dynamic_rotate %3 by %c490_i32_120 dim 1 : vector<3x512xf32>, i32 -> vector<3x512xf32>
    %c490_i32_121 = arith.constant 490 : i32
    %354 = tpu.dynamic_rotate %5 by %c490_i32_121 dim 1 : vector<1x512xf32>, i32 -> vector<1x512xf32>
    %355 = arith.subf %353, %3 : vector<3x512xf32>
    %356 = arith.mulf %355, %355 : vector<3x512xf32>
    %cst_122 = arith.constant dense<0.000000e+00> : vector<512xf32>
    %357 = vector.multi_reduction <add>, %356, %cst_122 [0] : vector<3x512xf32> to vector<512xf32>
    %358 = vector.shape_cast %357 : vector<512xf32> to vector<1x512xf32>
    %cst_123 = arith.constant -5.000000e-01 : f32
    %359 = vector.broadcast %cst_123 : f32 to vector<1x512xf32>
    %360 = arith.mulf %359, %358 : vector<1x512xf32>
    %361 = math.exp %360 : vector<1x512xf32>
    %cst_124 = arith.constant 0.932911932 : f32
    %362 = vector.broadcast %cst_124 : f32 to vector<1x512xf32>
    %363 = arith.mulf %362, %361 : vector<1x512xf32>
    %cst_125 = arith.constant 0.932911932 : f32
    %364 = vector.broadcast %cst_125 : f32 to vector<1x512xf32>
    %365 = arith.addf %363, %364 : vector<1x512xf32>
    %366 = arith.mulf %365, %354 : vector<1x512xf32>
    %367 = arith.addf %348, %366 : vector<1x512xf32>
    %368 = vector.broadcast %366 : vector<1x512xf32> to vector<4x512xf32>
    %369 = arith.mulf %368, %352 : vector<4x512xf32>
    %370 = arith.addf %351, %369 : vector<4x512xf32>
    %c474_i32 = arith.constant 474 : i32
    %371 = tpu.dynamic_rotate %1 by %c474_i32 dim 1 : vector<4x512xf32>, i32 -> vector<4x512xf32>
    %c474_i32_126 = arith.constant 474 : i32
    %372 = tpu.dynamic_rotate %3 by %c474_i32_126 dim 1 : vector<3x512xf32>, i32 -> vector<3x512xf32>
    %c474_i32_127 = arith.constant 474 : i32
    %373 = tpu.dynamic_rotate %5 by %c474_i32_127 dim 1 : vector<1x512xf32>, i32 -> vector<1x512xf32>
    %374 = arith.subf %372, %3 : vector<3x512xf32>
    %375 = arith.mulf %374, %374 : vector<3x512xf32>
    %cst_128 = arith.constant dense<0.000000e+00> : vector<512xf32>
    %376 = vector.multi_reduction <add>, %375, %cst_128 [0] : vector<3x512xf32> to vector<512xf32>
    %377 = vector.shape_cast %376 : vector<512xf32> to vector<1x512xf32>
    %cst_129 = arith.constant -5.000000e-01 : f32
    %378 = vector.broadcast %cst_129 : f32 to vector<1x512xf32>
    %379 = arith.mulf %378, %377 : vector<1x512xf32>
    %380 = math.exp %379 : vector<1x512xf32>
    %cst_130 = arith.constant 0.894839346 : f32
    %381 = vector.broadcast %cst_130 : f32 to vector<1x512xf32>
    %382 = arith.mulf %381, %380 : vector<1x512xf32>
    %cst_131 = arith.constant 0.894839346 : f32
    %383 = vector.broadcast %cst_131 : f32 to vector<1x512xf32>
    %384 = arith.addf %382, %383 : vector<1x512xf32>
    %385 = arith.mulf %384, %373 : vector<1x512xf32>
    %386 = arith.addf %367, %385 : vector<1x512xf32>
    %387 = vector.broadcast %385 : vector<1x512xf32> to vector<4x512xf32>
    %388 = arith.mulf %387, %371 : vector<4x512xf32>
    %389 = arith.addf %370, %388 : vector<4x512xf32>
    %c473_i32 = arith.constant 473 : i32
    %390 = tpu.dynamic_rotate %1 by %c473_i32 dim 1 : vector<4x512xf32>, i32 -> vector<4x512xf32>
    %c473_i32_132 = arith.constant 473 : i32
    %391 = tpu.dynamic_rotate %3 by %c473_i32_132 dim 1 : vector<3x512xf32>, i32 -> vector<3x512xf32>
    %c473_i32_133 = arith.constant 473 : i32
    %392 = tpu.dynamic_rotate %5 by %c473_i32_133 dim 1 : vector<1x512xf32>, i32 -> vector<1x512xf32>
    %393 = arith.subf %391, %3 : vector<3x512xf32>
    %394 = arith.mulf %393, %393 : vector<3x512xf32>
    %cst_134 = arith.constant dense<0.000000e+00> : vector<512xf32>
    %395 = vector.multi_reduction <add>, %394, %cst_134 [0] : vector<3x512xf32> to vector<512xf32>
    %396 = vector.shape_cast %395 : vector<512xf32> to vector<1x512xf32>
    %cst_135 = arith.constant -5.000000e-01 : f32
    %397 = vector.broadcast %cst_135 : f32 to vector<1x512xf32>
    %398 = arith.mulf %397, %396 : vector<1x512xf32>
    %399 = math.exp %398 : vector<1x512xf32>
    %cst_136 = arith.constant 0.932911932 : f32
    %400 = vector.broadcast %cst_136 : f32 to vector<1x512xf32>
    %401 = arith.mulf %400, %399 : vector<1x512xf32>
    %cst_137 = arith.constant 0.932911932 : f32
    %402 = vector.broadcast %cst_137 : f32 to vector<1x512xf32>
    %403 = arith.addf %401, %402 : vector<1x512xf32>
    %404 = arith.mulf %403, %392 : vector<1x512xf32>
    %405 = arith.addf %386, %404 : vector<1x512xf32>
    %406 = vector.broadcast %404 : vector<1x512xf32> to vector<4x512xf32>
    %407 = arith.mulf %406, %390 : vector<4x512xf32>
    %408 = arith.addf %389, %407 : vector<4x512xf32>
    %c472_i32 = arith.constant 472 : i32
    %409 = tpu.dynamic_rotate %1 by %c472_i32 dim 1 : vector<4x512xf32>, i32 -> vector<4x512xf32>
    %c472_i32_138 = arith.constant 472 : i32
    %410 = tpu.dynamic_rotate %3 by %c472_i32_138 dim 1 : vector<3x512xf32>, i32 -> vector<3x512xf32>
    %c472_i32_139 = arith.constant 472 : i32
    %411 = tpu.dynamic_rotate %5 by %c472_i32_139 dim 1 : vector<1x512xf32>, i32 -> vector<1x512xf32>
    %412 = arith.subf %410, %3 : vector<3x512xf32>
    %413 = arith.mulf %412, %412 : vector<3x512xf32>
    %cst_140 = arith.constant dense<0.000000e+00> : vector<512xf32>
    %414 = vector.multi_reduction <add>, %413, %cst_140 [0] : vector<3x512xf32> to vector<512xf32>
    %415 = vector.shape_cast %414 : vector<512xf32> to vector<1x512xf32>
    %cst_141 = arith.constant -5.000000e-01 : f32
    %416 = vector.broadcast %cst_141 : f32 to vector<1x512xf32>
    %417 = arith.mulf %416, %415 : vector<1x512xf32>
    %418 = math.exp %417 : vector<1x512xf32>
    %cst_142 = arith.constant 0.945959448 : f32
    %419 = vector.broadcast %cst_142 : f32 to vector<1x512xf32>
    %420 = arith.mulf %419, %418 : vector<1x512xf32>
    %cst_143 = arith.constant 0.945959448 : f32
    %421 = vector.broadcast %cst_143 : f32 to vector<1x512xf32>
    %422 = arith.addf %420, %421 : vector<1x512xf32>
    %423 = arith.mulf %422, %411 : vector<1x512xf32>
    %424 = arith.addf %405, %423 : vector<1x512xf32>
    %425 = vector.broadcast %423 : vector<1x512xf32> to vector<4x512xf32>
    %426 = arith.mulf %425, %409 : vector<4x512xf32>
    %427 = arith.addf %408, %426 : vector<4x512xf32>
    %c471_i32 = arith.constant 471 : i32
    %428 = tpu.dynamic_rotate %1 by %c471_i32 dim 1 : vector<4x512xf32>, i32 -> vector<4x512xf32>
    %c471_i32_144 = arith.constant 471 : i32
    %429 = tpu.dynamic_rotate %3 by %c471_i32_144 dim 1 : vector<3x512xf32>, i32 -> vector<3x512xf32>
    %c471_i32_145 = arith.constant 471 : i32
    %430 = tpu.dynamic_rotate %5 by %c471_i32_145 dim 1 : vector<1x512xf32>, i32 -> vector<1x512xf32>
    %431 = arith.subf %429, %3 : vector<3x512xf32>
    %432 = arith.mulf %431, %431 : vector<3x512xf32>
    %cst_146 = arith.constant dense<0.000000e+00> : vector<512xf32>
    %433 = vector.multi_reduction <add>, %432, %cst_146 [0] : vector<3x512xf32> to vector<512xf32>
    %434 = vector.shape_cast %433 : vector<512xf32> to vector<1x512xf32>
    %cst_147 = arith.constant -5.000000e-01 : f32
    %435 = vector.broadcast %cst_147 : f32 to vector<1x512xf32>
    %436 = arith.mulf %435, %434 : vector<1x512xf32>
    %437 = math.exp %436 : vector<1x512xf32>
    %cst_148 = arith.constant 0.932911932 : f32
    %438 = vector.broadcast %cst_148 : f32 to vector<1x512xf32>
    %439 = arith.mulf %438, %437 : vector<1x512xf32>
    %cst_149 = arith.constant 0.932911932 : f32
    %440 = vector.broadcast %cst_149 : f32 to vector<1x512xf32>
    %441 = arith.addf %439, %440 : vector<1x512xf32>
    %442 = arith.mulf %441, %430 : vector<1x512xf32>
    %443 = arith.addf %424, %442 : vector<1x512xf32>
    %444 = vector.broadcast %442 : vector<1x512xf32> to vector<4x512xf32>
    %445 = arith.mulf %444, %428 : vector<4x512xf32>
    %446 = arith.addf %427, %445 : vector<4x512xf32>
    %c470_i32 = arith.constant 470 : i32
    %447 = tpu.dynamic_rotate %1 by %c470_i32 dim 1 : vector<4x512xf32>, i32 -> vector<4x512xf32>
    %c470_i32_150 = arith.constant 470 : i32
    %448 = tpu.dynamic_rotate %3 by %c470_i32_150 dim 1 : vector<3x512xf32>, i32 -> vector<3x512xf32>
    %c470_i32_151 = arith.constant 470 : i32
    %449 = tpu.dynamic_rotate %5 by %c470_i32_151 dim 1 : vector<1x512xf32>, i32 -> vector<1x512xf32>
    %450 = arith.subf %448, %3 : vector<3x512xf32>
    %451 = arith.mulf %450, %450 : vector<3x512xf32>
    %cst_152 = arith.constant dense<0.000000e+00> : vector<512xf32>
    %452 = vector.multi_reduction <add>, %451, %cst_152 [0] : vector<3x512xf32> to vector<512xf32>
    %453 = vector.shape_cast %452 : vector<512xf32> to vector<1x512xf32>
    %cst_153 = arith.constant -5.000000e-01 : f32
    %454 = vector.broadcast %cst_153 : f32 to vector<1x512xf32>
    %455 = arith.mulf %454, %453 : vector<1x512xf32>
    %456 = math.exp %455 : vector<1x512xf32>
    %cst_154 = arith.constant 0.894839346 : f32
    %457 = vector.broadcast %cst_154 : f32 to vector<1x512xf32>
    %458 = arith.mulf %457, %456 : vector<1x512xf32>
    %cst_155 = arith.constant 0.894839346 : f32
    %459 = vector.broadcast %cst_155 : f32 to vector<1x512xf32>
    %460 = arith.addf %458, %459 : vector<1x512xf32>
    %461 = arith.mulf %460, %449 : vector<1x512xf32>
    %462 = arith.addf %443, %461 : vector<1x512xf32>
    %463 = vector.broadcast %461 : vector<1x512xf32> to vector<4x512xf32>
    %464 = arith.mulf %463, %447 : vector<4x512xf32>
    %465 = arith.addf %446, %464 : vector<4x512xf32>
    %466 = arith.mulf %462, %7 : vector<1x512xf32>
    %467 = vector.shape_cast %466 : vector<1x512xf32> to vector<1x1x512xf32>
    %cst_156 = arith.constant dense<0.000000e+00> : vector<1xf32>
    %468 = vector.multi_reduction <add>, %467, %cst_156 [1, 2] : vector<1x1x512xf32> to vector<1xf32>
    %469 = vector.shape_cast %468 : vector<1xf32> to vector<1x1x1xf32>
    %470 = vector.extract %469[0, 0, 0] : f32 from vector<1x1x1xf32>
    %471 = vector.broadcast %470 : f32 to vector<1x1xf32>
    %472 = arith.mulf %1, %465 : vector<4x512xf32>
    %473 = vector.shape_cast %472 : vector<4x512xf32> to vector<1x4x512xf32>
    %cst_157 = arith.constant dense<0.000000e+00> : vector<1xf32>
    %474 = vector.multi_reduction <add>, %473, %cst_157 [1, 2] : vector<1x4x512xf32> to vector<1xf32>
    %475 = vector.shape_cast %474 : vector<1xf32> to vector<1x1x1xf32>
    %476 = vector.extract %475[0, 0, 0] : f32 from vector<1x1x1xf32>
    %477 = vector.broadcast %476 : f32 to vector<1x1xf32>
    %478 = arith.subf %471, %477 : vector<1x1xf32>
    %c0_158 = arith.constant 0 : index
    %c0_159 = arith.constant 0 : index
    %c0_160 = arith.constant 0 : index
    %479 = vector.load %arg5[%c0_158, %c0_159, %c0_160] : memref<1x1x1xf32, #tpu.memory_space<vmem>>, vector<1x1x1xf32>
    %480 = vector.shape_cast %479 : vector<1x1x1xf32> to vector<1x1xf32>
    %481 = vector.shape_cast %478 : vector<1x1xf32> to vector<1x1x1xf32>
    tpu.vector_store %arg5[%c0_158, %c0_159, %c0_160], %481 {strides = array<i32>} : memref<1x1x1xf32, #tpu.memory_space<vmem>>, vector<1x1x1xf32>,
    return
  }
  func.func @transform_0(%arg0: i32) -> (i32, i32, i32) {
    %c0_i32 = arith.constant 0 : i32
    %c0_i32_0 = arith.constant 0 : i32
    %c0_i32_1 = arith.constant 0 : i32
    return %arg0, %c0_i32, %c0_i32_0 : i32, i32, i32
  }
  func.func @transform_1(%arg0: i32) -> (i32, i32, i32) {
    %c0_i32 = arith.constant 0 : i32
    %c0_i32_0 = arith.constant 0 : i32
    %c0_i32_1 = arith.constant 0 : i32
    return %arg0, %c0_i32, %c0_i32_0 : i32, i32, i32
  }
  func.func @transform_2(%arg0: i32) -> (i32, i32, i32) {
    %c0_i32 = arith.constant 0 : i32
    %c0_i32_0 = arith.constant 0 : i32
    %c0_i32_1 = arith.constant 0 : i32
    return %arg0, %c0_i32, %c0_i32_0 : i32, i32, i32
  }
  func.func @transform_3(%arg0: i32) -> (i32, i32, i32) {
    %c0_i32 = arith.constant 0 : i32
    %c0_i32_0 = arith.constant 0 : i32
    %c0_i32_1 = arith.constant 0 : i32
    %c0_i32_2 = arith.constant 0 : i32
    return %c0_i32, %c0_i32_0, %c0_i32_1 : i32, i32, i32
  }
  func.func @transform_4(%arg0: i32) -> (i32, i32, i32) {
    %c0_i32 = arith.constant 0 : i32
    %c0_i32_0 = arith.constant 0 : i32
    %c0_i32_1 = arith.constant 0 : i32
    return %arg0, %c0_i32, %c0_i32_0 : i32, i32, i32
  }
}

</mosaic_0001>

<llo_original>
// kernel: tpu_custom_call.1
$region0: #{tpu_custom_call.1}
  #allocation0 [shape = 'u32[]', space=smem, size = 0x4, offset = 0x4, fixed_abs, tag = 'smem constant byte address 0x4 - core index']
  #allocation1 [shape = 'u32[144,128]{1,0:T(1,128)}', space=vmem, size = 0x12000, scoped, tag = 'internal scratch']
  %s0 = inlined_call_operand.vmem [shape: f32[2,4,512], index: 0, kind: input, shape index: {}]
  %s1 = inlined_call_operand.vmem [shape: f32[2,3,512], index: 1, kind: input, shape index: {}]
  %s2 = inlined_call_operand.vmem [shape: f32[2,1,512], index: 2, kind: input, shape index: {}]
  %s3 = inlined_call_operand.vmem [shape: f32[1,1,512], index: 3, kind: input, shape index: {}]
  %s4 = inlined_call_operand.vmem [shape: f32[2,1,1], index: 4, kind: output, shape index: {}]
  %s5 = sld [smem:[#allocation0]]
  $region49: #{tpu_custom_call.1} parent=0
    _
  %s7 = ssub.s32 1, %s5
  %s8 = scalar_select 0, %s7, %s5
  loop: start=0, step=1, limit=4
  $region2: #{tpu_custom_call.1} parent=0 // loop_pre_header
    _
  $region3: #{tpu_custom_call.1} parent=0 // loop_header
    %s10 = sphi 0, %s14
    %p11 = scmp.ge.s32.totalorder %s10, 4
    %s20 = sphi 0, %s22
    %s23 = sphi 0, %s20
    %s24 = sphi 0, %s23
    %s40 = sphi 0, %s24
    %s46 = sphi 0, %s48
    %s49 = sphi 0, %s46
    %s50 = sphi 0, %s49
    %s66 = sphi 0, %s50
    %s72 = sphi 0, %s74
    %s75 = sphi 0, %s72
    %s76 = sphi 0, %s75
    %s92 = sphi 0, %s76
    %s96 = sphi 0, %s96
    %s98 = sphi 0, %s96
    %s99 = sphi 0, %s98
    %s113 = sphi 0, %s99
    %s119 = sphi 0, %s121
    %s122 = sphi 0, %s119
    %s123 = sphi 0, %s122
    %s139 = sphi 0, %s123
  $region4: #{tpu_custom_call.1} parent=0 // loop_header_branch
    %13 = sbr.rel (%p11) target = $region8
  $region5: #{tpu_custom_call.1} parent=0 // loop_body
    %s15 = ssub.s32 %s10, 1
    %s16 = ssub.s32 %s10, 2
    %s17 = sadd.s32 %s10, 1
    %s18 = ssub.s32 %s10, %s17
    %p19 = scmp.eq.s32.totalorder %s18, 0
    %s21 = sadd.s32 %s20, 1
    %s22 = scalar_select %p19, %s20, %s21
    %p25 = pneg %p19
    %p26 = scmp.eq.s32.totalorder %s10, 1
    %p27 = por %p25, %p26
    %p28 = scmp.ne.s32.totalorder %s20, %s23
    %p29 = scmp.eq.s32.totalorder %s10, 0
    %p30 = por %p28, %p29
    %p31 = scmp.ne.s32.totalorder %s20, %s23
    %p32 = scmp.eq.s32.totalorder %s15, 1
    %p33 = por %p31, %p32
    %p34 = scmp.ne.s32.totalorder %s23, %s24
    %p35 = scmp.eq.s32.totalorder %s15, 0
    %p36 = por %p34, %p35
    %p37 = scmp.ne.s32.totalorder %s23, %s24
    %p38 = scmp.eq.s32.totalorder %s16, 1
    %p39 = por %p37, %p38
    %p41 = scmp.ne.s32.totalorder %s24, %s40
    %p42 = scmp.eq.s32.totalorder %s16, 0
    %p43 = por %p41, %p42
    %s44 = ssub.s32 %s10, %s17
    %p45 = scmp.eq.s32.totalorder %s44, 0
    %s47 = sadd.s32 %s46, 1
    %s48 = scalar_select %p45, %s46, %s47
    %p51 = pneg %p45
    %p52 = scmp.eq.s32.totalorder %s10, 1
    %p53 = por %p51, %p52
    %p54 = scmp.ne.s32.totalorder %s46, %s49
    %p55 = scmp.eq.s32.totalorder %s10, 0
    %p56 = por %p54, %p55
    %p57 = scmp.ne.s32.totalorder %s46, %s49
    %p58 = scmp.eq.s32.totalorder %s15, 1
    %p59 = por %p57, %p58
    %p60 = scmp.ne.s32.totalorder %s49, %s50
    %p61 = scmp.eq.s32.totalorder %s15, 0
    %p62 = por %p60, %p61
    %p63 = scmp.ne.s32.totalorder %s49, %s50
    %p64 = scmp.eq.s32.totalorder %s16, 1
    %p65 = por %p63, %p64
    %p67 = scmp.ne.s32.totalorder %s50, %s66
    %p68 = scmp.eq.s32.totalorder %s16, 0
    %p69 = por %p67, %p68
    %s70 = ssub.s32 %s10, %s17
    %p71 = scmp.eq.s32.totalorder %s70, 0
    %s73 = sadd.s32 %s72, 1
    %s74 = scalar_select %p71, %s72, %s73
    %p77 = pneg %p71
    %p78 = scmp.eq.s32.totalorder %s10, 1
    %p79 = por %p77, %p78
    %p80 = scmp.ne.s32.totalorder %s72, %s75
    %p81 = scmp.eq.s32.totalorder %s10, 0
    %p82 = por %p80, %p81
    %p83 = scmp.ne.s32.totalorder %s72, %s75
    %p84 = scmp.eq.s32.totalorder %s15, 1
    %p85 = por %p83, %p84
    %p86 = scmp.ne.s32.totalorder %s75, %s76
    %p87 = scmp.eq.s32.totalorder %s15, 0
    %p88 = por %p86, %p87
    %p89 = scmp.ne.s32.totalorder %s75, %s76
    %p90 = scmp.eq.s32.totalorder %s16, 1
    %p91 = por %p89, %p90
    %p93 = scmp.ne.s32.totalorder %s76, %s92
    %p94 = scmp.eq.s32.totalorder %s16, 0
    %p95 = por %p93, %p94
    %s97 = sadd.s32 %s96, 1
    %p100 = scmp.eq.s32.totalorder %s10, 1
    %p101 = scmp.ne.s32.totalorder %s96, %s98
    %p102 = scmp.eq.s32.totalorder %s10, 0
    %p103 = por %p101, %p102
    %p104 = scmp.ne.s32.totalorder %s96, %s98
    %p105 = scmp.eq.s32.totalorder %s15, 1
    %p106 = por %p104, %p105
    %p107 = scmp.ne.s32.totalorder %s98, %s99
    %p108 = scmp.eq.s32.totalorder %s15, 0
    %p109 = por %p107, %p108
    %p110 = scmp.ne.s32.totalorder %s98, %s99
    %p111 = scmp.eq.s32.totalorder %s16, 1
    %p112 = por %p110, %p111
    %p114 = scmp.ne.s32.totalorder %s99, %s113
    %p115 = scmp.eq.s32.totalorder %s16, 0
    %p116 = por %p114, %p115
    %s117 = ssub.s32 %s10, %s17
    %p118 = scmp.eq.s32.totalorder %s117, 0
    %s120 = sadd.s32 %s119, 1
    %s121 = scalar_select %p118, %s119, %s120
    %p124 = pneg %p118
    %p125 = scmp.eq.s32.totalorder %s10, 1
    %p126 = por %p124, %p125
    %p127 = scmp.ne.s32.totalorder %s119, %s122
    %p128 = scmp.eq.s32.totalorder %s10, 0
    %p129 = por %p127, %p128
    %p130 = scmp.ne.s32.totalorder %s119, %s122
    %p131 = scmp.eq.s32.totalorder %s15, 1
    %p132 = por %p130, %p131
    %p133 = scmp.ne.s32.totalorder %s122, %s123
    %p134 = scmp.eq.s32.totalorder %s15, 0
    %p135 = por %p133, %p134
    %p136 = scmp.ne.s32.totalorder %s122, %s123
    %p137 = scmp.eq.s32.totalorder %s16, 1
    %p138 = por %p136, %p137
    %p140 = scmp.ne.s32.totalorder %s123, %s139
    %p141 = scmp.eq.s32.totalorder %s16, 0
    %p142 = por %p140, %p141
    %p143 = scmp.le.s32.totalorder 1, %s10
    %p144 = scmp.lt.s32.totalorder %s10, 3
    %p145 = pnand %p143, %p144
    %p146 = pneg %p145
    // Predicated region
    $region9: #{tpu_custom_call.1} parent=5 // pred_check
      _
    $region10: #{tpu_custom_call.1} parent=5 // pred_check_branch
      %148 = sbr.rel (%p145) target = $region12
    $region11: #{tpu_custom_call.1} parent=5 // pred_region
      %s149 = ssub.s32 %s10, 1
      // Predicated region
      $region13: #{tpu_custom_call.1} parent=11 // pred_check
        %p150 = pneg %p109
      $region14: #{tpu_custom_call.1} parent=11 // pred_check_branch
        %152 = sbr.rel (%p150) target = $region16
      $region15: #{tpu_custom_call.1} parent=11 // pred_region
        _
      $region16: #{tpu_custom_call.1} parent=11 // pred_fallthru
        _
    $region12: #{tpu_custom_call.1} parent=5 // pred_fallthru
      _
    %p153 = scmp.lt.s32.totalorder %s10, 2
    // Predicated region
    $region17: #{tpu_custom_call.1} parent=5 // pred_check
      %p154 = pneg %p153
    $region18: #{tpu_custom_call.1} parent=5 // pred_check_branch
      %156 = sbr.rel (%p154) target = $region20
    $region19: #{tpu_custom_call.1} parent=5 // pred_region
      // Predicated region
      $region21: #{tpu_custom_call.1} parent=19 // pred_check
        %p157 = pneg %p30
      $region22: #{tpu_custom_call.1} parent=19 // pred_check_branch
        %159 = sbr.rel (%p157) target = $region24
      $region23: #{tpu_custom_call.1} parent=19 // pred_region
        %p160 = scmp.lt.s32.totalorder %s10, 1
        %s161 = scalar_select %p160, %s10, 1
        %s162 = smul.addr %s161, 4
        %s163 = smul.addr %s162, 4
        %s164 = scalar_lea.vmem %s0, %s163
      $region24: #{tpu_custom_call.1} parent=19 // pred_fallthru
        _
      // Predicated region
      $region25: #{tpu_custom_call.1} parent=19 // pred_check
        %p165 = pneg %p56
      $region26: #{tpu_custom_call.1} parent=19 // pred_check_branch
        %167 = sbr.rel (%p165) target = $region28
      $region27: #{tpu_custom_call.1} parent=19 // pred_region
        %p168 = scmp.lt.s32.totalorder %s10, 1
        %s169 = scalar_select %p168, %s10, 1
        %s170 = smul.addr %s169, 4
        %s171 = smul.addr %s170, 4
        %s172 = scalar_lea.vmem %s1, %s171
      $region28: #{tpu_custom_call.1} parent=19 // pred_fallthru
        _
      // Predicated region
      $region29: #{tpu_custom_call.1} parent=19 // pred_check
        %p173 = pneg %p82
      $region30: #{tpu_custom_call.1} parent=19 // pred_check_branch
        %175 = sbr.rel (%p173) target = $region32
      $region31: #{tpu_custom_call.1} parent=19 // pred_region
        %p176 = scmp.lt.s32.totalorder %s10, 1
        %s177 = scalar_select %p176, %s10, 1
        %s178 = smul.addr %s177, 4
        %s179 = scalar_lea.vmem %s2, %s178
      $region32: #{tpu_custom_call.1} parent=19 // pred_fallthru
        _
    $region20: #{tpu_custom_call.1} parent=5 // pred_fallthru
      _
    %p180 = scmp.le.s32.totalorder 1, %s10
    %p181 = scmp.lt.s32.totalorder %s10, 3
    %p182 = pnand %p180, %p181
    %p183 = pneg %p182
    // Predicated region
    $region33: #{tpu_custom_call.1} parent=5 // pred_check
      _
    $region34: #{tpu_custom_call.1} parent=5 // pred_check_branch
      %185 = sbr.rel (%p182) target = $region36
    $region35: #{tpu_custom_call.1} parent=5 // pred_region
      %s186 = ssub.s32 %s10, 1
      %p187 = scmp.lt.s32.totalorder %s15, 1
      %s188 = scalar_select %p187, %s15, 1
      %s189 = smul.addr %s188, 4
      %s190 = smul.addr %s189, 4
      %s191 = scalar_lea.vmem %s0, %s190
      %p192 = pneg %p36
      %p193 = pneg %p33
      %p194 = scmp.lt.s32.totalorder %s15, 1
      %s195 = scalar_select %p194, %s15, 1
      %s196 = smul.addr %s195, 4
      %s197 = smul.addr %s196, 4
      %s198 = scalar_lea.vmem %s1, %s197
      %p199 = pneg %p62
      %p200 = pneg %p59
      %p201 = scmp.lt.s32.totalorder %s15, 1
      %s202 = scalar_select %p201, %s15, 1
      %s203 = smul.addr %s202, 4
      %s204 = scalar_lea.vmem %s2, %s203
      %p205 = pneg %p88
      %p206 = pneg %p85
      %p207 = pneg %p109
      %p208 = pneg %p106
      %p209 = pneg %p135
      %p210 = pneg %p132
      %p211 = scmp.lt.s32.totalorder %s15, 1
      %s212 = scalar_select %p211, %s15, 1
      %s213 = scalar_lea.vmem %s4, %s212
      %p214 = scmp.lt.s32.totalorder %s15, 1
      %s215 = scalar_select %p214, %s15, 1
      %s216 = smul.addr %s215, 4
      %s217 = smul.addr %s216, 4
      %s218 = scalar_lea.vmem %s0, %s217
      %p219 = scmp.lt.s32.totalorder %s15, 1
      %s220 = scalar_select %p219, %s15, 1
      %s221 = smul.addr %s220, 4
      %s222 = smul.addr %s221, 4
      %s223 = scalar_lea.vmem %s1, %s222
      %p224 = scmp.lt.s32.totalorder %s15, 1
      %s225 = scalar_select %p224, %s15, 1
      %s226 = smul.addr %s225, 4
      %s227 = scalar_lea.vmem %s2, %s226
      %p228 = scmp.lt.s32.totalorder %s15, 1
      %s229 = scalar_select %p228, %s15, 1
      %s230 = scalar_lea.vmem %s4, %s229
      %v231 = vld [vmem:[%s218] sm:$0xff]
      %v232 = vld [vmem:[%s218 + $0x8] sm:$0xff]
      %v233 = vld [vmem:[%s223] sm:$0x77]
      %v234 = vld [vmem:[%s223 + $0x8] sm:$0x77]
      %v235 = vld [vmem:[%s227] sm:$0xf]
      %v236 = vld [vmem:[%s3] sm:$0xf]
      %v239 = vcombine.high %v231, %v231
      %v240 = vcombine.high %v232, %v232
      %243 = vrot.lane.b32.xlu0 %v231, 42
      %v244 = vpop.permute.xlu0 %243
      %245 = vrot.lane.b32.xlu0 %v239, 42
      %v246 = vpop.permute.xlu0 %245
      %247 = vrot.lane.b32.xlu0 %v232, 42
      %v248 = vpop.permute.xlu0 %247
      %249 = vrot.lane.b32.xlu0 %v240, 42
      %v250 = vpop.permute.xlu0 %249
      %v251 = vlaneseq
      %v252 = vand.u32 %v251, 127
      %vm253 = vcmp.lt.s32.totalorder %v252, 42
      %v254 = vsel %vm253, %v248, %v250
      %v255 = vsel %vm253, %v246, %v248
      %v256 = vsel %vm253, %v244, %v246
      %v257 = vsel %vm253, %v250, %v244
      %v260 = vcombine.high %v233, %v233
      %v261 = vcombine.high %v234, %v234
      %264 = vrot.lane.b32.xlu0 %v233, 42
      %v265 = vpop.permute.xlu0 %264
      %266 = vrot.lane.b32.xlu0 %v260, 42
      %v267 = vpop.permute.xlu0 %266
      %268 = vrot.lane.b32.xlu0 %v234, 42
      %v269 = vpop.permute.xlu0 %268
      %270 = vrot.lane.b32.xlu0 %v261, 42
      %v271 = vpop.permute.xlu0 %270
      %v272 = vsel %vm253, %v269, %v271
      %v273 = vsel %vm253, %v267, %v269
      %v274 = vsel %vm253, %v265, %v267
      %v275 = vsel %vm253, %v271, %v265
      %v277 = vlaneseq
      %v278 = vshrl.u32 %v277, 7
      %v279 = vsub.s32 0, %v278
      %v280 = vrot.slane %v235, %v279
      %v281 = vlaneseq
      %v282 = vshrl.u32 %v281, 7
      %v283 = vsub.s32 1, %v282
      %v284 = vrot.slane %v235, %v283
      %v285 = vlaneseq
      %v286 = vshrl.u32 %v285, 7
      %v287 = vsub.s32 2, %v286
      %v288 = vrot.slane %v235, %v287
      %v289 = vlaneseq
      %v290 = vshrl.u32 %v289, 7
      %v291 = vsub.s32 3, %v290
      %v292 = vrot.slane %v235, %v291
      %297 = vrot.lane.b32.xlu0 %v280, 42
      %v298 = vpop.permute.xlu0 %297
      %299 = vrot.lane.b32.xlu0 %v284, 42
      %v300 = vpop.permute.xlu0 %299
      %301 = vrot.lane.b32.xlu0 %v288, 42
      %v302 = vpop.permute.xlu0 %301
      %303 = vrot.lane.b32.xlu0 %v292, 42
      %v304 = vpop.permute.xlu0 %303
      %v305 = vsel %vm253, %v302, %v304
      %v306 = vsel %vm253, %v300, %v302
      %v307 = vsel %vm253, %v298, %v300
      %v308 = vsel %vm253, %v304, %v298
      %v309 = vsub.f32 %v275, %v233
      %v310 = vsub.f32 %v274, %v260
      %v311 = vsub.f32 %v273, %v234
      %v312 = vsub.f32 %v272, %v261
      %v313 = vmul.f32 %v309, %v309
      %v314 = vmul.f32 %v310, %v310
      %v315 = vmul.f32 %v311, %v311
      %v316 = vmul.f32 %v312, %v312
      %vm317 = vcmask 1042432
      %v318 = vsel %vm317, %v313, 0.0
      %v319 = vrot.slane %v318, 4
      %v320 = vadd.f32 %v318, %v319
      %v321 = vrot.slane %v320, 2
      %v322 = vadd.f32 %v320, %v321
      %v323 = vrot.slane %v322, 1
      %v324 = vadd.f32 %v322, %v323
      %v325 = vsel %vm317, %v314, 0.0
      %v326 = vrot.slane %v325, 4
      %v327 = vadd.f32 %v325, %v326
      %v328 = vrot.slane %v327, 2
      %v329 = vadd.f32 %v327, %v328
      %v330 = vrot.slane %v329, 1
      %v331 = vadd.f32 %v329, %v330
      %v332 = vsel %vm317, %v315, 0.0
      %v333 = vrot.slane %v332, 4
      %v334 = vadd.f32 %v332, %v333
      %v335 = vrot.slane %v334, 2
      %v336 = vadd.f32 %v334, %v335
      %v337 = vrot.slane %v336, 1
      %v338 = vadd.f32 %v336, %v337
      %v339 = vsel %vm317, %v316, 0.0
      %v340 = vrot.slane %v339, 4
      %v341 = vadd.f32 %v339, %v340
      %v342 = vrot.slane %v341, 2
      %v343 = vadd.f32 %v341, %v342
      %v344 = vrot.slane %v343, 1
      %v345 = vadd.f32 %v343, %v344
      %v346 = vmul.f32 %v324, -0.5
      %v347 = vmul.f32 %v331, -0.5
      %v348 = vmul.f32 %v338, -0.5
      %v349 = vmul.f32 %v345, -0.5
      %v350 = vmul.f32 %v346, 1.442695
      %v351 = vpow.pop %v350
      %v352 = vmul.f32 %v347, 1.442695
      %v353 = vpow.pop %v352
      %v354 = vmul.f32 %v348, 1.442695
      %v355 = vpow.pop %v354
      %v356 = vmul.f32 %v349, 1.442695
      %v357 = vpow.pop %v356
      %v358 = vmul.f32 %v351, 0.89483935
      %v359 = vmul.f32 %v353, 0.89483935
      %v360 = vmul.f32 %v355, 0.89483935
      %v361 = vmul.f32 %v357, 0.89483935
      %v362 = vadd.f32 %v358, 0.89483935
      %v363 = vadd.f32 %v359, 0.89483935
      %v364 = vadd.f32 %v360, 0.89483935
      %v365 = vadd.f32 %v361, 0.89483935
      %v366 = vmul.f32 %v362, %v308
      %v367 = vmul.f32 %v363, %v307
      %v368 = vmul.f32 %v364, %v306
      %v369 = vmul.f32 %v365, %v305
      %v370 = vadd.f32 %v366, 0.0
      %v371 = vadd.f32 %v367, 0.0
      %v372 = vadd.f32 %v368, 0.0
      %v373 = vadd.f32 %v369, 0.0
      %v374 = vlaneseq
      %v375 = vshrl.u32 %v374, 7
      %v376 = vsub.s32 0, %v375
      %v377 = vrot.slane %v366, %v376
      %v378 = vlaneseq
      %v379 = vshrl.u32 %v378, 7
      %v380 = vsub.s32 0, %v379
      %v381 = vrot.slane %v367, %v380
      %v382 = vlaneseq
      %v383 = vshrl.u32 %v382, 7
      %v384 = vsub.s32 0, %v383
      %v385 = vrot.slane %v368, %v384
      %v386 = vlaneseq
      %v387 = vshrl.u32 %v386, 7
      %v388 = vsub.s32 0, %v387
      %v389 = vrot.slane %v369, %v388
      %v390 = vmul.f32 %v377, %v257
      %v391 = vmul.f32 %v381, %v256
      %v392 = vmul.f32 %v385, %v255
      %v393 = vmul.f32 %v389, %v254
      %v394 = vadd.f32 %v390, 0.0
      %v395 = vadd.f32 %v391, 0.0
      %v396 = vadd.f32 %v392, 0.0
      %v397 = vadd.f32 %v393, 0.0
      %398 = vrot.lane.b32.xlu0 %v231, 41
      %v399 = vpop.permute.xlu0 %398
      %400 = vrot.lane.b32.xlu0 %v239, 41
      %v401 = vpop.permute.xlu0 %400
      %402 = vrot.lane.b32.xlu0 %v232, 41
      %v403 = vpop.permute.xlu0 %402
      %404 = vrot.lane.b32.xlu0 %v240, 41
      %v405 = vpop.permute.xlu0 %404
      %vm406 = vcmp.lt.s32.totalorder %v252, 41
      %v407 = vsel %vm406, %v403, %v405
      %v408 = vsel %vm406, %v401, %v403
      %v409 = vsel %vm406, %v399, %v401
      %v410 = vsel %vm406, %v405, %v399
      %411 = vrot.lane.b32.xlu0 %v233, 41
      %v412 = vpop.permute.xlu0 %411
      %413 = vrot.lane.b32.xlu0 %v260, 41
      %v414 = vpop.permute.xlu0 %413
      %415 = vrot.lane.b32.xlu0 %v234, 41
      %v416 = vpop.permute.xlu0 %415
      %417 = vrot.lane.b32.xlu0 %v261, 41
      %v418 = vpop.permute.xlu0 %417
      %v419 = vsel %vm406, %v416, %v418
      %v420 = vsel %vm406, %v414, %v416
      %v421 = vsel %vm406, %v412, %v414
      %v422 = vsel %vm406, %v418, %v412
      %423 = vrot.lane.b32.xlu0 %v280, 41
      %v424 = vpop.permute.xlu0 %423
      %425 = vrot.lane.b32.xlu0 %v284, 41
      %v426 = vpop.permute.xlu0 %425
      %427 = vrot.lane.b32.xlu0 %v288, 41
      %v428 = vpop.permute.xlu0 %427
      %429 = vrot.lane.b32.xlu0 %v292, 41
      %v430 = vpop.permute.xlu0 %429
      %v431 = vsel %vm406, %v428, %v430
      %v432 = vsel %vm406, %v426, %v428
      %v433 = vsel %vm406, %v424, %v426
      %v434 = vsel %vm406, %v430, %v424
      %v435 = vsub.f32 %v422, %v233
      %v436 = vsub.f32 %v421, %v260
      %v437 = vsub.f32 %v420, %v234
      %v438 = vsub.f32 %v419, %v261
      %v439 = vmul.f32 %v435, %v435
      %v440 = vmul.f32 %v436, %v436
      %v441 = vmul.f32 %v437, %v437
      %v442 = vmul.f32 %v438, %v438
      %v443 = vsel %vm317, %v439, 0.0
      %v444 = vrot.slane %v443, 4
      %v445 = vadd.f32 %v443, %v444
      %v446 = vrot.slane %v445, 2
      %v447 = vadd.f32 %v445, %v446
      %v448 = vrot.slane %v447, 1
      %v449 = vadd.f32 %v447, %v448
      %v450 = vsel %vm317, %v440, 0.0
      %v451 = vrot.slane %v450, 4
      %v452 = vadd.f32 %v450, %v451
      %v453 = vrot.slane %v452, 2
      %v454 = vadd.f32 %v452, %v453
      %v455 = vrot.slane %v454, 1
      %v456 = vadd.f32 %v454, %v455
      %v457 = vsel %vm317, %v441, 0.0
      %v458 = vrot.slane %v457, 4
      %v459 = vadd.f32 %v457, %v458
      %v460 = vrot.slane %v459, 2
      %v461 = vadd.f32 %v459, %v460
      %v462 = vrot.slane %v461, 1
      %v463 = vadd.f32 %v461, %v462
      %v464 = vsel %vm317, %v442, 0.0
      %v465 = vrot.slane %v464, 4
      %v466 = vadd.f32 %v464, %v465
      %v467 = vrot.slane %v466, 2
      %v468 = vadd.f32 %v466, %v467
      %v469 = vrot.slane %v468, 1
      %v470 = vadd.f32 %v468, %v469
      %v471 = vmul.f32 %v449, -0.5
      %v472 = vmul.f32 %v456, -0.5
      %v473 = vmul.f32 %v463, -0.5
      %v474 = vmul.f32 %v470, -0.5
      %v475 = vmul.f32 %v471, 1.442695
      %v476 = vpow.pop %v475
      %v477 = vmul.f32 %v472, 1.442695
      %v478 = vpow.pop %v477
      %v479 = vmul.f32 %v473, 1.442695
      %v480 = vpow.pop %v479
      %v481 = vmul.f32 %v474, 1.442695
      %v482 = vpow.pop %v481
      %v483 = vmul.f32 %v476, 0.93291193
      %v484 = vmul.f32 %v478, 0.93291193
      %v485 = vmul.f32 %v480, 0.93291193
      %v486 = vmul.f32 %v482, 0.93291193
      %v487 = vadd.f32 %v483, 0.93291193
      %v488 = vadd.f32 %v484, 0.93291193
      %v489 = vadd.f32 %v485, 0.93291193
      %v490 = vadd.f32 %v486, 0.93291193
      %v491 = vmul.f32 %v487, %v434
      %v492 = vmul.f32 %v488, %v433
      %v493 = vmul.f32 %v489, %v432
      %v494 = vmul.f32 %v490, %v431
      %v495 = vadd.f32 %v370, %v491
      %v496 = vadd.f32 %v371, %v492
      %v497 = vadd.f32 %v372, %v493
      %v498 = vadd.f32 %v373, %v494
      %v499 = vlaneseq
      %v500 = vshrl.u32 %v499, 7
      %v501 = vsub.s32 0, %v500
      %v502 = vrot.slane %v491, %v501
      %v503 = vlaneseq
      %v504 = vshrl.u32 %v503, 7
      %v505 = vsub.s32 0, %v504
      %v506 = vrot.slane %v492, %v505
      %v507 = vlaneseq
      %v508 = vshrl.u32 %v507, 7
      %v509 = vsub.s32 0, %v508
      %v510 = vrot.slane %v493, %v509
      %v511 = vlaneseq
      %v512 = vshrl.u32 %v511, 7
      %v513 = vsub.s32 0, %v512
      %v514 = vrot.slane %v494, %v513
      %v515 = vmul.f32 %v502, %v410
      %v516 = vmul.f32 %v506, %v409
      %v517 = vmul.f32 %v510, %v408
      %v518 = vmul.f32 %v514, %v407
      %v519 = vadd.f32 %v394, %v515
      %v520 = vadd.f32 %v395, %v516
      %v521 = vadd.f32 %v396, %v517
      %v522 = vadd.f32 %v397, %v518
      %523 = vrot.lane.b32.xlu0 %v231, 40
      %v524 = vpop.permute.xlu0 %523
      %525 = vrot.lane.b32.xlu0 %v239, 40
      %v526 = vpop.permute.xlu0 %525
      %527 = vrot.lane.b32.xlu0 %v232, 40
      %v528 = vpop.permute.xlu0 %527
      %529 = vrot.lane.b32.xlu0 %v240, 40
      %v530 = vpop.permute.xlu0 %529
      %vm531 = vcmp.lt.s32.totalorder %v252, 40
      %v532 = vsel %vm531, %v528, %v530
      %v533 = vsel %vm531, %v526, %v528
      %v534 = vsel %vm531, %v524, %v526
      %v535 = vsel %vm531, %v530, %v524
      %536 = vrot.lane.b32.xlu0 %v233, 40
      %v537 = vpop.permute.xlu0 %536
      %538 = vrot.lane.b32.xlu0 %v260, 40
      %v539 = vpop.permute.xlu0 %538
      %540 = vrot.lane.b32.xlu0 %v234, 40
      %v541 = vpop.permute.xlu0 %540
      %542 = vrot.lane.b32.xlu0 %v261, 40
      %v543 = vpop.permute.xlu0 %542
      %v544 = vsel %vm531, %v541, %v543
      %v545 = vsel %vm531, %v539, %v541
      %v546 = vsel %vm531, %v537, %v539
      %v547 = vsel %vm531, %v543, %v537
      %548 = vrot.lane.b32.xlu0 %v280, 40
      %v549 = vpop.permute.xlu0 %548
      %550 = vrot.lane.b32.xlu0 %v284, 40
      %v551 = vpop.permute.xlu0 %550
      %552 = vrot.lane.b32.xlu0 %v288, 40
      %v553 = vpop.permute.xlu0 %552
      %554 = vrot.lane.b32.xlu0 %v292, 40
      %v555 = vpop.permute.xlu0 %554
      %v556 = vsel %vm531, %v553, %v555
      %v557 = vsel %vm531, %v551, %v553
      %v558 = vsel %vm531, %v549, %v551
      %v559 = vsel %vm531, %v555, %v549
      %v560 = vsub.f32 %v547, %v233
      %v561 = vsub.f32 %v546, %v260
      %v562 = vsub.f32 %v545, %v234
      %v563 = vsub.f32 %v544, %v261
      %v564 = vmul.f32 %v560, %v560
      %v565 = vmul.f32 %v561, %v561
      %v566 = vmul.f32 %v562, %v562
      %v567 = vmul.f32 %v563, %v563
      %v568 = vsel %vm317, %v564, 0.0
      %v569 = vrot.slane %v568, 4
      %v570 = vadd.f32 %v568, %v569
      %v571 = vrot.slane %v570, 2
      %v572 = vadd.f32 %v570, %v571
      %v573 = vrot.slane %v572, 1
      %v574 = vadd.f32 %v572, %v573
      %v575 = vsel %vm317, %v565, 0.0
      %v576 = vrot.slane %v575, 4
      %v577 = vadd.f32 %v575, %v576
      %v578 = vrot.slane %v577, 2
      %v579 = vadd.f32 %v577, %v578
      %v580 = vrot.slane %v579, 1
      %v581 = vadd.f32 %v579, %v580
      %v582 = vsel %vm317, %v566, 0.0
      %v583 = vrot.slane %v582, 4
      %v584 = vadd.f32 %v582, %v583
      %v585 = vrot.slane %v584, 2
      %v586 = vadd.f32 %v584, %v585
      %v587 = vrot.slane %v586, 1
      %v588 = vadd.f32 %v586, %v587
      %v589 = vsel %vm317, %v567, 0.0
      %v590 = vrot.slane %v589, 4
      %v591 = vadd.f32 %v589, %v590
      %v592 = vrot.slane %v591, 2
      %v593 = vadd.f32 %v591, %v592
      %v594 = vrot.slane %v593, 1
      %v595 = vadd.f32 %v593, %v594
      %v596 = vmul.f32 %v574, -0.5
      %v597 = vmul.f32 %v581, -0.5
      %v598 = vmul.f32 %v588, -0.5
      %v599 = vmul.f32 %v595, -0.5
      %v600 = vmul.f32 %v596, 1.442695
      %v601 = vpow.pop %v600
      %v602 = vmul.f32 %v597, 1.442695
      %v603 = vpow.pop %v602
      %v604 = vmul.f32 %v598, 1.442695
      %v605 = vpow.pop %v604
      %v606 = vmul.f32 %v599, 1.442695
      %v607 = vpow.pop %v606
      %v608 = vmul.f32 %v601, 0.94595945
      %v609 = vmul.f32 %v603, 0.94595945
      %v610 = vmul.f32 %v605, 0.94595945
      %v611 = vmul.f32 %v607, 0.94595945
      %v612 = vadd.f32 %v608, 0.94595945
      %v613 = vadd.f32 %v609, 0.94595945
      %v614 = vadd.f32 %v610, 0.94595945
      %v615 = vadd.f32 %v611, 0.94595945
      %v616 = vmul.f32 %v612, %v559
      %v617 = vmul.f32 %v613, %v558
      %v618 = vmul.f32 %v614, %v557
      %v619 = vmul.f32 %v615, %v556
      %v620 = vadd.f32 %v495, %v616
      %v621 = vadd.f32 %v496, %v617
      %v622 = vadd.f32 %v497, %v618
      %v623 = vadd.f32 %v498, %v619
      %v624 = vlaneseq
      %v625 = vshrl.u32 %v624, 7
      %v626 = vsub.s32 0, %v625
      %v627 = vrot.slane %v616, %v626
      %v628 = vlaneseq
      %v629 = vshrl.u32 %v628, 7
      %v630 = vsub.s32 0, %v629
      %v631 = vrot.slane %v617, %v630
      %v632 = vlaneseq
      %v633 = vshrl.u32 %v632, 7
      %v634 = vsub.s32 0, %v633
      %v635 = vrot.slane %v618, %v634
      %v636 = vlaneseq
      %v637 = vshrl.u32 %v636, 7
      %v638 = vsub.s32 0, %v637
      %v639 = vrot.slane %v619, %v638
      %v640 = vmul.f32 %v627, %v535
      %v641 = vmul.f32 %v631, %v534
      %v642 = vmul.f32 %v635, %v533
      %v643 = vmul.f32 %v639, %v532
      %v644 = vadd.f32 %v519, %v640
      %v645 = vadd.f32 %v520, %v641
      %v646 = vadd.f32 %v521, %v642
      %v647 = vadd.f32 %v522, %v643
      %648 = vrot.lane.b32.xlu0 %v231, 39
      %v649 = vpop.permute.xlu0 %648
      %650 = vrot.lane.b32.xlu0 %v239, 39
      %v651 = vpop.permute.xlu0 %650
      %652 = vrot.lane.b32.xlu0 %v232, 39
      %v653 = vpop.permute.xlu0 %652
      %654 = vrot.lane.b32.xlu0 %v240, 39
      %v655 = vpop.permute.xlu0 %654
      %vm656 = vcmp.lt.s32.totalorder %v252, 39
      %v657 = vsel %vm656, %v653, %v655
      %v658 = vsel %vm656, %v651, %v653
      %v659 = vsel %vm656, %v649, %v651
      %v660 = vsel %vm656, %v655, %v649
      %661 = vrot.lane.b32.xlu0 %v233, 39
      %v662 = vpop.permute.xlu0 %661
      %663 = vrot.lane.b32.xlu0 %v260, 39
      %v664 = vpop.permute.xlu0 %663
      %665 = vrot.lane.b32.xlu0 %v234, 39
      %v666 = vpop.permute.xlu0 %665
      %667 = vrot.lane.b32.xlu0 %v261, 39
      %v668 = vpop.permute.xlu0 %667
      %v669 = vsel %vm656, %v666, %v668
      %v670 = vsel %vm656, %v664, %v666
      %v671 = vsel %vm656, %v662, %v664
      %v672 = vsel %vm656, %v668, %v662
      %673 = vrot.lane.b32.xlu0 %v280, 39
      %v674 = vpop.permute.xlu0 %673
      %675 = vrot.lane.b32.xlu0 %v284, 39
      %v676 = vpop.permute.xlu0 %675
      %677 = vrot.lane.b32.xlu0 %v288, 39
      %v678 = vpop.permute.xlu0 %677
      %679 = vrot.lane.b32.xlu0 %v292, 39
      %v680 = vpop.permute.xlu0 %679
      %v681 = vsel %vm656, %v678, %v680
      %v682 = vsel %vm656, %v676, %v678
      %v683 = vsel %vm656, %v674, %v676
      %v684 = vsel %vm656, %v680, %v674
      %v685 = vsub.f32 %v672, %v233
      %v686 = vsub.f32 %v671, %v260
      %v687 = vsub.f32 %v670, %v234
      %v688 = vsub.f32 %v669, %v261
      %v689 = vmul.f32 %v685, %v685
      %v690 = vmul.f32 %v686, %v686
      %v691 = vmul.f32 %v687, %v687
      %v692 = vmul.f32 %v688, %v688
      %v693 = vsel %vm317, %v689, 0.0
      %v694 = vrot.slane %v693, 4
      %v695 = vadd.f32 %v693, %v694
      %v696 = vrot.slane %v695, 2
      %v697 = vadd.f32 %v695, %v696
      %v698 = vrot.slane %v697, 1
      %v699 = vadd.f32 %v697, %v698
      %v700 = vsel %vm317, %v690, 0.0
      %v701 = vrot.slane %v700, 4
      %v702 = vadd.f32 %v700, %v701
      %v703 = vrot.slane %v702, 2
      %v704 = vadd.f32 %v702, %v703
      %v705 = vrot.slane %v704, 1
      %v706 = vadd.f32 %v704, %v705
      %v707 = vsel %vm317, %v691, 0.0
      %v708 = vrot.slane %v707, 4
      %v709 = vadd.f32 %v707, %v708
      %v710 = vrot.slane %v709, 2
      %v711 = vadd.f32 %v709, %v710
      %v712 = vrot.slane %v711, 1
      %v713 = vadd.f32 %v711, %v712
      %v714 = vsel %vm317, %v692, 0.0
      %v715 = vrot.slane %v714, 4
      %v716 = vadd.f32 %v714, %v715
      %v717 = vrot.slane %v716, 2
      %v718 = vadd.f32 %v716, %v717
      %v719 = vrot.slane %v718, 1
      %v720 = vadd.f32 %v718, %v719
      %v721 = vmul.f32 %v699, -0.5
      %v722 = vmul.f32 %v706, -0.5
      %v723 = vmul.f32 %v713, -0.5
      %v724 = vmul.f32 %v720, -0.5
      %v725 = vmul.f32 %v721, 1.442695
      %v726 = vpow.pop %v725
      %v727 = vmul.f32 %v722, 1.442695
      %v728 = vpow.pop %v727
      %v729 = vmul.f32 %v723, 1.442695
      %v730 = vpow.pop %v729
      %v731 = vmul.f32 %v724, 1.442695
      %v732 = vpow.pop %v731
      %v733 = vmul.f32 %v726, 0.93291193
      %v734 = vmul.f32 %v728, 0.93291193
      %v735 = vmul.f32 %v730, 0.93291193
      %v736 = vmul.f32 %v732, 0.93291193
      %v737 = vadd.f32 %v733, 0.93291193
      %v738 = vadd.f32 %v734, 0.93291193
      %v739 = vadd.f32 %v735, 0.93291193
      %v740 = vadd.f32 %v736, 0.93291193
      %v741 = vmul.f32 %v737, %v684
      %v742 = vmul.f32 %v738, %v683
      %v743 = vmul.f32 %v739, %v682
      %v744 = vmul.f32 %v740, %v681
      %v745 = vadd.f32 %v620, %v741
      %v746 = vadd.f32 %v621, %v742
      %v747 = vadd.f32 %v622, %v743
      %v748 = vadd.f32 %v623, %v744
      %v749 = vlaneseq
      %v750 = vshrl.u32 %v749, 7
      %v751 = vsub.s32 0, %v750
      %v752 = vrot.slane %v741, %v751
      %v753 = vlaneseq
      %v754 = vshrl.u32 %v753, 7
      %v755 = vsub.s32 0, %v754
      %v756 = vrot.slane %v742, %v755
      %v757 = vlaneseq
      %v758 = vshrl.u32 %v757, 7
      %v759 = vsub.s32 0, %v758
      %v760 = vrot.slane %v743, %v759
      %v761 = vlaneseq
      %v762 = vshrl.u32 %v761, 7
      %v763 = vsub.s32 0, %v762
      %v764 = vrot.slane %v744, %v763
      %v765 = vmul.f32 %v752, %v660
      %v766 = vmul.f32 %v756, %v659
      %v767 = vmul.f32 %v760, %v658
      %v768 = vmul.f32 %v764, %v657
      %v769 = vadd.f32 %v644, %v765
      %v770 = vadd.f32 %v645, %v766
      %v771 = vadd.f32 %v646, %v767
      %v772 = vadd.f32 %v647, %v768
      %773 = vrot.lane.b32.xlu0 %v231, 38
      %v774 = vpop.permute.xlu0 %773
      %775 = vrot.lane.b32.xlu0 %v239, 38
      %v776 = vpop.permute.xlu0 %775
      %777 = vrot.lane.b32.xlu0 %v232, 38
      %v778 = vpop.permute.xlu0 %777
      %779 = vrot.lane.b32.xlu0 %v240, 38
      %v780 = vpop.permute.xlu0 %779
      %vm781 = vcmp.lt.s32.totalorder %v252, 38
      %v782 = vsel %vm781, %v778, %v780
      %v783 = vsel %vm781, %v776, %v778
      %v784 = vsel %vm781, %v774, %v776
      %v785 = vsel %vm781, %v780, %v774
      %786 = vrot.lane.b32.xlu0 %v233, 38
      %v787 = vpop.permute.xlu0 %786
      %788 = vrot.lane.b32.xlu0 %v260, 38
      %v789 = vpop.permute.xlu0 %788
      %790 = vrot.lane.b32.xlu0 %v234, 38
      %v791 = vpop.permute.xlu0 %790
      %792 = vrot.lane.b32.xlu0 %v261, 38
      %v793 = vpop.permute.xlu0 %792
      %v794 = vsel %vm781, %v791, %v793
      %v795 = vsel %vm781, %v789, %v791
      %v796 = vsel %vm781, %v787, %v789
      %v797 = vsel %vm781, %v793, %v787
      %798 = vrot.lane.b32.xlu0 %v280, 38
      %v799 = vpop.permute.xlu0 %798
      %800 = vrot.lane.b32.xlu0 %v284, 38
      %v801 = vpop.permute.xlu0 %800
      %802 = vrot.lane.b32.xlu0 %v288, 38
      %v803 = vpop.permute.xlu0 %802
      %804 = vrot.lane.b32.xlu0 %v292, 38
      %v805 = vpop.permute.xlu0 %804
      %v806 = vsel %vm781, %v803, %v805
      %v807 = vsel %vm781, %v801, %v803
      %v808 = vsel %vm781, %v799, %v801
      %v809 = vsel %vm781, %v805, %v799
      %v810 = vsub.f32 %v797, %v233
      %v811 = vsub.f32 %v796, %v260
      %v812 = vsub.f32 %v795, %v234
      %v813 = vsub.f32 %v794, %v261
      %v814 = vmul.f32 %v810, %v810
      %v815 = vmul.f32 %v811, %v811
      %v816 = vmul.f32 %v812, %v812
      %v817 = vmul.f32 %v813, %v813
      %v818 = vsel %vm317, %v814, 0.0
      %v819 = vrot.slane %v818, 4
      %v820 = vadd.f32 %v818, %v819
      %v821 = vrot.slane %v820, 2
      %v822 = vadd.f32 %v820, %v821
      %v823 = vrot.slane %v822, 1
      %v824 = vadd.f32 %v822, %v823
      %v825 = vsel %vm317, %v815, 0.0
      %v826 = vrot.slane %v825, 4
      %v827 = vadd.f32 %v825, %v826
      %v828 = vrot.slane %v827, 2
      %v829 = vadd.f32 %v827, %v828
      %v830 = vrot.slane %v829, 1
      %v831 = vadd.f32 %v829, %v830
      %v832 = vsel %vm317, %v816, 0.0
      %v833 = vrot.slane %v832, 4
      %v834 = vadd.f32 %v832, %v833
      %v835 = vrot.slane %v834, 2
      %v836 = vadd.f32 %v834, %v835
      %v837 = vrot.slane %v836, 1
      %v838 = vadd.f32 %v836, %v837
      %v839 = vsel %vm317, %v817, 0.0
      %v840 = vrot.slane %v839, 4
      %v841 = vadd.f32 %v839, %v840
      %v842 = vrot.slane %v841, 2
      %v843 = vadd.f32 %v841, %v842
      %v844 = vrot.slane %v843, 1
      %v845 = vadd.f32 %v843, %v844
      %v846 = vmul.f32 %v824, -0.5
      %v847 = vmul.f32 %v831, -0.5
      %v848 = vmul.f32 %v838, -0.5
      %v849 = vmul.f32 %v845, -0.5
      %v850 = vmul.f32 %v846, 1.442695
      %v851 = vpow.pop %v850
      %v852 = vmul.f32 %v847, 1.442695
      %v853 = vpow.pop %v852
      %v854 = vmul.f32 %v848, 1.442695
      %v855 = vpow.pop %v854
      %v856 = vmul.f32 %v849, 1.442695
      %v857 = vpow.pop %v856
      %v858 = vmul.f32 %v851, 0.89483935
      %v859 = vmul.f32 %v853, 0.89483935
      %v860 = vmul.f32 %v855, 0.89483935
      %v861 = vmul.f32 %v857, 0.89483935
      %v862 = vadd.f32 %v858, 0.89483935
      %v863 = vadd.f32 %v859, 0.89483935
      %v864 = vadd.f32 %v860, 0.89483935
      %v865 = vadd.f32 %v861, 0.89483935
      %v866 = vmul.f32 %v862, %v809
      %v867 = vmul.f32 %v863, %v808
      %v868 = vmul.f32 %v864, %v807
      %v869 = vmul.f32 %v865, %v806
      %v870 = vadd.f32 %v745, %v866
      %v871 = vadd.f32 %v746, %v867
      %v872 = vadd.f32 %v747, %v868
      %v873 = vadd.f32 %v748, %v869
      %v874 = vlaneseq
      %v875 = vshrl.u32 %v874, 7
      %v876 = vsub.s32 0, %v875
      %v877 = vrot.slane %v866, %v876
      %v878 = vlaneseq
      %v879 = vshrl.u32 %v878, 7
      %v880 = vsub.s32 0, %v879
      %v881 = vrot.slane %v867, %v880
      %v882 = vlaneseq
      %v883 = vshrl.u32 %v882, 7
      %v884 = vsub.s32 0, %v883
      %v885 = vrot.slane %v868, %v884
      %v886 = vlaneseq
      %v887 = vshrl.u32 %v886, 7
      %v888 = vsub.s32 0, %v887
      %v889 = vrot.slane %v869, %v888
      %v890 = vmul.f32 %v877, %v785
      %v891 = vmul.f32 %v881, %v784
      %v892 = vmul.f32 %v885, %v783
      %v893 = vmul.f32 %v889, %v782
      %v894 = vadd.f32 %v769, %v890
      %v895 = vadd.f32 %v770, %v891
      %v896 = vadd.f32 %v771, %v892
      %v897 = vadd.f32 %v772, %v893
      %898 = vrot.lane.b32.xlu0 %v231, 22
      %v899 = vpop.permute.xlu0 %898
      %900 = vrot.lane.b32.xlu0 %v239, 22
      %v901 = vpop.permute.xlu0 %900
      %902 = vrot.lane.b32.xlu0 %v232, 22
      %v903 = vpop.permute.xlu0 %902
      %904 = vrot.lane.b32.xlu0 %v240, 22
      %v905 = vpop.permute.xlu0 %904
      %vm906 = vcmp.lt.s32.totalorder %v252, 22
      %v907 = vsel %vm906, %v903, %v905
      %v908 = vsel %vm906, %v901, %v903
      %v909 = vsel %vm906, %v899, %v901
      %v910 = vsel %vm906, %v905, %v899
      %911 = vrot.lane.b32.xlu0 %v233, 22
      %v912 = vpop.permute.xlu0 %911
      %913 = vrot.lane.b32.xlu0 %v260, 22
      %v914 = vpop.permute.xlu0 %913
      %915 = vrot.lane.b32.xlu0 %v234, 22
      %v916 = vpop.permute.xlu0 %915
      %917 = vrot.lane.b32.xlu0 %v261, 22
      %v918 = vpop.permute.xlu0 %917
      %v919 = vsel %vm906, %v916, %v918
      %v920 = vsel %vm906, %v914, %v916
      %v921 = vsel %vm906, %v912, %v914
      %v922 = vsel %vm906, %v918, %v912
      %923 = vrot.lane.b32.xlu0 %v280, 22
      %v924 = vpop.permute.xlu0 %923
      %925 = vrot.lane.b32.xlu0 %v284, 22
      %v926 = vpop.permute.xlu0 %925
      %927 = vrot.lane.b32.xlu0 %v288, 22
      %v928 = vpop.permute.xlu0 %927
      %929 = vrot.lane.b32.xlu0 %v292, 22
      %v930 = vpop.permute.xlu0 %929
      %v931 = vsel %vm906, %v928, %v930
      %v932 = vsel %vm906, %v926, %v928
      %v933 = vsel %vm906, %v924, %v926
      %v934 = vsel %vm906, %v930, %v924
      %v935 = vsub.f32 %v922, %v233
      %v936 = vsub.f32 %v921, %v260
      %v937 = vsub.f32 %v920, %v234
      %v938 = vsub.f32 %v919, %v261
      %v939 = vmul.f32 %v935, %v935
      %v940 = vmul.f32 %v936, %v936
      %v941 = vmul.f32 %v937, %v937
      %v942 = vmul.f32 %v938, %v938
      %v943 = vsel %vm317, %v939, 0.0
      %v944 = vrot.slane %v943, 4
      %v945 = vadd.f32 %v943, %v944
      %v946 = vrot.slane %v945, 2
      %v947 = vadd.f32 %v945, %v946
      %v948 = vrot.slane %v947, 1
      %v949 = vadd.f32 %v947, %v948
      %v950 = vsel %vm317, %v940, 0.0
      %v951 = vrot.slane %v950, 4
      %v952 = vadd.f32 %v950, %v951
      %v953 = vrot.slane %v952, 2
      %v954 = vadd.f32 %v952, %v953
      %v955 = vrot.slane %v954, 1
      %v956 = vadd.f32 %v954, %v955
      %v957 = vsel %vm317, %v941, 0.0
      %v958 = vrot.slane %v957, 4
      %v959 = vadd.f32 %v957, %v958
      %v960 = vrot.slane %v959, 2
      %v961 = vadd.f32 %v959, %v960
      %v962 = vrot.slane %v961, 1
      %v963 = vadd.f32 %v961, %v962
      %v964 = vsel %vm317, %v942, 0.0
      %v965 = vrot.slane %v964, 4
      %v966 = vadd.f32 %v964, %v965
      %v967 = vrot.slane %v966, 2
      %v968 = vadd.f32 %v966, %v967
      %v969 = vrot.slane %v968, 1
      %v970 = vadd.f32 %v968, %v969
      %v971 = vmul.f32 %v949, -0.5
      %v972 = vmul.f32 %v956, -0.5
      %v973 = vmul.f32 %v963, -0.5
      %v974 = vmul.f32 %v970, -0.5
      %v975 = vmul.f32 %v971, 1.442695
      %v976 = vpow.pop %v975
      %v977 = vmul.f32 %v972, 1.442695
      %v978 = vpow.pop %v977
      %v979 = vmul.f32 %v973, 1.442695
      %v980 = vpow.pop %v979
      %v981 = vmul.f32 %v974, 1.442695
      %v982 = vpow.pop %v981
      %v983 = vmul.f32 %v976, 0.93291193
      %v984 = vmul.f32 %v978, 0.93291193
      %v985 = vmul.f32 %v980, 0.93291193
      %v986 = vmul.f32 %v982, 0.93291193
      %v987 = vadd.f32 %v983, 0.93291193
      %v988 = vadd.f32 %v984, 0.93291193
      %v989 = vadd.f32 %v985, 0.93291193
      %v990 = vadd.f32 %v986, 0.93291193
      %v991 = vmul.f32 %v987, %v934
      %v992 = vmul.f32 %v988, %v933
      %v993 = vmul.f32 %v989, %v932
      %v994 = vmul.f32 %v990, %v931
      %v995 = vadd.f32 %v870, %v991
      %v996 = vadd.f32 %v871, %v992
      %v997 = vadd.f32 %v872, %v993
      %v998 = vadd.f32 %v873, %v994
      %v999 = vlaneseq
      %v1000 = vshrl.u32 %v999, 7
      %v1001 = vsub.s32 0, %v1000
      %v1002 = vrot.slane %v991, %v1001
      %v1003 = vlaneseq
      %v1004 = vshrl.u32 %v1003, 7
      %v1005 = vsub.s32 0, %v1004
      %v1006 = vrot.slane %v992, %v1005
      %v1007 = vlaneseq
      %v1008 = vshrl.u32 %v1007, 7
      %v1009 = vsub.s32 0, %v1008
      %v1010 = vrot.slane %v993, %v1009
      %v1011 = vlaneseq
      %v1012 = vshrl.u32 %v1011, 7
      %v1013 = vsub.s32 0, %v1012
      %v1014 = vrot.slane %v994, %v1013
      %v1015 = vmul.f32 %v1002, %v910
      %v1016 = vmul.f32 %v1006, %v909
      %v1017 = vmul.f32 %v1010, %v908
      %v1018 = vmul.f32 %v1014, %v907
      %v1019 = vadd.f32 %v894, %v1015
      %v1020 = vadd.f32 %v895, %v1016
      %v1021 = vadd.f32 %v896, %v1017
      %v1022 = vadd.f32 %v897, %v1018
      %1023 = vrot.lane.b32.xlu0 %v231, 21
      %v1024 = vpop.permute.xlu0 %1023
      %1025 = vrot.lane.b32.xlu0 %v239, 21
      %v1026 = vpop.permute.xlu0 %1025
      %1027 = vrot.lane.b32.xlu0 %v232, 21
      %v1028 = vpop.permute.xlu0 %1027
      %1029 = vrot.lane.b32.xlu0 %v240, 21
      %v1030 = vpop.permute.xlu0 %1029
      %vm1031 = vcmp.lt.s32.totalorder %v252, 21
      %v1032 = vsel %vm1031, %v1028, %v1030
      %v1033 = vsel %vm1031, %v1026, %v1028
      %v1034 = vsel %vm1031, %v1024, %v1026
      %v1035 = vsel %vm1031, %v1030, %v1024
      %1036 = vrot.lane.b32.xlu0 %v233, 21
      %v1037 = vpop.permute.xlu0 %1036
      %1038 = vrot.lane.b32.xlu0 %v260, 21
      %v1039 = vpop.permute.xlu0 %1038
      %1040 = vrot.lane.b32.xlu0 %v234, 21
      %v1041 = vpop.permute.xlu0 %1040
      %1042 = vrot.lane.b32.xlu0 %v261, 21
      %v1043 = vpop.permute.xlu0 %1042
      %v1044 = vsel %vm1031, %v1041, %v1043
      %v1045 = vsel %vm1031, %v1039, %v1041
      %v1046 = vsel %vm1031, %v1037, %v1039
      %v1047 = vsel %vm1031, %v1043, %v1037
      %1048 = vrot.lane.b32.xlu0 %v280, 21
      %v1049 = vpop.permute.xlu0 %1048
      %1050 = vrot.lane.b32.xlu0 %v284, 21
      %v1051 = vpop.permute.xlu0 %1050
      %1052 = vrot.lane.b32.xlu0 %v288, 21
      %v1053 = vpop.permute.xlu0 %1052
      %1054 = vrot.lane.b32.xlu0 %v292, 21
      %v1055 = vpop.permute.xlu0 %1054
      %v1056 = vsel %vm1031, %v1053, %v1055
      %v1057 = vsel %vm1031, %v1051, %v1053
      %v1058 = vsel %vm1031, %v1049, %v1051
      %v1059 = vsel %vm1031, %v1055, %v1049
      %v1060 = vsub.f32 %v1047, %v233
      %v1061 = vsub.f32 %v1046, %v260
      %v1062 = vsub.f32 %v1045, %v234
      %v1063 = vsub.f32 %v1044, %v261
      %v1064 = vmul.f32 %v1060, %v1060
      %v1065 = vmul.f32 %v1061, %v1061
      %v1066 = vmul.f32 %v1062, %v1062
      %v1067 = vmul.f32 %v1063, %v1063
      %v1068 = vsel %vm317, %v1064, 0.0
      %v1069 = vrot.slane %v1068, 4
      %v1070 = vadd.f32 %v1068, %v1069
      %v1071 = vrot.slane %v1070, 2
      %v1072 = vadd.f32 %v1070, %v1071
      %v1073 = vrot.slane %v1072, 1
      %v1074 = vadd.f32 %v1072, %v1073
      %v1075 = vsel %vm317, %v1065, 0.0
      %v1076 = vrot.slane %v1075, 4
      %v1077 = vadd.f32 %v1075, %v1076
      %v1078 = vrot.slane %v1077, 2
      %v1079 = vadd.f32 %v1077, %v1078
      %v1080 = vrot.slane %v1079, 1
      %v1081 = vadd.f32 %v1079, %v1080
      %v1082 = vsel %vm317, %v1066, 0.0
      %v1083 = vrot.slane %v1082, 4
      %v1084 = vadd.f32 %v1082, %v1083
      %v1085 = vrot.slane %v1084, 2
      %v1086 = vadd.f32 %v1084, %v1085
      %v1087 = vrot.slane %v1086, 1
      %v1088 = vadd.f32 %v1086, %v1087
      %v1089 = vsel %vm317, %v1067, 0.0
      %v1090 = vrot.slane %v1089, 4
      %v1091 = vadd.f32 %v1089, %v1090
      %v1092 = vrot.slane %v1091, 2
      %v1093 = vadd.f32 %v1091, %v1092
      %v1094 = vrot.slane %v1093, 1
      %v1095 = vadd.f32 %v1093, %v1094
      %v1096 = vmul.f32 %v1074, -0.5
      %v1097 = vmul.f32 %v1081, -0.5
      %v1098 = vmul.f32 %v1088, -0.5
      %v1099 = vmul.f32 %v1095, -0.5
      %v1100 = vmul.f32 %v1096, 1.442695
      %v1101 = vpow.pop %v1100
      %v1102 = vmul.f32 %v1097, 1.442695
      %v1103 = vpow.pop %v1102
      %v1104 = vmul.f32 %v1098, 1.442695
      %v1105 = vpow.pop %v1104
      %v1106 = vmul.f32 %v1099, 1.442695
      %v1107 = vpow.pop %v1106
      %v1108 = vmul.f32 %v1101, 0.97260445
      %v1109 = vmul.f32 %v1103, 0.97260445
      %v1110 = vmul.f32 %v1105, 0.97260445
      %v1111 = vmul.f32 %v1107, 0.97260445
      %v1112 = vadd.f32 %v1108, 0.97260445
      %v1113 = vadd.f32 %v1109, 0.97260445
      %v1114 = vadd.f32 %v1110, 0.97260445
      %v1115 = vadd.f32 %v1111, 0.97260445
      %v1116 = vmul.f32 %v1112, %v1059
      %v1117 = vmul.f32 %v1113, %v1058
      %v1118 = vmul.f32 %v1114, %v1057
      %v1119 = vmul.f32 %v1115, %v1056
      %v1120 = vadd.f32 %v995, %v1116
      %v1121 = vadd.f32 %v996, %v1117
      %v1122 = vadd.f32 %v997, %v1118
      %v1123 = vadd.f32 %v998, %v1119
      %v1124 = vlaneseq
      %v1125 = vshrl.u32 %v1124, 7
      %v1126 = vsub.s32 0, %v1125
      %v1127 = vrot.slane %v1116, %v1126
      %v1128 = vlaneseq
      %v1129 = vshrl.u32 %v1128, 7
      %v1130 = vsub.s32 0, %v1129
      %v1131 = vrot.slane %v1117, %v1130
      %v1132 = vlaneseq
      %v1133 = vshrl.u32 %v1132, 7
      %v1134 = vsub.s32 0, %v1133
      %v1135 = vrot.slane %v1118, %v1134
      %v1136 = vlaneseq
      %v1137 = vshrl.u32 %v1136, 7
      %v1138 = vsub.s32 0, %v1137
      %v1139 = vrot.slane %v1119, %v1138
      %v1140 = vmul.f32 %v1127, %v1035
      %v1141 = vmul.f32 %v1131, %v1034
      %v1142 = vmul.f32 %v1135, %v1033
      %v1143 = vmul.f32 %v1139, %v1032
      %v1144 = vadd.f32 %v1019, %v1140
      %v1145 = vadd.f32 %v1020, %v1141
      %v1146 = vadd.f32 %v1021, %v1142
      %v1147 = vadd.f32 %v1022, %v1143
      %1148 = vrot.lane.b32.xlu0 %v231, 20
      %v1149 = vpop.permute.xlu0 %1148
      %1150 = vrot.lane.b32.xlu0 %v239, 20
      %v1151 = vpop.permute.xlu0 %1150
      %1152 = vrot.lane.b32.xlu0 %v232, 20
      %v1153 = vpop.permute.xlu0 %1152
      %1154 = vrot.lane.b32.xlu0 %v240, 20
      %v1155 = vpop.permute.xlu0 %1154
      %vm1156 = vcmp.lt.s32.totalorder %v252, 20
      %v1157 = vsel %vm1156, %v1153, %v1155
      %v1158 = vsel %vm1156, %v1151, %v1153
      %v1159 = vsel %vm1156, %v1149, %v1151
      %v1160 = vsel %vm1156, %v1155, %v1149
      %1161 = vrot.lane.b32.xlu0 %v233, 20
      %v1162 = vpop.permute.xlu0 %1161
      %1163 = vrot.lane.b32.xlu0 %v260, 20
      %v1164 = vpop.permute.xlu0 %1163
      %1165 = vrot.lane.b32.xlu0 %v234, 20
      %v1166 = vpop.permute.xlu0 %1165
      %1167 = vrot.lane.b32.xlu0 %v261, 20
      %v1168 = vpop.permute.xlu0 %1167
      %v1169 = vsel %vm1156, %v1166, %v1168
      %v1170 = vsel %vm1156, %v1164, %v1166
      %v1171 = vsel %vm1156, %v1162, %v1164
      %v1172 = vsel %vm1156, %v1168, %v1162
      %1173 = vrot.lane.b32.xlu0 %v280, 20
      %v1174 = vpop.permute.xlu0 %1173
      %1175 = vrot.lane.b32.xlu0 %v284, 20
      %v1176 = vpop.permute.xlu0 %1175
      %1177 = vrot.lane.b32.xlu0 %v288, 20
      %v1178 = vpop.permute.xlu0 %1177
      %1179 = vrot.lane.b32.xlu0 %v292, 20
      %v1180 = vpop.permute.xlu0 %1179
      %v1181 = vsel %vm1156, %v1178, %v1180
      %v1182 = vsel %vm1156, %v1176, %v1178
      %v1183 = vsel %vm1156, %v1174, %v1176
      %v1184 = vsel %vm1156, %v1180, %v1174
      %v1185 = vsub.f32 %v1172, %v233
      %v1186 = vsub.f32 %v1171, %v260
      %v1187 = vsub.f32 %v1170, %v234
      %v1188 = vsub.f32 %v1169, %v261
      %v1189 = vmul.f32 %v1185, %v1185
      %v1190 = vmul.f32 %v1186, %v1186
      %v1191 = vmul.f32 %v1187, %v1187
      %v1192 = vmul.f32 %v1188, %v1188
      %v1193 = vsel %vm317, %v1189, 0.0
      %v1194 = vrot.slane %v1193, 4
      %v1195 = vadd.f32 %v1193, %v1194
      %v1196 = vrot.slane %v1195, 2
      %v1197 = vadd.f32 %v1195, %v1196
      %v1198 = vrot.slane %v1197, 1
      %v1199 = vadd.f32 %v1197, %v1198
      %v1200 = vsel %vm317, %v1190, 0.0
      %v1201 = vrot.slane %v1200, 4
      %v1202 = vadd.f32 %v1200, %v1201
      %v1203 = vrot.slane %v1202, 2
      %v1204 = vadd.f32 %v1202, %v1203
      %v1205 = vrot.slane %v1204, 1
      %v1206 = vadd.f32 %v1204, %v1205
      %v1207 = vsel %vm317, %v1191, 0.0
      %v1208 = vrot.slane %v1207, 4
      %v1209 = vadd.f32 %v1207, %v1208
      %v1210 = vrot.slane %v1209, 2
      %v1211 = vadd.f32 %v1209, %v1210
      %v1212 = vrot.slane %v1211, 1
      %v1213 = vadd.f32 %v1211, %v1212
      %v1214 = vsel %vm317, %v1192, 0.0
      %v1215 = vrot.slane %v1214, 4
      %v1216 = vadd.f32 %v1214, %v1215
      %v1217 = vrot.slane %v1216, 2
      %v1218 = vadd.f32 %v1216, %v1217
      %v1219 = vrot.slane %v1218, 1
      %v1220 = vadd.f32 %v1218, %v1219
      %v1221 = vmul.f32 %v1199, -0.5
      %v1222 = vmul.f32 %v1206, -0.5
      %v1223 = vmul.f32 %v1213, -0.5
      %v1224 = vmul.f32 %v1220, -0.5
      %v1225 = vmul.f32 %v1221, 1.442695
      %v1226 = vpow.pop %v1225
      %v1227 = vmul.f32 %v1222, 1.442695
      %v1228 = vpow.pop %v1227
      %v1229 = vmul.f32 %v1223, 1.442695
      %v1230 = vpow.pop %v1229
      %v1231 = vmul.f32 %v1224, 1.442695
      %v1232 = vpow.pop %v1231
      %v1233 = vmul.f32 %v1226, 0.9862071
      %v1234 = vmul.f32 %v1228, 0.9862071
      %v1235 = vmul.f32 %v1230, 0.9862071
      %v1236 = vmul.f32 %v1232, 0.9862071
      %v1237 = vadd.f32 %v1233, 0.9862071
      %v1238 = vadd.f32 %v1234, 0.9862071
      %v1239 = vadd.f32 %v1235, 0.9862071
      %v1240 = vadd.f32 %v1236, 0.9862071
      %v1241 = vmul.f32 %v1237, %v1184
      %v1242 = vmul.f32 %v1238, %v1183
      %v1243 = vmul.f32 %v1239, %v1182
      %v1244 = vmul.f32 %v1240, %v1181
      %v1245 = vadd.f32 %v1120, %v1241
      %v1246 = vadd.f32 %v1121, %v1242
      %v1247 = vadd.f32 %v1122, %v1243
      %v1248 = vadd.f32 %v1123, %v1244
      %v1249 = vlaneseq
      %v1250 = vshrl.u32 %v1249, 7
      %v1251 = vsub.s32 0, %v1250
      %v1252 = vrot.slane %v1241, %v1251
      %v1253 = vlaneseq
      %v1254 = vshrl.u32 %v1253, 7
      %v1255 = vsub.s32 0, %v1254
      %v1256 = vrot.slane %v1242, %v1255
      %v1257 = vlaneseq
      %v1258 = vshrl.u32 %v1257, 7
      %v1259 = vsub.s32 0, %v1258
      %v1260 = vrot.slane %v1243, %v1259
      %v1261 = vlaneseq
      %v1262 = vshrl.u32 %v1261, 7
      %v1263 = vsub.s32 0, %v1262
      %v1264 = vrot.slane %v1244, %v1263
      %v1265 = vmul.f32 %v1252, %v1160
      %v1266 = vmul.f32 %v1256, %v1159
      %v1267 = vmul.f32 %v1260, %v1158
      %v1268 = vmul.f32 %v1264, %v1157
      %v1269 = vadd.f32 %v1144, %v1265
      %v1270 = vadd.f32 %v1145, %v1266
      %v1271 = vadd.f32 %v1146, %v1267
      %v1272 = vadd.f32 %v1147, %v1268
      %1273 = vrot.lane.b32.xlu0 %v231, 19
      %v1274 = vpop.permute.xlu0 %1273
      %1275 = vrot.lane.b32.xlu0 %v239, 19
      %v1276 = vpop.permute.xlu0 %1275
      %1277 = vrot.lane.b32.xlu0 %v232, 19
      %v1278 = vpop.permute.xlu0 %1277
      %1279 = vrot.lane.b32.xlu0 %v240, 19
      %v1280 = vpop.permute.xlu0 %1279
      %vm1281 = vcmp.lt.s32.totalorder %v252, 19
      %v1282 = vsel %vm1281, %v1278, %v1280
      %v1283 = vsel %vm1281, %v1276, %v1278
      %v1284 = vsel %vm1281, %v1274, %v1276
      %v1285 = vsel %vm1281, %v1280, %v1274
      %1286 = vrot.lane.b32.xlu0 %v233, 19
      %v1287 = vpop.permute.xlu0 %1286
      %1288 = vrot.lane.b32.xlu0 %v260, 19
      %v1289 = vpop.permute.xlu0 %1288
      %1290 = vrot.lane.b32.xlu0 %v234, 19
      %v1291 = vpop.permute.xlu0 %1290
      %1292 = vrot.lane.b32.xlu0 %v261, 19
      %v1293 = vpop.permute.xlu0 %1292
      %v1294 = vsel %vm1281, %v1291, %v1293
      %v1295 = vsel %vm1281, %v1289, %v1291
      %v1296 = vsel %vm1281, %v1287, %v1289
      %v1297 = vsel %vm1281, %v1293, %v1287
      %1298 = vrot.lane.b32.xlu0 %v280, 19
      %v1299 = vpop.permute.xlu0 %1298
      %1300 = vrot.lane.b32.xlu0 %v284, 19
      %v1301 = vpop.permute.xlu0 %1300
      %1302 = vrot.lane.b32.xlu0 %v288, 19
      %v1303 = vpop.permute.xlu0 %1302
      %1304 = vrot.lane.b32.xlu0 %v292, 19
      %v1305 = vpop.permute.xlu0 %1304
      %v1306 = vsel %vm1281, %v1303, %v1305
      %v1307 = vsel %vm1281, %v1301, %v1303
      %v1308 = vsel %vm1281, %v1299, %v1301
      %v1309 = vsel %vm1281, %v1305, %v1299
      %v1310 = vsub.f32 %v1297, %v233
      %v1311 = vsub.f32 %v1296, %v260
      %v1312 = vsub.f32 %v1295, %v234
      %v1313 = vsub.f32 %v1294, %v261
      %v1314 = vmul.f32 %v1310, %v1310
      %v1315 = vmul.f32 %v1311, %v1311
      %v1316 = vmul.f32 %v1312, %v1312
      %v1317 = vmul.f32 %v1313, %v1313
      %v1318 = vsel %vm317, %v1314, 0.0
      %v1319 = vrot.slane %v1318, 4
      %v1320 = vadd.f32 %v1318, %v1319
      %v1321 = vrot.slane %v1320, 2
      %v1322 = vadd.f32 %v1320, %v1321
      %v1323 = vrot.slane %v1322, 1
      %v1324 = vadd.f32 %v1322, %v1323
      %v1325 = vsel %vm317, %v1315, 0.0
      %v1326 = vrot.slane %v1325, 4
      %v1327 = vadd.f32 %v1325, %v1326
      %v1328 = vrot.slane %v1327, 2
      %v1329 = vadd.f32 %v1327, %v1328
      %v1330 = vrot.slane %v1329, 1
      %v1331 = vadd.f32 %v1329, %v1330
      %v1332 = vsel %vm317, %v1316, 0.0
      %v1333 = vrot.slane %v1332, 4
      %v1334 = vadd.f32 %v1332, %v1333
      %v1335 = vrot.slane %v1334, 2
      %v1336 = vadd.f32 %v1334, %v1335
      %v1337 = vrot.slane %v1336, 1
      %v1338 = vadd.f32 %v1336, %v1337
      %v1339 = vsel %vm317, %v1317, 0.0
      %v1340 = vrot.slane %v1339, 4
      %v1341 = vadd.f32 %v1339, %v1340
      %v1342 = vrot.slane %v1341, 2
      %v1343 = vadd.f32 %v1341, %v1342
      %v1344 = vrot.slane %v1343, 1
      %v1345 = vadd.f32 %v1343, %v1344
      %v1346 = vmul.f32 %v1324, -0.5
      %v1347 = vmul.f32 %v1331, -0.5
      %v1348 = vmul.f32 %v1338, -0.5
      %v1349 = vmul.f32 %v1345, -0.5
      %v1350 = vmul.f32 %v1346, 1.442695
      %v1351 = vpow.pop %v1350
      %v1352 = vmul.f32 %v1347, 1.442695
      %v1353 = vpow.pop %v1352
      %v1354 = vmul.f32 %v1348, 1.442695
      %v1355 = vpow.pop %v1354
      %v1356 = vmul.f32 %v1349, 1.442695
      %v1357 = vpow.pop %v1356
      %v1358 = vmul.f32 %v1351, 0.97260445
      %v1359 = vmul.f32 %v1353, 0.97260445
      %v1360 = vmul.f32 %v1355, 0.97260445
      %v1361 = vmul.f32 %v1357, 0.97260445
      %v1362 = vadd.f32 %v1358, 0.97260445
      %v1363 = vadd.f32 %v1359, 0.97260445
      %v1364 = vadd.f32 %v1360, 0.97260445
      %v1365 = vadd.f32 %v1361, 0.97260445
      %v1366 = vmul.f32 %v1362, %v1309
      %v1367 = vmul.f32 %v1363, %v1308
      %v1368 = vmul.f32 %v1364, %v1307
      %v1369 = vmul.f32 %v1365, %v1306
      %v1370 = vadd.f32 %v1245, %v1366
      %v1371 = vadd.f32 %v1246, %v1367
      %v1372 = vadd.f32 %v1247, %v1368
      %v1373 = vadd.f32 %v1248, %v1369
      %v1374 = vlaneseq
      %v1375 = vshrl.u32 %v1374, 7
      %v1376 = vsub.s32 0, %v1375
      %v1377 = vrot.slane %v1366, %v1376
      %v1378 = vlaneseq
      %v1379 = vshrl.u32 %v1378, 7
      %v1380 = vsub.s32 0, %v1379
      %v1381 = vrot.slane %v1367, %v1380
      %v1382 = vlaneseq
      %v1383 = vshrl.u32 %v1382, 7
      %v1384 = vsub.s32 0, %v1383
      %v1385 = vrot.slane %v1368, %v1384
      %v1386 = vlaneseq
      %v1387 = vshrl.u32 %v1386, 7
      %v1388 = vsub.s32 0, %v1387
      %v1389 = vrot.slane %v1369, %v1388
      %v1390 = vmul.f32 %v1377, %v1285
      %v1391 = vmul.f32 %v1381, %v1284
      %v1392 = vmul.f32 %v1385, %v1283
      %v1393 = vmul.f32 %v1389, %v1282
      %v1394 = vadd.f32 %v1269, %v1390
      %v1395 = vadd.f32 %v1270, %v1391
      %v1396 = vadd.f32 %v1271, %v1392
      %v1397 = vadd.f32 %v1272, %v1393
      %1398 = vrot.lane.b32.xlu0 %v231, 18
      %v1399 = vpop.permute.xlu0 %1398
      %1400 = vrot.lane.b32.xlu0 %v239, 18
      %v1401 = vpop.permute.xlu0 %1400
      %1402 = vrot.lane.b32.xlu0 %v232, 18
      %v1403 = vpop.permute.xlu0 %1402
      %1404 = vrot.lane.b32.xlu0 %v240, 18
      %v1405 = vpop.permute.xlu0 %1404
      %vm1406 = vcmp.lt.s32.totalorder %v252, 18
      %v1407 = vsel %vm1406, %v1403, %v1405
      %v1408 = vsel %vm1406, %v1401, %v1403
      %v1409 = vsel %vm1406, %v1399, %v1401
      %v1410 = vsel %vm1406, %v1405, %v1399
      %1411 = vrot.lane.b32.xlu0 %v233, 18
      %v1412 = vpop.permute.xlu0 %1411
      %1413 = vrot.lane.b32.xlu0 %v260, 18
      %v1414 = vpop.permute.xlu0 %1413
      %1415 = vrot.lane.b32.xlu0 %v234, 18
      %v1416 = vpop.permute.xlu0 %1415
      %1417 = vrot.lane.b32.xlu0 %v261, 18
      %v1418 = vpop.permute.xlu0 %1417
      %v1419 = vsel %vm1406, %v1416, %v1418
      %v1420 = vsel %vm1406, %v1414, %v1416
      %v1421 = vsel %vm1406, %v1412, %v1414
      %v1422 = vsel %vm1406, %v1418, %v1412
      %1423 = vrot.lane.b32.xlu0 %v280, 18
      %v1424 = vpop.permute.xlu0 %1423
      %1425 = vrot.lane.b32.xlu0 %v284, 18
      %v1426 = vpop.permute.xlu0 %1425
      %1427 = vrot.lane.b32.xlu0 %v288, 18
      %v1428 = vpop.permute.xlu0 %1427
      %1429 = vrot.lane.b32.xlu0 %v292, 18
      %v1430 = vpop.permute.xlu0 %1429
      %v1431 = vsel %vm1406, %v1428, %v1430
      %v1432 = vsel %vm1406, %v1426, %v1428
      %v1433 = vsel %vm1406, %v1424, %v1426
      %v1434 = vsel %vm1406, %v1430, %v1424
      %v1435 = vsub.f32 %v1422, %v233
      %v1436 = vsub.f32 %v1421, %v260
      %v1437 = vsub.f32 %v1420, %v234
      %v1438 = vsub.f32 %v1419, %v261
      %v1439 = vmul.f32 %v1435, %v1435
      %v1440 = vmul.f32 %v1436, %v1436
      %v1441 = vmul.f32 %v1437, %v1437
      %v1442 = vmul.f32 %v1438, %v1438
      %v1443 = vsel %vm317, %v1439, 0.0
      %v1444 = vrot.slane %v1443, 4
      %v1445 = vadd.f32 %v1443, %v1444
      %v1446 = vrot.slane %v1445, 2
      %v1447 = vadd.f32 %v1445, %v1446
      %v1448 = vrot.slane %v1447, 1
      %v1449 = vadd.f32 %v1447, %v1448
      %v1450 = vsel %vm317, %v1440, 0.0
      %v1451 = vrot.slane %v1450, 4
      %v1452 = vadd.f32 %v1450, %v1451
      %v1453 = vrot.slane %v1452, 2
      %v1454 = vadd.f32 %v1452, %v1453
      %v1455 = vrot.slane %v1454, 1
      %v1456 = vadd.f32 %v1454, %v1455
      %v1457 = vsel %vm317, %v1441, 0.0
      %v1458 = vrot.slane %v1457, 4
      %v1459 = vadd.f32 %v1457, %v1458
      %v1460 = vrot.slane %v1459, 2
      %v1461 = vadd.f32 %v1459, %v1460
      %v1462 = vrot.slane %v1461, 1
      %v1463 = vadd.f32 %v1461, %v1462
      %v1464 = vsel %vm317, %v1442, 0.0
      %v1465 = vrot.slane %v1464, 4
      %v1466 = vadd.f32 %v1464, %v1465
      %v1467 = vrot.slane %v1466, 2
      %v1468 = vadd.f32 %v1466, %v1467
      %v1469 = vrot.slane %v1468, 1
      %v1470 = vadd.f32 %v1468, %v1469
      %v1471 = vmul.f32 %v1449, -0.5
      %v1472 = vmul.f32 %v1456, -0.5
      %v1473 = vmul.f32 %v1463, -0.5
      %v1474 = vmul.f32 %v1470, -0.5
      %v1475 = vmul.f32 %v1471, 1.442695
      %v1476 = vpow.pop %v1475
      %v1477 = vmul.f32 %v1472, 1.442695
      %v1478 = vpow.pop %v1477
      %v1479 = vmul.f32 %v1473, 1.442695
      %v1480 = vpow.pop %v1479
      %v1481 = vmul.f32 %v1474, 1.442695
      %v1482 = vpow.pop %v1481
      %v1483 = vmul.f32 %v1476, 0.93291193
      %v1484 = vmul.f32 %v1478, 0.93291193
      %v1485 = vmul.f32 %v1480, 0.93291193
      %v1486 = vmul.f32 %v1482, 0.93291193
      %v1487 = vadd.f32 %v1483, 0.93291193
      %v1488 = vadd.f32 %v1484, 0.93291193
      %v1489 = vadd.f32 %v1485, 0.93291193
      %v1490 = vadd.f32 %v1486, 0.93291193
      %v1491 = vmul.f32 %v1487, %v1434
      %v1492 = vmul.f32 %v1488, %v1433
      %v1493 = vmul.f32 %v1489, %v1432
      %v1494 = vmul.f32 %v1490, %v1431
      %v1495 = vadd.f32 %v1370, %v1491
      %v1496 = vadd.f32 %v1371, %v1492
      %v1497 = vadd.f32 %v1372, %v1493
      %v1498 = vadd.f32 %v1373, %v1494
      %v1499 = vlaneseq
      %v1500 = vshrl.u32 %v1499, 7
      %v1501 = vsub.s32 0, %v1500
      %v1502 = vrot.slane %v1491, %v1501
      %v1503 = vlaneseq
      %v1504 = vshrl.u32 %v1503, 7
      %v1505 = vsub.s32 0, %v1504
      %v1506 = vrot.slane %v1492, %v1505
      %v1507 = vlaneseq
      %v1508 = vshrl.u32 %v1507, 7
      %v1509 = vsub.s32 0, %v1508
      %v1510 = vrot.slane %v1493, %v1509
      %v1511 = vlaneseq
      %v1512 = vshrl.u32 %v1511, 7
      %v1513 = vsub.s32 0, %v1512
      %v1514 = vrot.slane %v1494, %v1513
      %v1515 = vmul.f32 %v1502, %v1410
      %v1516 = vmul.f32 %v1506, %v1409
      %v1517 = vmul.f32 %v1510, %v1408
      %v1518 = vmul.f32 %v1514, %v1407
      %v1519 = vadd.f32 %v1394, %v1515
      %v1520 = vadd.f32 %v1395, %v1516
      %v1521 = vadd.f32 %v1396, %v1517
      %v1522 = vadd.f32 %v1397, %v1518
      %1523 = vrot.lane.b32.xlu0 %v231, 2
      %v1524 = vpop.permute.xlu0 %1523
      %1525 = vrot.lane.b32.xlu0 %v239, 2
      %v1526 = vpop.permute.xlu0 %1525
      %1527 = vrot.lane.b32.xlu0 %v232, 2
      %v1528 = vpop.permute.xlu0 %1527
      %1529 = vrot.lane.b32.xlu0 %v240, 2
      %v1530 = vpop.permute.xlu0 %1529
      %vm1531 = vcmp.lt.s32.totalorder %v252, 2
      %v1532 = vsel %vm1531, %v1528, %v1530
      %v1533 = vsel %vm1531, %v1526, %v1528
      %v1534 = vsel %vm1531, %v1524, %v1526
      %v1535 = vsel %vm1531, %v1530, %v1524
      %1536 = vrot.lane.b32.xlu0 %v233, 2
      %v1537 = vpop.permute.xlu0 %1536
      %1538 = vrot.lane.b32.xlu0 %v260, 2
      %v1539 = vpop.permute.xlu0 %1538
      %1540 = vrot.lane.b32.xlu0 %v234, 2
      %v1541 = vpop.permute.xlu0 %1540
      %1542 = vrot.lane.b32.xlu0 %v261, 2
      %v1543 = vpop.permute.xlu0 %1542
      %v1544 = vsel %vm1531, %v1541, %v1543
      %v1545 = vsel %vm1531, %v1539, %v1541
      %v1546 = vsel %vm1531, %v1537, %v1539
      %v1547 = vsel %vm1531, %v1543, %v1537
      %1548 = vrot.lane.b32.xlu0 %v280, 2
      %v1549 = vpop.permute.xlu0 %1548
      %1550 = vrot.lane.b32.xlu0 %v284, 2
      %v1551 = vpop.permute.xlu0 %1550
      %1552 = vrot.lane.b32.xlu0 %v288, 2
      %v1553 = vpop.permute.xlu0 %1552
      %1554 = vrot.lane.b32.xlu0 %v292, 2
      %v1555 = vpop.permute.xlu0 %1554
      %v1556 = vsel %vm1531, %v1553, %v1555
      %v1557 = vsel %vm1531, %v1551, %v1553
      %v1558 = vsel %vm1531, %v1549, %v1551
      %v1559 = vsel %vm1531, %v1555, %v1549
      %v1560 = vsub.f32 %v1547, %v233
      %v1561 = vsub.f32 %v1546, %v260
      %v1562 = vsub.f32 %v1545, %v234
      %v1563 = vsub.f32 %v1544, %v261
      %v1564 = vmul.f32 %v1560, %v1560
      %v1565 = vmul.f32 %v1561, %v1561
      %v1566 = vmul.f32 %v1562, %v1562
      %v1567 = vmul.f32 %v1563, %v1563
      %v1568 = vsel %vm317, %v1564, 0.0
      %v1569 = vrot.slane %v1568, 4
      %v1570 = vadd.f32 %v1568, %v1569
      %v1571 = vrot.slane %v1570, 2
      %v1572 = vadd.f32 %v1570, %v1571
      %v1573 = vrot.slane %v1572, 1
      %v1574 = vadd.f32 %v1572, %v1573
      %v1575 = vsel %vm317, %v1565, 0.0
      %v1576 = vrot.slane %v1575, 4
      %v1577 = vadd.f32 %v1575, %v1576
      %v1578 = vrot.slane %v1577, 2
      %v1579 = vadd.f32 %v1577, %v1578
      %v1580 = vrot.slane %v1579, 1
      %v1581 = vadd.f32 %v1579, %v1580
      %v1582 = vsel %vm317, %v1566, 0.0
      %v1583 = vrot.slane %v1582, 4
      %v1584 = vadd.f32 %v1582, %v1583
      %v1585 = vrot.slane %v1584, 2
      %v1586 = vadd.f32 %v1584, %v1585
      %v1587 = vrot.slane %v1586, 1
      %v1588 = vadd.f32 %v1586, %v1587
      %v1589 = vsel %vm317, %v1567, 0.0
      %v1590 = vrot.slane %v1589, 4
      %v1591 = vadd.f32 %v1589, %v1590
      %v1592 = vrot.slane %v1591, 2
      %v1593 = vadd.f32 %v1591, %v1592
      %v1594 = vrot.slane %v1593, 1
      %v1595 = vadd.f32 %v1593, %v1594
      %v1596 = vmul.f32 %v1574, -0.5
      %v1597 = vmul.f32 %v1581, -0.5
      %v1598 = vmul.f32 %v1588, -0.5
      %v1599 = vmul.f32 %v1595, -0.5
      %v1600 = vmul.f32 %v1596, 1.442695
      %v1601 = vpow.pop %v1600
      %v1602 = vmul.f32 %v1597, 1.442695
      %v1603 = vpow.pop %v1602
      %v1604 = vmul.f32 %v1598, 1.442695
      %v1605 = vpow.pop %v1604
      %v1606 = vmul.f32 %v1599, 1.442695
      %v1607 = vpow.pop %v1606
      %v1608 = vmul.f32 %v1601, 0.94595945
      %v1609 = vmul.f32 %v1603, 0.94595945
      %v1610 = vmul.f32 %v1605, 0.94595945
      %v1611 = vmul.f32 %v1607, 0.94595945
      %v1612 = vadd.f32 %v1608, 0.94595945
      %v1613 = vadd.f32 %v1609, 0.94595945
      %v1614 = vadd.f32 %v1610, 0.94595945
      %v1615 = vadd.f32 %v1611, 0.94595945
      %v1616 = vmul.f32 %v1612, %v1559
      %v1617 = vmul.f32 %v1613, %v1558
      %v1618 = vmul.f32 %v1614, %v1557
      %v1619 = vmul.f32 %v1615, %v1556
      %v1620 = vadd.f32 %v1495, %v1616
      %v1621 = vadd.f32 %v1496, %v1617
      %v1622 = vadd.f32 %v1497, %v1618
      %v1623 = vadd.f32 %v1498, %v1619
      %v1624 = vlaneseq
      %v1625 = vshrl.u32 %v1624, 7
      %v1626 = vsub.s32 0, %v1625
      %v1627 = vrot.slane %v1616, %v1626
      %v1628 = vlaneseq
      %v1629 = vshrl.u32 %v1628, 7
      %v1630 = vsub.s32 0, %v1629
      %v1631 = vrot.slane %v1617, %v1630
      %v1632 = vlaneseq
      %v1633 = vshrl.u32 %v1632, 7
      %v1634 = vsub.s32 0, %v1633
      %v1635 = vrot.slane %v1618, %v1634
      %v1636 = vlaneseq
      %v1637 = vshrl.u32 %v1636, 7
      %v1638 = vsub.s32 0, %v1637
      %v1639 = vrot.slane %v1619, %v1638
      %v1640 = vmul.f32 %v1627, %v1535
      %v1641 = vmul.f32 %v1631, %v1534
      %v1642 = vmul.f32 %v1635, %v1533
      %v1643 = vmul.f32 %v1639, %v1532
      %v1644 = vadd.f32 %v1519, %v1640
      %v1645 = vadd.f32 %v1520, %v1641
      %v1646 = vadd.f32 %v1521, %v1642
      %v1647 = vadd.f32 %v1522, %v1643
      %1648 = vrot.lane.b32.xlu0 %v231, 1
      %v1649 = vpop.permute.xlu0 %1648
      %1650 = vrot.lane.b32.xlu0 %v239, 1
      %v1651 = vpop.permute.xlu0 %1650
      %1652 = vrot.lane.b32.xlu0 %v232, 1
      %v1653 = vpop.permute.xlu0 %1652
      %1654 = vrot.lane.b32.xlu0 %v240, 1
      %v1655 = vpop.permute.xlu0 %1654
      %vm1656 = vcmp.lt.s32.totalorder %v252, 1
      %v1657 = vsel %vm1656, %v1653, %v1655
      %v1658 = vsel %vm1656, %v1651, %v1653
      %v1659 = vsel %vm1656, %v1649, %v1651
      %v1660 = vsel %vm1656, %v1655, %v1649
      %1661 = vrot.lane.b32.xlu0 %v233, 1
      %v1662 = vpop.permute.xlu0 %1661
      %1663 = vrot.lane.b32.xlu0 %v260, 1
      %v1664 = vpop.permute.xlu0 %1663
      %1665 = vrot.lane.b32.xlu0 %v234, 1
      %v1666 = vpop.permute.xlu0 %1665
      %1667 = vrot.lane.b32.xlu0 %v261, 1
      %v1668 = vpop.permute.xlu0 %1667
      %v1669 = vsel %vm1656, %v1666, %v1668
      %v1670 = vsel %vm1656, %v1664, %v1666
      %v1671 = vsel %vm1656, %v1662, %v1664
      %v1672 = vsel %vm1656, %v1668, %v1662
      %1673 = vrot.lane.b32.xlu0 %v280, 1
      %v1674 = vpop.permute.xlu0 %1673
      %1675 = vrot.lane.b32.xlu0 %v284, 1
      %v1676 = vpop.permute.xlu0 %1675
      %1677 = vrot.lane.b32.xlu0 %v288, 1
      %v1678 = vpop.permute.xlu0 %1677
      %1679 = vrot.lane.b32.xlu0 %v292, 1
      %v1680 = vpop.permute.xlu0 %1679
      %v1681 = vsel %vm1656, %v1678, %v1680
      %v1682 = vsel %vm1656, %v1676, %v1678
      %v1683 = vsel %vm1656, %v1674, %v1676
      %v1684 = vsel %vm1656, %v1680, %v1674
      %v1685 = vsub.f32 %v1672, %v233
      %v1686 = vsub.f32 %v1671, %v260
      %v1687 = vsub.f32 %v1670, %v234
      %v1688 = vsub.f32 %v1669, %v261
      %v1689 = vmul.f32 %v1685, %v1685
      %v1690 = vmul.f32 %v1686, %v1686
      %v1691 = vmul.f32 %v1687, %v1687
      %v1692 = vmul.f32 %v1688, %v1688
      %v1693 = vsel %vm317, %v1689, 0.0
      %v1694 = vrot.slane %v1693, 4
      %v1695 = vadd.f32 %v1693, %v1694
      %v1696 = vrot.slane %v1695, 2
      %v1697 = vadd.f32 %v1695, %v1696
      %v1698 = vrot.slane %v1697, 1
      %v1699 = vadd.f32 %v1697, %v1698
      %v1700 = vsel %vm317, %v1690, 0.0
      %v1701 = vrot.slane %v1700, 4
      %v1702 = vadd.f32 %v1700, %v1701
      %v1703 = vrot.slane %v1702, 2
      %v1704 = vadd.f32 %v1702, %v1703
      %v1705 = vrot.slane %v1704, 1
      %v1706 = vadd.f32 %v1704, %v1705
      %v1707 = vsel %vm317, %v1691, 0.0
      %v1708 = vrot.slane %v1707, 4
      %v1709 = vadd.f32 %v1707, %v1708
      %v1710 = vrot.slane %v1709, 2
      %v1711 = vadd.f32 %v1709, %v1710
      %v1712 = vrot.slane %v1711, 1
      %v1713 = vadd.f32 %v1711, %v1712
      %v1714 = vsel %vm317, %v1692, 0.0
      %v1715 = vrot.slane %v1714, 4
      %v1716 = vadd.f32 %v1714, %v1715
      %v1717 = vrot.slane %v1716, 2
      %v1718 = vadd.f32 %v1716, %v1717
      %v1719 = vrot.slane %v1718, 1
      %v1720 = vadd.f32 %v1718, %v1719
      %v1721 = vmul.f32 %v1699, -0.5
      %v1722 = vmul.f32 %v1706, -0.5
      %v1723 = vmul.f32 %v1713, -0.5
      %v1724 = vmul.f32 %v1720, -0.5
      %v1725 = vmul.f32 %v1721, 1.442695
      %v1726 = vpow.pop %v1725
      %v1727 = vmul.f32 %v1722, 1.442695
      %v1728 = vpow.pop %v1727
      %v1729 = vmul.f32 %v1723, 1.442695
      %v1730 = vpow.pop %v1729
      %v1731 = vmul.f32 %v1724, 1.442695
      %v1732 = vpow.pop %v1731
      %v1733 = vmul.f32 %v1726, 0.9862071
      %v1734 = vmul.f32 %v1728, 0.9862071
      %v1735 = vmul.f32 %v1730, 0.9862071
      %v1736 = vmul.f32 %v1732, 0.9862071
      %v1737 = vadd.f32 %v1733, 0.9862071
      %v1738 = vadd.f32 %v1734, 0.9862071
      %v1739 = vadd.f32 %v1735, 0.9862071
      %v1740 = vadd.f32 %v1736, 0.9862071
      %v1741 = vmul.f32 %v1737, %v1684
      %v1742 = vmul.f32 %v1738, %v1683
      %v1743 = vmul.f32 %v1739, %v1682
      %v1744 = vmul.f32 %v1740, %v1681
      %v1745 = vadd.f32 %v1620, %v1741
      %v1746 = vadd.f32 %v1621, %v1742
      %v1747 = vadd.f32 %v1622, %v1743
      %v1748 = vadd.f32 %v1623, %v1744
      %v1749 = vlaneseq
      %v1750 = vshrl.u32 %v1749, 7
      %v1751 = vsub.s32 0, %v1750
      %v1752 = vrot.slane %v1741, %v1751
      %v1753 = vlaneseq
      %v1754 = vshrl.u32 %v1753, 7
      %v1755 = vsub.s32 0, %v1754
      %v1756 = vrot.slane %v1742, %v1755
      %v1757 = vlaneseq
      %v1758 = vshrl.u32 %v1757, 7
      %v1759 = vsub.s32 0, %v1758
      %v1760 = vrot.slane %v1743, %v1759
      %v1761 = vlaneseq
      %v1762 = vshrl.u32 %v1761, 7
      %v1763 = vsub.s32 0, %v1762
      %v1764 = vrot.slane %v1744, %v1763
      %v1765 = vmul.f32 %v1752, %v1660
      %v1766 = vmul.f32 %v1756, %v1659
      %v1767 = vmul.f32 %v1760, %v1658
      %v1768 = vmul.f32 %v1764, %v1657
      %v1769 = vadd.f32 %v1644, %v1765
      %v1770 = vadd.f32 %v1645, %v1766
      %v1771 = vadd.f32 %v1646, %v1767
      %v1772 = vadd.f32 %v1647, %v1768
      %1773 = vrot.lane.b32.xlu0 %v231, 127
      %v1774 = vpop.permute.xlu0 %1773
      %1775 = vrot.lane.b32.xlu0 %v239, 127
      %v1776 = vpop.permute.xlu0 %1775
      %1777 = vrot.lane.b32.xlu0 %v232, 127
      %v1778 = vpop.permute.xlu0 %1777
      %1779 = vrot.lane.b32.xlu0 %v240, 127
      %v1780 = vpop.permute.xlu0 %1779
      %vm1781 = vcmp.lt.s32.totalorder %v252, 127
      %v1782 = vsel %vm1781, %v1778, %v1780
      %v1783 = vsel %vm1781, %v1776, %v1778
      %v1784 = vsel %vm1781, %v1774, %v1776
      %v1785 = vsel %vm1781, %v1780, %v1774
      %1786 = vrot.lane.b32.xlu0 %v233, 127
      %v1787 = vpop.permute.xlu0 %1786
      %1788 = vrot.lane.b32.xlu0 %v260, 127
      %v1789 = vpop.permute.xlu0 %1788
      %1790 = vrot.lane.b32.xlu0 %v234, 127
      %v1791 = vpop.permute.xlu0 %1790
      %1792 = vrot.lane.b32.xlu0 %v261, 127
      %v1793 = vpop.permute.xlu0 %1792
      %v1794 = vsel %vm1781, %v1791, %v1793
      %v1795 = vsel %vm1781, %v1789, %v1791
      %v1796 = vsel %vm1781, %v1787, %v1789
      %v1797 = vsel %vm1781, %v1793, %v1787
      %1798 = vrot.lane.b32.xlu0 %v280, 127
      %v1799 = vpop.permute.xlu0 %1798
      %1800 = vrot.lane.b32.xlu0 %v284, 127
      %v1801 = vpop.permute.xlu0 %1800
      %1802 = vrot.lane.b32.xlu0 %v288, 127
      %v1803 = vpop.permute.xlu0 %1802
      %1804 = vrot.lane.b32.xlu0 %v292, 127
      %v1805 = vpop.permute.xlu0 %1804
      %v1806 = vsel %vm1781, %v1803, %v1805
      %v1807 = vsel %vm1781, %v1801, %v1803
      %v1808 = vsel %vm1781, %v1799, %v1801
      %v1809 = vsel %vm1781, %v1805, %v1799
      %v1810 = vsub.f32 %v1796, %v233
      %v1811 = vsub.f32 %v1795, %v260
      %v1812 = vsub.f32 %v1794, %v234
      %v1813 = vsub.f32 %v1797, %v261
      %v1814 = vmul.f32 %v1810, %v1810
      %v1815 = vmul.f32 %v1811, %v1811
      %v1816 = vmul.f32 %v1812, %v1812
      %v1817 = vmul.f32 %v1813, %v1813
      %v1818 = vsel %vm317, %v1814, 0.0
      %v1819 = vrot.slane %v1818, 4
      %v1820 = vadd.f32 %v1818, %v1819
      %v1821 = vrot.slane %v1820, 2
      %v1822 = vadd.f32 %v1820, %v1821
      %v1823 = vrot.slane %v1822, 1
      %v1824 = vadd.f32 %v1822, %v1823
      %v1825 = vsel %vm317, %v1815, 0.0
      %v1826 = vrot.slane %v1825, 4
      %v1827 = vadd.f32 %v1825, %v1826
      %v1828 = vrot.slane %v1827, 2
      %v1829 = vadd.f32 %v1827, %v1828
      %v1830 = vrot.slane %v1829, 1
      %v1831 = vadd.f32 %v1829, %v1830
      %v1832 = vsel %vm317, %v1816, 0.0
      %v1833 = vrot.slane %v1832, 4
      %v1834 = vadd.f32 %v1832, %v1833
      %v1835 = vrot.slane %v1834, 2
      %v1836 = vadd.f32 %v1834, %v1835
      %v1837 = vrot.slane %v1836, 1
      %v1838 = vadd.f32 %v1836, %v1837
      %v1839 = vsel %vm317, %v1817, 0.0
      %v1840 = vrot.slane %v1839, 4
      %v1841 = vadd.f32 %v1839, %v1840
      %v1842 = vrot.slane %v1841, 2
      %v1843 = vadd.f32 %v1841, %v1842
      %v1844 = vrot.slane %v1843, 1
      %v1845 = vadd.f32 %v1843, %v1844
      %v1846 = vmul.f32 %v1824, -0.5
      %v1847 = vmul.f32 %v1831, -0.5
      %v1848 = vmul.f32 %v1838, -0.5
      %v1849 = vmul.f32 %v1845, -0.5
      %v1850 = vmul.f32 %v1846, 1.442695
      %v1851 = vpow.pop %v1850
      %v1852 = vmul.f32 %v1847, 1.442695
      %v1853 = vpow.pop %v1852
      %v1854 = vmul.f32 %v1848, 1.442695
      %v1855 = vpow.pop %v1854
      %v1856 = vmul.f32 %v1849, 1.442695
      %v1857 = vpow.pop %v1856
      %v1858 = vmul.f32 %v1851, 0.9862071
      %v1859 = vmul.f32 %v1853, 0.9862071
      %v1860 = vmul.f32 %v1855, 0.9862071
      %v1861 = vmul.f32 %v1857, 0.9862071
      %v1862 = vadd.f32 %v1858, 0.9862071
      %v1863 = vadd.f32 %v1859, 0.9862071
      %v1864 = vadd.f32 %v1860, 0.9862071
      %v1865 = vadd.f32 %v1861, 0.9862071
      %v1866 = vmul.f32 %v1862, %v1808
      %v1867 = vmul.f32 %v1863, %v1807
      %v1868 = vmul.f32 %v1864, %v1806
      %v1869 = vmul.f32 %v1865, %v1809
      %v1870 = vadd.f32 %v1745, %v1866
      %v1871 = vadd.f32 %v1746, %v1867
      %v1872 = vadd.f32 %v1747, %v1868
      %v1873 = vadd.f32 %v1748, %v1869
      %v1874 = vlaneseq
      %v1875 = vshrl.u32 %v1874, 7
      %v1876 = vsub.s32 0, %v1875
      %v1877 = vrot.slane %v1866, %v1876
      %v1878 = vlaneseq
      %v1879 = vshrl.u32 %v1878, 7
      %v1880 = vsub.s32 0, %v1879
      %v1881 = vrot.slane %v1867, %v1880
      %v1882 = vlaneseq
      %v1883 = vshrl.u32 %v1882, 7
      %v1884 = vsub.s32 0, %v1883
      %v1885 = vrot.slane %v1868, %v1884
      %v1886 = vlaneseq
      %v1887 = vshrl.u32 %v1886, 7
      %v1888 = vsub.s32 0, %v1887
      %v1889 = vrot.slane %v1869, %v1888
      %v1890 = vmul.f32 %v1877, %v1784
      %v1891 = vmul.f32 %v1881, %v1783
      %v1892 = vmul.f32 %v1885, %v1782
      %v1893 = vmul.f32 %v1889, %v1785
      %v1894 = vadd.f32 %v1769, %v1890
      %v1895 = vadd.f32 %v1770, %v1891
      %v1896 = vadd.f32 %v1771, %v1892
      %v1897 = vadd.f32 %v1772, %v1893
      %1898 = vrot.lane.b32.xlu0 %v231, 126
      %v1899 = vpop.permute.xlu0 %1898
      %1900 = vrot.lane.b32.xlu0 %v239, 126
      %v1901 = vpop.permute.xlu0 %1900
      %1902 = vrot.lane.b32.xlu0 %v232, 126
      %v1903 = vpop.permute.xlu0 %1902
      %1904 = vrot.lane.b32.xlu0 %v240, 126
      %v1905 = vpop.permute.xlu0 %1904
      %vm1906 = vcmp.lt.s32.totalorder %v252, 126
      %v1907 = vsel %vm1906, %v1903, %v1905
      %v1908 = vsel %vm1906, %v1901, %v1903
      %v1909 = vsel %vm1906, %v1899, %v1901
      %v1910 = vsel %vm1906, %v1905, %v1899
      %1911 = vrot.lane.b32.xlu0 %v233, 126
      %v1912 = vpop.permute.xlu0 %1911
      %1913 = vrot.lane.b32.xlu0 %v260, 126
      %v1914 = vpop.permute.xlu0 %1913
      %1915 = vrot.lane.b32.xlu0 %v234, 126
      %v1916 = vpop.permute.xlu0 %1915
      %1917 = vrot.lane.b32.xlu0 %v261, 126
      %v1918 = vpop.permute.xlu0 %1917
      %v1919 = vsel %vm1906, %v1916, %v1918
      %v1920 = vsel %vm1906, %v1914, %v1916
      %v1921 = vsel %vm1906, %v1912, %v1914
      %v1922 = vsel %vm1906, %v1918, %v1912
      %1923 = vrot.lane.b32.xlu0 %v280, 126
      %v1924 = vpop.permute.xlu0 %1923
      %1925 = vrot.lane.b32.xlu0 %v284, 126
      %v1926 = vpop.permute.xlu0 %1925
      %1927 = vrot.lane.b32.xlu0 %v288, 126
      %v1928 = vpop.permute.xlu0 %1927
      %1929 = vrot.lane.b32.xlu0 %v292, 126
      %v1930 = vpop.permute.xlu0 %1929
      %v1931 = vsel %vm1906, %v1928, %v1930
      %v1932 = vsel %vm1906, %v1926, %v1928
      %v1933 = vsel %vm1906, %v1924, %v1926
      %v1934 = vsel %vm1906, %v1930, %v1924
      %v1935 = vsub.f32 %v1921, %v233
      %v1936 = vsub.f32 %v1920, %v260
      %v1937 = vsub.f32 %v1919, %v234
      %v1938 = vsub.f32 %v1922, %v261
      %v1939 = vmul.f32 %v1935, %v1935
      %v1940 = vmul.f32 %v1936, %v1936
      %v1941 = vmul.f32 %v1937, %v1937
      %v1942 = vmul.f32 %v1938, %v1938
      %v1943 = vsel %vm317, %v1939, 0.0
      %v1944 = vrot.slane %v1943, 4
      %v1945 = vadd.f32 %v1943, %v1944
      %v1946 = vrot.slane %v1945, 2
      %v1947 = vadd.f32 %v1945, %v1946
      %v1948 = vrot.slane %v1947, 1
      %v1949 = vadd.f32 %v1947, %v1948
      %v1950 = vsel %vm317, %v1940, 0.0
      %v1951 = vrot.slane %v1950, 4
      %v1952 = vadd.f32 %v1950, %v1951
      %v1953 = vrot.slane %v1952, 2
      %v1954 = vadd.f32 %v1952, %v1953
      %v1955 = vrot.slane %v1954, 1
      %v1956 = vadd.f32 %v1954, %v1955
      %v1957 = vsel %vm317, %v1941, 0.0
      %v1958 = vrot.slane %v1957, 4
      %v1959 = vadd.f32 %v1957, %v1958
      %v1960 = vrot.slane %v1959, 2
      %v1961 = vadd.f32 %v1959, %v1960
      %v1962 = vrot.slane %v1961, 1
      %v1963 = vadd.f32 %v1961, %v1962
      %v1964 = vsel %vm317, %v1942, 0.0
      %v1965 = vrot.slane %v1964, 4
      %v1966 = vadd.f32 %v1964, %v1965
      %v1967 = vrot.slane %v1966, 2
      %v1968 = vadd.f32 %v1966, %v1967
      %v1969 = vrot.slane %v1968, 1
      %v1970 = vadd.f32 %v1968, %v1969
      %v1971 = vmul.f32 %v1949, -0.5
      %v1972 = vmul.f32 %v1956, -0.5
      %v1973 = vmul.f32 %v1963, -0.5
      %v1974 = vmul.f32 %v1970, -0.5
      %v1975 = vmul.f32 %v1971, 1.442695
      %v1976 = vpow.pop %v1975
      %v1977 = vmul.f32 %v1972, 1.442695
      %v1978 = vpow.pop %v1977
      %v1979 = vmul.f32 %v1973, 1.442695
      %v1980 = vpow.pop %v1979
      %v1981 = vmul.f32 %v1974, 1.442695
      %v1982 = vpow.pop %v1981
      %v1983 = vmul.f32 %v1976, 0.94595945
      %v1984 = vmul.f32 %v1978, 0.94595945
      %v1985 = vmul.f32 %v1980, 0.94595945
      %v1986 = vmul.f32 %v1982, 0.94595945
      %v1987 = vadd.f32 %v1983, 0.94595945
      %v1988 = vadd.f32 %v1984, 0.94595945
      %v1989 = vadd.f32 %v1985, 0.94595945
      %v1990 = vadd.f32 %v1986, 0.94595945
      %v1991 = vmul.f32 %v1987, %v1933
      %v1992 = vmul.f32 %v1988, %v1932
      %v1993 = vmul.f32 %v1989, %v1931
      %v1994 = vmul.f32 %v1990, %v1934
      %v1995 = vadd.f32 %v1870, %v1991
      %v1996 = vadd.f32 %v1871, %v1992
      %v1997 = vadd.f32 %v1872, %v1993
      %v1998 = vadd.f32 %v1873, %v1994
      %v1999 = vlaneseq
      %v2000 = vshrl.u32 %v1999, 7
      %v2001 = vsub.s32 0, %v2000
      %v2002 = vrot.slane %v1991, %v2001
      %v2003 = vlaneseq
      %v2004 = vshrl.u32 %v2003, 7
      %v2005 = vsub.s32 0, %v2004
      %v2006 = vrot.slane %v1992, %v2005
      %v2007 = vlaneseq
      %v2008 = vshrl.u32 %v2007, 7
      %v2009 = vsub.s32 0, %v2008
      %v2010 = vrot.slane %v1993, %v2009
      %v2011 = vlaneseq
      %v2012 = vshrl.u32 %v2011, 7
      %v2013 = vsub.s32 0, %v2012
      %v2014 = vrot.slane %v1994, %v2013
      %v2015 = vmul.f32 %v2002, %v1909
      %v2016 = vmul.f32 %v2006, %v1908
      %v2017 = vmul.f32 %v2010, %v1907
      %v2018 = vmul.f32 %v2014, %v1910
      %v2019 = vadd.f32 %v1894, %v2015
      %v2020 = vadd.f32 %v1895, %v2016
      %v2021 = vadd.f32 %v1896, %v2017
      %v2022 = vadd.f32 %v1897, %v2018
      %2023 = vrot.lane.b32.xlu0 %v231, 110
      %v2024 = vpop.permute.xlu0 %2023
      %2025 = vrot.lane.b32.xlu0 %v239, 110
      %v2026 = vpop.permute.xlu0 %2025
      %2027 = vrot.lane.b32.xlu0 %v232, 110
      %v2028 = vpop.permute.xlu0 %2027
      %2029 = vrot.lane.b32.xlu0 %v240, 110
      %v2030 = vpop.permute.xlu0 %2029
      %vm2031 = vcmp.lt.s32.totalorder %v252, 110
      %v2032 = vsel %vm2031, %v2028, %v2030
      %v2033 = vsel %vm2031, %v2026, %v2028
      %v2034 = vsel %vm2031, %v2024, %v2026
      %v2035 = vsel %vm2031, %v2030, %v2024
      %2036 = vrot.lane.b32.xlu0 %v233, 110
      %v2037 = vpop.permute.xlu0 %2036
      %2038 = vrot.lane.b32.xlu0 %v260, 110
      %v2039 = vpop.permute.xlu0 %2038
      %2040 = vrot.lane.b32.xlu0 %v234, 110
      %v2041 = vpop.permute.xlu0 %2040
      %2042 = vrot.lane.b32.xlu0 %v261, 110
      %v2043 = vpop.permute.xlu0 %2042
      %v2044 = vsel %vm2031, %v2041, %v2043
      %v2045 = vsel %vm2031, %v2039, %v2041
      %v2046 = vsel %vm2031, %v2037, %v2039
      %v2047 = vsel %vm2031, %v2043, %v2037
      %2048 = vrot.lane.b32.xlu0 %v280, 110
      %v2049 = vpop.permute.xlu0 %2048
      %2050 = vrot.lane.b32.xlu0 %v284, 110
      %v2051 = vpop.permute.xlu0 %2050
      %2052 = vrot.lane.b32.xlu0 %v288, 110
      %v2053 = vpop.permute.xlu0 %2052
      %2054 = vrot.lane.b32.xlu0 %v292, 110
      %v2055 = vpop.permute.xlu0 %2054
      %v2056 = vsel %vm2031, %v2053, %v2055
      %v2057 = vsel %vm2031, %v2051, %v2053
      %v2058 = vsel %vm2031, %v2049, %v2051
      %v2059 = vsel %vm2031, %v2055, %v2049
      %v2060 = vsub.f32 %v2046, %v233
      %v2061 = vsub.f32 %v2045, %v260
      %v2062 = vsub.f32 %v2044, %v234
      %v2063 = vsub.f32 %v2047, %v261
      %v2064 = vmul.f32 %v2060, %v2060
      %v2065 = vmul.f32 %v2061, %v2061
      %v2066 = vmul.f32 %v2062, %v2062
      %v2067 = vmul.f32 %v2063, %v2063
      %v2068 = vsel %vm317, %v2064, 0.0
      %v2069 = vrot.slane %v2068, 4
      %v2070 = vadd.f32 %v2068, %v2069
      %v2071 = vrot.slane %v2070, 2
      %v2072 = vadd.f32 %v2070, %v2071
      %v2073 = vrot.slane %v2072, 1
      %v2074 = vadd.f32 %v2072, %v2073
      %v2075 = vsel %vm317, %v2065, 0.0
      %v2076 = vrot.slane %v2075, 4
      %v2077 = vadd.f32 %v2075, %v2076
      %v2078 = vrot.slane %v2077, 2
      %v2079 = vadd.f32 %v2077, %v2078
      %v2080 = vrot.slane %v2079, 1
      %v2081 = vadd.f32 %v2079, %v2080
      %v2082 = vsel %vm317, %v2066, 0.0
      %v2083 = vrot.slane %v2082, 4
      %v2084 = vadd.f32 %v2082, %v2083
      %v2085 = vrot.slane %v2084, 2
      %v2086 = vadd.f32 %v2084, %v2085
      %v2087 = vrot.slane %v2086, 1
      %v2088 = vadd.f32 %v2086, %v2087
      %v2089 = vsel %vm317, %v2067, 0.0
      %v2090 = vrot.slane %v2089, 4
      %v2091 = vadd.f32 %v2089, %v2090
      %v2092 = vrot.slane %v2091, 2
      %v2093 = vadd.f32 %v2091, %v2092
      %v2094 = vrot.slane %v2093, 1
      %v2095 = vadd.f32 %v2093, %v2094
      %v2096 = vmul.f32 %v2074, -0.5
      %v2097 = vmul.f32 %v2081, -0.5
      %v2098 = vmul.f32 %v2088, -0.5
      %v2099 = vmul.f32 %v2095, -0.5
      %v2100 = vmul.f32 %v2096, 1.442695
      %v2101 = vpow.pop %v2100
      %v2102 = vmul.f32 %v2097, 1.442695
      %v2103 = vpow.pop %v2102
      %v2104 = vmul.f32 %v2098, 1.442695
      %v2105 = vpow.pop %v2104
      %v2106 = vmul.f32 %v2099, 1.442695
      %v2107 = vpow.pop %v2106
      %v2108 = vmul.f32 %v2101, 0.93291193
      %v2109 = vmul.f32 %v2103, 0.93291193
      %v2110 = vmul.f32 %v2105, 0.93291193
      %v2111 = vmul.f32 %v2107, 0.93291193
      %v2112 = vadd.f32 %v2108, 0.93291193
      %v2113 = vadd.f32 %v2109, 0.93291193
      %v2114 = vadd.f32 %v2110, 0.93291193
      %v2115 = vadd.f32 %v2111, 0.93291193
      %v2116 = vmul.f32 %v2112, %v2058
      %v2117 = vmul.f32 %v2113, %v2057
      %v2118 = vmul.f32 %v2114, %v2056
      %v2119 = vmul.f32 %v2115, %v2059
      %v2120 = vadd.f32 %v1995, %v2116
      %v2121 = vadd.f32 %v1996, %v2117
      %v2122 = vadd.f32 %v1997, %v2118
      %v2123 = vadd.f32 %v1998, %v2119
      %v2124 = vlaneseq
      %v2125 = vshrl.u32 %v2124, 7
      %v2126 = vsub.s32 0, %v2125
      %v2127 = vrot.slane %v2116, %v2126
      %v2128 = vlaneseq
      %v2129 = vshrl.u32 %v2128, 7
      %v2130 = vsub.s32 0, %v2129
      %v2131 = vrot.slane %v2117, %v2130
      %v2132 = vlaneseq
      %v2133 = vshrl.u32 %v2132, 7
      %v2134 = vsub.s32 0, %v2133
      %v2135 = vrot.slane %v2118, %v2134
      %v2136 = vlaneseq
      %v2137 = vshrl.u32 %v2136, 7
      %v2138 = vsub.s32 0, %v2137
      %v2139 = vrot.slane %v2119, %v2138
      %v2140 = vmul.f32 %v2127, %v2034
      %v2141 = vmul.f32 %v2131, %v2033
      %v2142 = vmul.f32 %v2135, %v2032
      %v2143 = vmul.f32 %v2139, %v2035
      %v2144 = vadd.f32 %v2019, %v2140
      %v2145 = vadd.f32 %v2020, %v2141
      %v2146 = vadd.f32 %v2021, %v2142
      %v2147 = vadd.f32 %v2022, %v2143
      %2148 = vrot.lane.b32.xlu0 %v231, 109
      %v2149 = vpop.permute.xlu0 %2148
      %2150 = vrot.lane.b32.xlu0 %v239, 109
      %v2151 = vpop.permute.xlu0 %2150
      %2152 = vrot.lane.b32.xlu0 %v232, 109
      %v2153 = vpop.permute.xlu0 %2152
      %2154 = vrot.lane.b32.xlu0 %v240, 109
      %v2155 = vpop.permute.xlu0 %2154
      %vm2156 = vcmp.lt.s32.totalorder %v252, 109
      %v2157 = vsel %vm2156, %v2153, %v2155
      %v2158 = vsel %vm2156, %v2151, %v2153
      %v2159 = vsel %vm2156, %v2149, %v2151
      %v2160 = vsel %vm2156, %v2155, %v2149
      %2161 = vrot.lane.b32.xlu0 %v233, 109
      %v2162 = vpop.permute.xlu0 %2161
      %2163 = vrot.lane.b32.xlu0 %v260, 109
      %v2164 = vpop.permute.xlu0 %2163
      %2165 = vrot.lane.b32.xlu0 %v234, 109
      %v2166 = vpop.permute.xlu0 %2165
      %2167 = vrot.lane.b32.xlu0 %v261, 109
      %v2168 = vpop.permute.xlu0 %2167
      %v2169 = vsel %vm2156, %v2166, %v2168
      %v2170 = vsel %vm2156, %v2164, %v2166
      %v2171 = vsel %vm2156, %v2162, %v2164
      %v2172 = vsel %vm2156, %v2168, %v2162
      %2173 = vrot.lane.b32.xlu0 %v280, 109
      %v2174 = vpop.permute.xlu0 %2173
      %2175 = vrot.lane.b32.xlu0 %v284, 109
      %v2176 = vpop.permute.xlu0 %2175
      %2177 = vrot.lane.b32.xlu0 %v288, 109
      %v2178 = vpop.permute.xlu0 %2177
      %2179 = vrot.lane.b32.xlu0 %v292, 109
      %v2180 = vpop.permute.xlu0 %2179
      %v2181 = vsel %vm2156, %v2178, %v2180
      %v2182 = vsel %vm2156, %v2176, %v2178
      %v2183 = vsel %vm2156, %v2174, %v2176
      %v2184 = vsel %vm2156, %v2180, %v2174
      %v2185 = vsub.f32 %v2171, %v233
      %v2186 = vsub.f32 %v2170, %v260
      %v2187 = vsub.f32 %v2169, %v234
      %v2188 = vsub.f32 %v2172, %v261
      %v2189 = vmul.f32 %v2185, %v2185
      %v2190 = vmul.f32 %v2186, %v2186
      %v2191 = vmul.f32 %v2187, %v2187
      %v2192 = vmul.f32 %v2188, %v2188
      %v2193 = vsel %vm317, %v2189, 0.0
      %v2194 = vrot.slane %v2193, 4
      %v2195 = vadd.f32 %v2193, %v2194
      %v2196 = vrot.slane %v2195, 2
      %v2197 = vadd.f32 %v2195, %v2196
      %v2198 = vrot.slane %v2197, 1
      %v2199 = vadd.f32 %v2197, %v2198
      %v2200 = vsel %vm317, %v2190, 0.0
      %v2201 = vrot.slane %v2200, 4
      %v2202 = vadd.f32 %v2200, %v2201
      %v2203 = vrot.slane %v2202, 2
      %v2204 = vadd.f32 %v2202, %v2203
      %v2205 = vrot.slane %v2204, 1
      %v2206 = vadd.f32 %v2204, %v2205
      %v2207 = vsel %vm317, %v2191, 0.0
      %v2208 = vrot.slane %v2207, 4
      %v2209 = vadd.f32 %v2207, %v2208
      %v2210 = vrot.slane %v2209, 2
      %v2211 = vadd.f32 %v2209, %v2210
      %v2212 = vrot.slane %v2211, 1
      %v2213 = vadd.f32 %v2211, %v2212
      %v2214 = vsel %vm317, %v2192, 0.0
      %v2215 = vrot.slane %v2214, 4
      %v2216 = vadd.f32 %v2214, %v2215
      %v2217 = vrot.slane %v2216, 2
      %v2218 = vadd.f32 %v2216, %v2217
      %v2219 = vrot.slane %v2218, 1
      %v2220 = vadd.f32 %v2218, %v2219
      %v2221 = vmul.f32 %v2199, -0.5
      %v2222 = vmul.f32 %v2206, -0.5
      %v2223 = vmul.f32 %v2213, -0.5
      %v2224 = vmul.f32 %v2220, -0.5
      %v2225 = vmul.f32 %v2221, 1.442695
      %v2226 = vpow.pop %v2225
      %v2227 = vmul.f32 %v2222, 1.442695
      %v2228 = vpow.pop %v2227
      %v2229 = vmul.f32 %v2223, 1.442695
      %v2230 = vpow.pop %v2229
      %v2231 = vmul.f32 %v2224, 1.442695
      %v2232 = vpow.pop %v2231
      %v2233 = vmul.f32 %v2226, 0.97260445
      %v2234 = vmul.f32 %v2228, 0.97260445
      %v2235 = vmul.f32 %v2230, 0.97260445
      %v2236 = vmul.f32 %v2232, 0.97260445
      %v2237 = vadd.f32 %v2233, 0.97260445
      %v2238 = vadd.f32 %v2234, 0.97260445
      %v2239 = vadd.f32 %v2235, 0.97260445
      %v2240 = vadd.f32 %v2236, 0.97260445
      %v2241 = vmul.f32 %v2237, %v2183
      %v2242 = vmul.f32 %v2238, %v2182
      %v2243 = vmul.f32 %v2239, %v2181
      %v2244 = vmul.f32 %v2240, %v2184
      %v2245 = vadd.f32 %v2120, %v2241
      %v2246 = vadd.f32 %v2121, %v2242
      %v2247 = vadd.f32 %v2122, %v2243
      %v2248 = vadd.f32 %v2123, %v2244
      %v2249 = vlaneseq
      %v2250 = vshrl.u32 %v2249, 7
      %v2251 = vsub.s32 0, %v2250
      %v2252 = vrot.slane %v2241, %v2251
      %v2253 = vlaneseq
      %v2254 = vshrl.u32 %v2253, 7
      %v2255 = vsub.s32 0, %v2254
      %v2256 = vrot.slane %v2242, %v2255
      %v2257 = vlaneseq
      %v2258 = vshrl.u32 %v2257, 7
      %v2259 = vsub.s32 0, %v2258
      %v2260 = vrot.slane %v2243, %v2259
      %v2261 = vlaneseq
      %v2262 = vshrl.u32 %v2261, 7
      %v2263 = vsub.s32 0, %v2262
      %v2264 = vrot.slane %v2244, %v2263
      %v2265 = vmul.f32 %v2252, %v2159
      %v2266 = vmul.f32 %v2256, %v2158
      %v2267 = vmul.f32 %v2260, %v2157
      %v2268 = vmul.f32 %v2264, %v2160
      %v2269 = vadd.f32 %v2144, %v2265
      %v2270 = vadd.f32 %v2145, %v2266
      %v2271 = vadd.f32 %v2146, %v2267
      %v2272 = vadd.f32 %v2147, %v2268
      %2273 = vrot.lane.b32.xlu0 %v231, 108
      %v2274 = vpop.permute.xlu0 %2273
      %2275 = vrot.lane.b32.xlu0 %v239, 108
      %v2276 = vpop.permute.xlu0 %2275
      %2277 = vrot.lane.b32.xlu0 %v232, 108
      %v2278 = vpop.permute.xlu0 %2277
      %2279 = vrot.lane.b32.xlu0 %v240, 108
      %v2280 = vpop.permute.xlu0 %2279
      %vm2281 = vcmp.lt.s32.totalorder %v252, 108
      %v2282 = vsel %vm2281, %v2278, %v2280
      %v2283 = vsel %vm2281, %v2276, %v2278
      %v2284 = vsel %vm2281, %v2274, %v2276
      %v2285 = vsel %vm2281, %v2280, %v2274
      %2286 = vrot.lane.b32.xlu0 %v233, 108
      %v2287 = vpop.permute.xlu0 %2286
      %2288 = vrot.lane.b32.xlu0 %v260, 108
      %v2289 = vpop.permute.xlu0 %2288
      %2290 = vrot.lane.b32.xlu0 %v234, 108
      %v2291 = vpop.permute.xlu0 %2290
      %2292 = vrot.lane.b32.xlu0 %v261, 108
      %v2293 = vpop.permute.xlu0 %2292
      %v2294 = vsel %vm2281, %v2291, %v2293
      %v2295 = vsel %vm2281, %v2289, %v2291
      %v2296 = vsel %vm2281, %v2287, %v2289
      %v2297 = vsel %vm2281, %v2293, %v2287
      %2298 = vrot.lane.b32.xlu0 %v280, 108
      %v2299 = vpop.permute.xlu0 %2298
      %2300 = vrot.lane.b32.xlu0 %v284, 108
      %v2301 = vpop.permute.xlu0 %2300
      %2302 = vrot.lane.b32.xlu0 %v288, 108
      %v2303 = vpop.permute.xlu0 %2302
      %2304 = vrot.lane.b32.xlu0 %v292, 108
      %v2305 = vpop.permute.xlu0 %2304
      %v2306 = vsel %vm2281, %v2303, %v2305
      %v2307 = vsel %vm2281, %v2301, %v2303
      %v2308 = vsel %vm2281, %v2299, %v2301
      %v2309 = vsel %vm2281, %v2305, %v2299
      %v2310 = vsub.f32 %v2296, %v233
      %v2311 = vsub.f32 %v2295, %v260
      %v2312 = vsub.f32 %v2294, %v234
      %v2313 = vsub.f32 %v2297, %v261
      %v2314 = vmul.f32 %v2310, %v2310
      %v2315 = vmul.f32 %v2311, %v2311
      %v2316 = vmul.f32 %v2312, %v2312
      %v2317 = vmul.f32 %v2313, %v2313
      %v2318 = vsel %vm317, %v2314, 0.0
      %v2319 = vrot.slane %v2318, 4
      %v2320 = vadd.f32 %v2318, %v2319
      %v2321 = vrot.slane %v2320, 2
      %v2322 = vadd.f32 %v2320, %v2321
      %v2323 = vrot.slane %v2322, 1
      %v2324 = vadd.f32 %v2322, %v2323
      %v2325 = vsel %vm317, %v2315, 0.0
      %v2326 = vrot.slane %v2325, 4
      %v2327 = vadd.f32 %v2325, %v2326
      %v2328 = vrot.slane %v2327, 2
      %v2329 = vadd.f32 %v2327, %v2328
      %v2330 = vrot.slane %v2329, 1
      %v2331 = vadd.f32 %v2329, %v2330
      %v2332 = vsel %vm317, %v2316, 0.0
      %v2333 = vrot.slane %v2332, 4
      %v2334 = vadd.f32 %v2332, %v2333
      %v2335 = vrot.slane %v2334, 2
      %v2336 = vadd.f32 %v2334, %v2335
      %v2337 = vrot.slane %v2336, 1
      %v2338 = vadd.f32 %v2336, %v2337
      %v2339 = vsel %vm317, %v2317, 0.0
      %v2340 = vrot.slane %v2339, 4
      %v2341 = vadd.f32 %v2339, %v2340
      %v2342 = vrot.slane %v2341, 2
      %v2343 = vadd.f32 %v2341, %v2342
      %v2344 = vrot.slane %v2343, 1
      %v2345 = vadd.f32 %v2343, %v2344
      %v2346 = vmul.f32 %v2324, -0.5
      %v2347 = vmul.f32 %v2331, -0.5
      %v2348 = vmul.f32 %v2338, -0.5
      %v2349 = vmul.f32 %v2345, -0.5
      %v2350 = vmul.f32 %v2346, 1.442695
      %v2351 = vpow.pop %v2350
      %v2352 = vmul.f32 %v2347, 1.442695
      %v2353 = vpow.pop %v2352
      %v2354 = vmul.f32 %v2348, 1.442695
      %v2355 = vpow.pop %v2354
      %v2356 = vmul.f32 %v2349, 1.442695
      %v2357 = vpow.pop %v2356
      %v2358 = vmul.f32 %v2351, 0.9862071
      %v2359 = vmul.f32 %v2353, 0.9862071
      %v2360 = vmul.f32 %v2355, 0.9862071
      %v2361 = vmul.f32 %v2357, 0.9862071
      %v2362 = vadd.f32 %v2358, 0.9862071
      %v2363 = vadd.f32 %v2359, 0.9862071
      %v2364 = vadd.f32 %v2360, 0.9862071
      %v2365 = vadd.f32 %v2361, 0.9862071
      %v2366 = vmul.f32 %v2362, %v2308
      %v2367 = vmul.f32 %v2363, %v2307
      %v2368 = vmul.f32 %v2364, %v2306
      %v2369 = vmul.f32 %v2365, %v2309
      %v2370 = vadd.f32 %v2245, %v2366
      %v2371 = vadd.f32 %v2246, %v2367
      %v2372 = vadd.f32 %v2247, %v2368
      %v2373 = vadd.f32 %v2248, %v2369
      %v2374 = vlaneseq
      %v2375 = vshrl.u32 %v2374, 7
      %v2376 = vsub.s32 0, %v2375
      %v2377 = vrot.slane %v2366, %v2376
      %v2378 = vlaneseq
      %v2379 = vshrl.u32 %v2378, 7
      %v2380 = vsub.s32 0, %v2379
      %v2381 = vrot.slane %v2367, %v2380
      %v2382 = vlaneseq
      %v2383 = vshrl.u32 %v2382, 7
      %v2384 = vsub.s32 0, %v2383
      %v2385 = vrot.slane %v2368, %v2384
      %v2386 = vlaneseq
      %v2387 = vshrl.u32 %v2386, 7
      %v2388 = vsub.s32 0, %v2387
      %v2389 = vrot.slane %v2369, %v2388
      %v2390 = vmul.f32 %v2377, %v2284
      %v2391 = vmul.f32 %v2381, %v2283
      %v2392 = vmul.f32 %v2385, %v2282
      %v2393 = vmul.f32 %v2389, %v2285
      %v2394 = vadd.f32 %v2269, %v2390
      %v2395 = vadd.f32 %v2270, %v2391
      %v2396 = vadd.f32 %v2271, %v2392
      %v2397 = vadd.f32 %v2272, %v2393
      %2398 = vrot.lane.b32.xlu0 %v231, 107
      %v2399 = vpop.permute.xlu0 %2398
      %2400 = vrot.lane.b32.xlu0 %v239, 107
      %v2401 = vpop.permute.xlu0 %2400
      %2402 = vrot.lane.b32.xlu0 %v232, 107
      %v2403 = vpop.permute.xlu0 %2402
      %2404 = vrot.lane.b32.xlu0 %v240, 107
      %v2405 = vpop.permute.xlu0 %2404
      %vm2406 = vcmp.lt.s32.totalorder %v252, 107
      %v2407 = vsel %vm2406, %v2403, %v2405
      %v2408 = vsel %vm2406, %v2401, %v2403
      %v2409 = vsel %vm2406, %v2399, %v2401
      %v2410 = vsel %vm2406, %v2405, %v2399
      %2411 = vrot.lane.b32.xlu0 %v233, 107
      %v2412 = vpop.permute.xlu0 %2411
      %2413 = vrot.lane.b32.xlu0 %v260, 107
      %v2414 = vpop.permute.xlu0 %2413
      %2415 = vrot.lane.b32.xlu0 %v234, 107
      %v2416 = vpop.permute.xlu0 %2415
      %2417 = vrot.lane.b32.xlu0 %v261, 107
      %v2418 = vpop.permute.xlu0 %2417
      %v2419 = vsel %vm2406, %v2416, %v2418
      %v2420 = vsel %vm2406, %v2414, %v2416
      %v2421 = vsel %vm2406, %v2412, %v2414
      %v2422 = vsel %vm2406, %v2418, %v2412
      %2423 = vrot.lane.b32.xlu0 %v280, 107
      %v2424 = vpop.permute.xlu0 %2423
      %2425 = vrot.lane.b32.xlu0 %v284, 107
      %v2426 = vpop.permute.xlu0 %2425
      %2427 = vrot.lane.b32.xlu0 %v288, 107
      %v2428 = vpop.permute.xlu0 %2427
      %2429 = vrot.lane.b32.xlu0 %v292, 107
      %v2430 = vpop.permute.xlu0 %2429
      %v2431 = vsel %vm2406, %v2428, %v2430
      %v2432 = vsel %vm2406, %v2426, %v2428
      %v2433 = vsel %vm2406, %v2424, %v2426
      %v2434 = vsel %vm2406, %v2430, %v2424
      %v2435 = vsub.f32 %v2421, %v233
      %v2436 = vsub.f32 %v2420, %v260
      %v2437 = vsub.f32 %v2419, %v234
      %v2438 = vsub.f32 %v2422, %v261
      %v2439 = vmul.f32 %v2435, %v2435
      %v2440 = vmul.f32 %v2436, %v2436
      %v2441 = vmul.f32 %v2437, %v2437
      %v2442 = vmul.f32 %v2438, %v2438
      %v2443 = vsel %vm317, %v2439, 0.0
      %v2444 = vrot.slane %v2443, 4
      %v2445 = vadd.f32 %v2443, %v2444
      %v2446 = vrot.slane %v2445, 2
      %v2447 = vadd.f32 %v2445, %v2446
      %v2448 = vrot.slane %v2447, 1
      %v2449 = vadd.f32 %v2447, %v2448
      %v2450 = vsel %vm317, %v2440, 0.0
      %v2451 = vrot.slane %v2450, 4
      %v2452 = vadd.f32 %v2450, %v2451
      %v2453 = vrot.slane %v2452, 2
      %v2454 = vadd.f32 %v2452, %v2453
      %v2455 = vrot.slane %v2454, 1
      %v2456 = vadd.f32 %v2454, %v2455
      %v2457 = vsel %vm317, %v2441, 0.0
      %v2458 = vrot.slane %v2457, 4
      %v2459 = vadd.f32 %v2457, %v2458
      %v2460 = vrot.slane %v2459, 2
      %v2461 = vadd.f32 %v2459, %v2460
      %v2462 = vrot.slane %v2461, 1
      %v2463 = vadd.f32 %v2461, %v2462
      %v2464 = vsel %vm317, %v2442, 0.0
      %v2465 = vrot.slane %v2464, 4
      %v2466 = vadd.f32 %v2464, %v2465
      %v2467 = vrot.slane %v2466, 2
      %v2468 = vadd.f32 %v2466, %v2467
      %v2469 = vrot.slane %v2468, 1
      %v2470 = vadd.f32 %v2468, %v2469
      %v2471 = vmul.f32 %v2449, -0.5
      %v2472 = vmul.f32 %v2456, -0.5
      %v2473 = vmul.f32 %v2463, -0.5
      %v2474 = vmul.f32 %v2470, -0.5
      %v2475 = vmul.f32 %v2471, 1.442695
      %v2476 = vpow.pop %v2475
      %v2477 = vmul.f32 %v2472, 1.442695
      %v2478 = vpow.pop %v2477
      %v2479 = vmul.f32 %v2473, 1.442695
      %v2480 = vpow.pop %v2479
      %v2481 = vmul.f32 %v2474, 1.442695
      %v2482 = vpow.pop %v2481
      %v2483 = vmul.f32 %v2476, 0.97260445
      %v2484 = vmul.f32 %v2478, 0.97260445
      %v2485 = vmul.f32 %v2480, 0.97260445
      %v2486 = vmul.f32 %v2482, 0.97260445
      %v2487 = vadd.f32 %v2483, 0.97260445
      %v2488 = vadd.f32 %v2484, 0.97260445
      %v2489 = vadd.f32 %v2485, 0.97260445
      %v2490 = vadd.f32 %v2486, 0.97260445
      %v2491 = vmul.f32 %v2487, %v2433
      %v2492 = vmul.f32 %v2488, %v2432
      %v2493 = vmul.f32 %v2489, %v2431
      %v2494 = vmul.f32 %v2490, %v2434
      %v2495 = vadd.f32 %v2370, %v2491
      %v2496 = vadd.f32 %v2371, %v2492
      %v2497 = vadd.f32 %v2372, %v2493
      %v2498 = vadd.f32 %v2373, %v2494
      %v2499 = vlaneseq
      %v2500 = vshrl.u32 %v2499, 7
      %v2501 = vsub.s32 0, %v2500
      %v2502 = vrot.slane %v2491, %v2501
      %v2503 = vlaneseq
      %v2504 = vshrl.u32 %v2503, 7
      %v2505 = vsub.s32 0, %v2504
      %v2506 = vrot.slane %v2492, %v2505
      %v2507 = vlaneseq
      %v2508 = vshrl.u32 %v2507, 7
      %v2509 = vsub.s32 0, %v2508
      %v2510 = vrot.slane %v2493, %v2509
      %v2511 = vlaneseq
      %v2512 = vshrl.u32 %v2511, 7
      %v2513 = vsub.s32 0, %v2512
      %v2514 = vrot.slane %v2494, %v2513
      %v2515 = vmul.f32 %v2502, %v2409
      %v2516 = vmul.f32 %v2506, %v2408
      %v2517 = vmul.f32 %v2510, %v2407
      %v2518 = vmul.f32 %v2514, %v2410
      %v2519 = vadd.f32 %v2394, %v2515
      %v2520 = vadd.f32 %v2395, %v2516
      %v2521 = vadd.f32 %v2396, %v2517
      %v2522 = vadd.f32 %v2397, %v2518
      %2523 = vrot.lane.b32.xlu0 %v231, 106
      %v2524 = vpop.permute.xlu0 %2523
      %2525 = vrot.lane.b32.xlu0 %v239, 106
      %v2526 = vpop.permute.xlu0 %2525
      %2527 = vrot.lane.b32.xlu0 %v232, 106
      %v2528 = vpop.permute.xlu0 %2527
      %2529 = vrot.lane.b32.xlu0 %v240, 106
      %v2530 = vpop.permute.xlu0 %2529
      %vm2531 = vcmp.lt.s32.totalorder %v252, 106
      %v2532 = vsel %vm2531, %v2528, %v2530
      %v2533 = vsel %vm2531, %v2526, %v2528
      %v2534 = vsel %vm2531, %v2524, %v2526
      %v2535 = vsel %vm2531, %v2530, %v2524
      %2536 = vrot.lane.b32.xlu0 %v233, 106
      %v2537 = vpop.permute.xlu0 %2536
      %2538 = vrot.lane.b32.xlu0 %v260, 106
      %v2539 = vpop.permute.xlu0 %2538
      %2540 = vrot.lane.b32.xlu0 %v234, 106
      %v2541 = vpop.permute.xlu0 %2540
      %2542 = vrot.lane.b32.xlu0 %v261, 106
      %v2543 = vpop.permute.xlu0 %2542
      %v2544 = vsel %vm2531, %v2541, %v2543
      %v2545 = vsel %vm2531, %v2539, %v2541
      %v2546 = vsel %vm2531, %v2537, %v2539
      %v2547 = vsel %vm2531, %v2543, %v2537
      %2548 = vrot.lane.b32.xlu0 %v280, 106
      %v2549 = vpop.permute.xlu0 %2548
      %2550 = vrot.lane.b32.xlu0 %v284, 106
      %v2551 = vpop.permute.xlu0 %2550
      %2552 = vrot.lane.b32.xlu0 %v288, 106
      %v2553 = vpop.permute.xlu0 %2552
      %2554 = vrot.lane.b32.xlu0 %v292, 106
      %v2555 = vpop.permute.xlu0 %2554
      %v2556 = vsel %vm2531, %v2553, %v2555
      %v2557 = vsel %vm2531, %v2551, %v2553
      %v2558 = vsel %vm2531, %v2549, %v2551
      %v2559 = vsel %vm2531, %v2555, %v2549
      %v2560 = vsub.f32 %v2546, %v233
      %v2561 = vsub.f32 %v2545, %v260
      %v2562 = vsub.f32 %v2544, %v234
      %v2563 = vsub.f32 %v2547, %v261
      %v2564 = vmul.f32 %v2560, %v2560
      %v2565 = vmul.f32 %v2561, %v2561
      %v2566 = vmul.f32 %v2562, %v2562
      %v2567 = vmul.f32 %v2563, %v2563
      %v2568 = vsel %vm317, %v2564, 0.0
      %v2569 = vrot.slane %v2568, 4
      %v2570 = vadd.f32 %v2568, %v2569
      %v2571 = vrot.slane %v2570, 2
      %v2572 = vadd.f32 %v2570, %v2571
      %v2573 = vrot.slane %v2572, 1
      %v2574 = vadd.f32 %v2572, %v2573
      %v2575 = vsel %vm317, %v2565, 0.0
      %v2576 = vrot.slane %v2575, 4
      %v2577 = vadd.f32 %v2575, %v2576
      %v2578 = vrot.slane %v2577, 2
      %v2579 = vadd.f32 %v2577, %v2578
      %v2580 = vrot.slane %v2579, 1
      %v2581 = vadd.f32 %v2579, %v2580
      %v2582 = vsel %vm317, %v2566, 0.0
      %v2583 = vrot.slane %v2582, 4
      %v2584 = vadd.f32 %v2582, %v2583
      %v2585 = vrot.slane %v2584, 2
      %v2586 = vadd.f32 %v2584, %v2585
      %v2587 = vrot.slane %v2586, 1
      %v2588 = vadd.f32 %v2586, %v2587
      %v2589 = vsel %vm317, %v2567, 0.0
      %v2590 = vrot.slane %v2589, 4
      %v2591 = vadd.f32 %v2589, %v2590
      %v2592 = vrot.slane %v2591, 2
      %v2593 = vadd.f32 %v2591, %v2592
      %v2594 = vrot.slane %v2593, 1
      %v2595 = vadd.f32 %v2593, %v2594
      %v2596 = vmul.f32 %v2574, -0.5
      %v2597 = vmul.f32 %v2581, -0.5
      %v2598 = vmul.f32 %v2588, -0.5
      %v2599 = vmul.f32 %v2595, -0.5
      %v2600 = vmul.f32 %v2596, 1.442695
      %v2601 = vpow.pop %v2600
      %v2602 = vmul.f32 %v2597, 1.442695
      %v2603 = vpow.pop %v2602
      %v2604 = vmul.f32 %v2598, 1.442695
      %v2605 = vpow.pop %v2604
      %v2606 = vmul.f32 %v2599, 1.442695
      %v2607 = vpow.pop %v2606
      %v2608 = vmul.f32 %v2601, 0.93291193
      %v2609 = vmul.f32 %v2603, 0.93291193
      %v2610 = vmul.f32 %v2605, 0.93291193
      %v2611 = vmul.f32 %v2607, 0.93291193
      %v2612 = vadd.f32 %v2608, 0.93291193
      %v2613 = vadd.f32 %v2609, 0.93291193
      %v2614 = vadd.f32 %v2610, 0.93291193
      %v2615 = vadd.f32 %v2611, 0.93291193
      %v2616 = vmul.f32 %v2612, %v2558
      %v2617 = vmul.f32 %v2613, %v2557
      %v2618 = vmul.f32 %v2614, %v2556
      %v2619 = vmul.f32 %v2615, %v2559
      %v2620 = vadd.f32 %v2495, %v2616
      %v2621 = vadd.f32 %v2496, %v2617
      %v2622 = vadd.f32 %v2497, %v2618
      %v2623 = vadd.f32 %v2498, %v2619
      %v2624 = vlaneseq
      %v2625 = vshrl.u32 %v2624, 7
      %v2626 = vsub.s32 0, %v2625
      %v2627 = vrot.slane %v2616, %v2626
      %v2628 = vlaneseq
      %v2629 = vshrl.u32 %v2628, 7
      %v2630 = vsub.s32 0, %v2629
      %v2631 = vrot.slane %v2617, %v2630
      %v2632 = vlaneseq
      %v2633 = vshrl.u32 %v2632, 7
      %v2634 = vsub.s32 0, %v2633
      %v2635 = vrot.slane %v2618, %v2634
      %v2636 = vlaneseq
      %v2637 = vshrl.u32 %v2636, 7
      %v2638 = vsub.s32 0, %v2637
      %v2639 = vrot.slane %v2619, %v2638
      %v2640 = vmul.f32 %v2627, %v2534
      %v2641 = vmul.f32 %v2631, %v2533
      %v2642 = vmul.f32 %v2635, %v2532
      %v2643 = vmul.f32 %v2639, %v2535
      %v2644 = vadd.f32 %v2519, %v2640
      %v2645 = vadd.f32 %v2520, %v2641
      %v2646 = vadd.f32 %v2521, %v2642
      %v2647 = vadd.f32 %v2522, %v2643
      %2648 = vrot.lane.b32.xlu0 %v231, 90
      %v2649 = vpop.permute.xlu0 %2648
      %2650 = vrot.lane.b32.xlu0 %v239, 90
      %v2651 = vpop.permute.xlu0 %2650
      %2652 = vrot.lane.b32.xlu0 %v232, 90
      %v2653 = vpop.permute.xlu0 %2652
      %2654 = vrot.lane.b32.xlu0 %v240, 90
      %v2655 = vpop.permute.xlu0 %2654
      %vm2656 = vcmp.lt.s32.totalorder %v252, 90
      %v2657 = vsel %vm2656, %v2653, %v2655
      %v2658 = vsel %vm2656, %v2651, %v2653
      %v2659 = vsel %vm2656, %v2649, %v2651
      %v2660 = vsel %vm2656, %v2655, %v2649
      %2661 = vrot.lane.b32.xlu0 %v233, 90
      %v2662 = vpop.permute.xlu0 %2661
      %2663 = vrot.lane.b32.xlu0 %v260, 90
      %v2664 = vpop.permute.xlu0 %2663
      %2665 = vrot.lane.b32.xlu0 %v234, 90
      %v2666 = vpop.permute.xlu0 %2665
      %2667 = vrot.lane.b32.xlu0 %v261, 90
      %v2668 = vpop.permute.xlu0 %2667
      %v2669 = vsel %vm2656, %v2666, %v2668
      %v2670 = vsel %vm2656, %v2664, %v2666
      %v2671 = vsel %vm2656, %v2662, %v2664
      %v2672 = vsel %vm2656, %v2668, %v2662
      %2673 = vrot.lane.b32.xlu0 %v280, 90
      %v2674 = vpop.permute.xlu0 %2673
      %2675 = vrot.lane.b32.xlu0 %v284, 90
      %v2676 = vpop.permute.xlu0 %2675
      %2677 = vrot.lane.b32.xlu0 %v288, 90
      %v2678 = vpop.permute.xlu0 %2677
      %2679 = vrot.lane.b32.xlu0 %v292, 90
      %v2680 = vpop.permute.xlu0 %2679
      %v2681 = vsel %vm2656, %v2678, %v2680
      %v2682 = vsel %vm2656, %v2676, %v2678
      %v2683 = vsel %vm2656, %v2674, %v2676
      %v2684 = vsel %vm2656, %v2680, %v2674
      %v2685 = vsub.f32 %v2671, %v233
      %v2686 = vsub.f32 %v2670, %v260
      %v2687 = vsub.f32 %v2669, %v234
      %v2688 = vsub.f32 %v2672, %v261
      %v2689 = vmul.f32 %v2685, %v2685
      %v2690 = vmul.f32 %v2686, %v2686
      %v2691 = vmul.f32 %v2687, %v2687
      %v2692 = vmul.f32 %v2688, %v2688
      %v2693 = vsel %vm317, %v2689, 0.0
      %v2694 = vrot.slane %v2693, 4
      %v2695 = vadd.f32 %v2693, %v2694
      %v2696 = vrot.slane %v2695, 2
      %v2697 = vadd.f32 %v2695, %v2696
      %v2698 = vrot.slane %v2697, 1
      %v2699 = vadd.f32 %v2697, %v2698
      %v2700 = vsel %vm317, %v2690, 0.0
      %v2701 = vrot.slane %v2700, 4
      %v2702 = vadd.f32 %v2700, %v2701
      %v2703 = vrot.slane %v2702, 2
      %v2704 = vadd.f32 %v2702, %v2703
      %v2705 = vrot.slane %v2704, 1
      %v2706 = vadd.f32 %v2704, %v2705
      %v2707 = vsel %vm317, %v2691, 0.0
      %v2708 = vrot.slane %v2707, 4
      %v2709 = vadd.f32 %v2707, %v2708
      %v2710 = vrot.slane %v2709, 2
      %v2711 = vadd.f32 %v2709, %v2710
      %v2712 = vrot.slane %v2711, 1
      %v2713 = vadd.f32 %v2711, %v2712
      %v2714 = vsel %vm317, %v2692, 0.0
      %v2715 = vrot.slane %v2714, 4
      %v2716 = vadd.f32 %v2714, %v2715
      %v2717 = vrot.slane %v2716, 2
      %v2718 = vadd.f32 %v2716, %v2717
      %v2719 = vrot.slane %v2718, 1
      %v2720 = vadd.f32 %v2718, %v2719
      %v2721 = vmul.f32 %v2699, -0.5
      %v2722 = vmul.f32 %v2706, -0.5
      %v2723 = vmul.f32 %v2713, -0.5
      %v2724 = vmul.f32 %v2720, -0.5
      %v2725 = vmul.f32 %v2721, 1.442695
      %v2726 = vpow.pop %v2725
      %v2727 = vmul.f32 %v2722, 1.442695
      %v2728 = vpow.pop %v2727
      %v2729 = vmul.f32 %v2723, 1.442695
      %v2730 = vpow.pop %v2729
      %v2731 = vmul.f32 %v2724, 1.442695
      %v2732 = vpow.pop %v2731
      %v2733 = vmul.f32 %v2726, 0.89483935
      %v2734 = vmul.f32 %v2728, 0.89483935
      %v2735 = vmul.f32 %v2730, 0.89483935
      %v2736 = vmul.f32 %v2732, 0.89483935
      %v2737 = vadd.f32 %v2733, 0.89483935
      %v2738 = vadd.f32 %v2734, 0.89483935
      %v2739 = vadd.f32 %v2735, 0.89483935
      %v2740 = vadd.f32 %v2736, 0.89483935
      %v2741 = vmul.f32 %v2737, %v2683
      %v2742 = vmul.f32 %v2738, %v2682
      %v2743 = vmul.f32 %v2739, %v2681
      %v2744 = vmul.f32 %v2740, %v2684
      %v2745 = vadd.f32 %v2620, %v2741
      %v2746 = vadd.f32 %v2621, %v2742
      %v2747 = vadd.f32 %v2622, %v2743
      %v2748 = vadd.f32 %v2623, %v2744
      %v2749 = vlaneseq
      %v2750 = vshrl.u32 %v2749, 7
      %v2751 = vsub.s32 0, %v2750
      %v2752 = vrot.slane %v2741, %v2751
      %v2753 = vlaneseq
      %v2754 = vshrl.u32 %v2753, 7
      %v2755 = vsub.s32 0, %v2754
      %v2756 = vrot.slane %v2742, %v2755
      %v2757 = vlaneseq
      %v2758 = vshrl.u32 %v2757, 7
      %v2759 = vsub.s32 0, %v2758
      %v2760 = vrot.slane %v2743, %v2759
      %v2761 = vlaneseq
      %v2762 = vshrl.u32 %v2761, 7
      %v2763 = vsub.s32 0, %v2762
      %v2764 = vrot.slane %v2744, %v2763
      %v2765 = vmul.f32 %v2752, %v2659
      %v2766 = vmul.f32 %v2756, %v2658
      %v2767 = vmul.f32 %v2760, %v2657
      %v2768 = vmul.f32 %v2764, %v2660
      %v2769 = vadd.f32 %v2644, %v2765
      %v2770 = vadd.f32 %v2645, %v2766
      %v2771 = vadd.f32 %v2646, %v2767
      %v2772 = vadd.f32 %v2647, %v2768
      %2773 = vrot.lane.b32.xlu0 %v231, 89
      %v2774 = vpop.permute.xlu0 %2773
      %2775 = vrot.lane.b32.xlu0 %v239, 89
      %v2776 = vpop.permute.xlu0 %2775
      %2777 = vrot.lane.b32.xlu0 %v232, 89
      %v2778 = vpop.permute.xlu0 %2777
      %2779 = vrot.lane.b32.xlu0 %v240, 89
      %v2780 = vpop.permute.xlu0 %2779
      %vm2781 = vcmp.lt.s32.totalorder %v252, 89
      %v2782 = vsel %vm2781, %v2778, %v2780
      %v2783 = vsel %vm2781, %v2776, %v2778
      %v2784 = vsel %vm2781, %v2774, %v2776
      %v2785 = vsel %vm2781, %v2780, %v2774
      %2786 = vrot.lane.b32.xlu0 %v233, 89
      %v2787 = vpop.permute.xlu0 %2786
      %2788 = vrot.lane.b32.xlu0 %v260, 89
      %v2789 = vpop.permute.xlu0 %2788
      %2790 = vrot.lane.b32.xlu0 %v234, 89
      %v2791 = vpop.permute.xlu0 %2790
      %2792 = vrot.lane.b32.xlu0 %v261, 89
      %v2793 = vpop.permute.xlu0 %2792
      %v2794 = vsel %vm2781, %v2791, %v2793
      %v2795 = vsel %vm2781, %v2789, %v2791
      %v2796 = vsel %vm2781, %v2787, %v2789
      %v2797 = vsel %vm2781, %v2793, %v2787
      %2798 = vrot.lane.b32.xlu0 %v280, 89
      %v2799 = vpop.permute.xlu0 %2798
      %2800 = vrot.lane.b32.xlu0 %v284, 89
      %v2801 = vpop.permute.xlu0 %2800
      %2802 = vrot.lane.b32.xlu0 %v288, 89
      %v2803 = vpop.permute.xlu0 %2802
      %2804 = vrot.lane.b32.xlu0 %v292, 89
      %v2805 = vpop.permute.xlu0 %2804
      %v2806 = vsel %vm2781, %v2803, %v2805
      %v2807 = vsel %vm2781, %v2801, %v2803
      %v2808 = vsel %vm2781, %v2799, %v2801
      %v2809 = vsel %vm2781, %v2805, %v2799
      %v2810 = vsub.f32 %v2796, %v233
      %v2811 = vsub.f32 %v2795, %v260
      %v2812 = vsub.f32 %v2794, %v234
      %v2813 = vsub.f32 %v2797, %v261
      %v2814 = vmul.f32 %v2810, %v2810
      %v2815 = vmul.f32 %v2811, %v2811
      %v2816 = vmul.f32 %v2812, %v2812
      %v2817 = vmul.f32 %v2813, %v2813
      %v2818 = vsel %vm317, %v2814, 0.0
      %v2819 = vrot.slane %v2818, 4
      %v2820 = vadd.f32 %v2818, %v2819
      %v2821 = vrot.slane %v2820, 2
      %v2822 = vadd.f32 %v2820, %v2821
      %v2823 = vrot.slane %v2822, 1
      %v2824 = vadd.f32 %v2822, %v2823
      %v2825 = vsel %vm317, %v2815, 0.0
      %v2826 = vrot.slane %v2825, 4
      %v2827 = vadd.f32 %v2825, %v2826
      %v2828 = vrot.slane %v2827, 2
      %v2829 = vadd.f32 %v2827, %v2828
      %v2830 = vrot.slane %v2829, 1
      %v2831 = vadd.f32 %v2829, %v2830
      %v2832 = vsel %vm317, %v2816, 0.0
      %v2833 = vrot.slane %v2832, 4
      %v2834 = vadd.f32 %v2832, %v2833
      %v2835 = vrot.slane %v2834, 2
      %v2836 = vadd.f32 %v2834, %v2835
      %v2837 = vrot.slane %v2836, 1
      %v2838 = vadd.f32 %v2836, %v2837
      %v2839 = vsel %vm317, %v2817, 0.0
      %v2840 = vrot.slane %v2839, 4
      %v2841 = vadd.f32 %v2839, %v2840
      %v2842 = vrot.slane %v2841, 2
      %v2843 = vadd.f32 %v2841, %v2842
      %v2844 = vrot.slane %v2843, 1
      %v2845 = vadd.f32 %v2843, %v2844
      %v2846 = vmul.f32 %v2824, -0.5
      %v2847 = vmul.f32 %v2831, -0.5
      %v2848 = vmul.f32 %v2838, -0.5
      %v2849 = vmul.f32 %v2845, -0.5
      %v2850 = vmul.f32 %v2846, 1.442695
      %v2851 = vpow.pop %v2850
      %v2852 = vmul.f32 %v2847, 1.442695
      %v2853 = vpow.pop %v2852
      %v2854 = vmul.f32 %v2848, 1.442695
      %v2855 = vpow.pop %v2854
      %v2856 = vmul.f32 %v2849, 1.442695
      %v2857 = vpow.pop %v2856
      %v2858 = vmul.f32 %v2851, 0.93291193
      %v2859 = vmul.f32 %v2853, 0.93291193
      %v2860 = vmul.f32 %v2855, 0.93291193
      %v2861 = vmul.f32 %v2857, 0.93291193
      %v2862 = vadd.f32 %v2858, 0.93291193
      %v2863 = vadd.f32 %v2859, 0.93291193
      %v2864 = vadd.f32 %v2860, 0.93291193
      %v2865 = vadd.f32 %v2861, 0.93291193
      %v2866 = vmul.f32 %v2862, %v2808
      %v2867 = vmul.f32 %v2863, %v2807
      %v2868 = vmul.f32 %v2864, %v2806
      %v2869 = vmul.f32 %v2865, %v2809
      %v2870 = vadd.f32 %v2745, %v2866
      %v2871 = vadd.f32 %v2746, %v2867
      %v2872 = vadd.f32 %v2747, %v2868
      %v2873 = vadd.f32 %v2748, %v2869
      %v2874 = vlaneseq
      %v2875 = vshrl.u32 %v2874, 7
      %v2876 = vsub.s32 0, %v2875
      %v2877 = vrot.slane %v2866, %v2876
      %v2878 = vlaneseq
      %v2879 = vshrl.u32 %v2878, 7
      %v2880 = vsub.s32 0, %v2879
      %v2881 = vrot.slane %v2867, %v2880
      %v2882 = vlaneseq
      %v2883 = vshrl.u32 %v2882, 7
      %v2884 = vsub.s32 0, %v2883
      %v2885 = vrot.slane %v2868, %v2884
      %v2886 = vlaneseq
      %v2887 = vshrl.u32 %v2886, 7
      %v2888 = vsub.s32 0, %v2887
      %v2889 = vrot.slane %v2869, %v2888
      %v2890 = vmul.f32 %v2877, %v2784
      %v2891 = vmul.f32 %v2881, %v2783
      %v2892 = vmul.f32 %v2885, %v2782
      %v2893 = vmul.f32 %v2889, %v2785
      %v2894 = vadd.f32 %v2769, %v2890
      %v2895 = vadd.f32 %v2770, %v2891
      %v2896 = vadd.f32 %v2771, %v2892
      %v2897 = vadd.f32 %v2772, %v2893
      %2898 = vrot.lane.b32.xlu0 %v231, 88
      %v2899 = vpop.permute.xlu0 %2898
      %2900 = vrot.lane.b32.xlu0 %v239, 88
      %v2901 = vpop.permute.xlu0 %2900
      %2902 = vrot.lane.b32.xlu0 %v232, 88
      %v2903 = vpop.permute.xlu0 %2902
      %2904 = vrot.lane.b32.xlu0 %v240, 88
      %v2905 = vpop.permute.xlu0 %2904
      %vm2906 = vcmp.lt.s32.totalorder %v252, 88
      %v2907 = vsel %vm2906, %v2903, %v2905
      %v2908 = vsel %vm2906, %v2901, %v2903
      %v2909 = vsel %vm2906, %v2899, %v2901
      %v2910 = vsel %vm2906, %v2905, %v2899
      %2911 = vrot.lane.b32.xlu0 %v233, 88
      %v2912 = vpop.permute.xlu0 %2911
      %2913 = vrot.lane.b32.xlu0 %v260, 88
      %v2914 = vpop.permute.xlu0 %2913
      %2915 = vrot.lane.b32.xlu0 %v234, 88
      %v2916 = vpop.permute.xlu0 %2915
      %2917 = vrot.lane.b32.xlu0 %v261, 88
      %v2918 = vpop.permute.xlu0 %2917
      %v2919 = vsel %vm2906, %v2916, %v2918
      %v2920 = vsel %vm2906, %v2914, %v2916
      %v2921 = vsel %vm2906, %v2912, %v2914
      %v2922 = vsel %vm2906, %v2918, %v2912
      %2923 = vrot.lane.b32.xlu0 %v280, 88
      %v2924 = vpop.permute.xlu0 %2923
      %2925 = vrot.lane.b32.xlu0 %v284, 88
      %v2926 = vpop.permute.xlu0 %2925
      %2927 = vrot.lane.b32.xlu0 %v288, 88
      %v2928 = vpop.permute.xlu0 %2927
      %2929 = vrot.lane.b32.xlu0 %v292, 88
      %v2930 = vpop.permute.xlu0 %2929
      %v2931 = vsel %vm2906, %v2928, %v2930
      %v2932 = vsel %vm2906, %v2926, %v2928
      %v2933 = vsel %vm2906, %v2924, %v2926
      %v2934 = vsel %vm2906, %v2930, %v2924
      %v2935 = vsub.f32 %v2921, %v233
      %v2936 = vsub.f32 %v2920, %v260
      %v2937 = vsub.f32 %v2919, %v234
      %v2938 = vsub.f32 %v2922, %v261
      %v2939 = vmul.f32 %v2935, %v2935
      %v2940 = vmul.f32 %v2936, %v2936
      %v2941 = vmul.f32 %v2937, %v2937
      %v2942 = vmul.f32 %v2938, %v2938
      %v2943 = vsel %vm317, %v2939, 0.0
      %v2944 = vrot.slane %v2943, 4
      %v2945 = vadd.f32 %v2943, %v2944
      %v2946 = vrot.slane %v2945, 2
      %v2947 = vadd.f32 %v2945, %v2946
      %v2948 = vrot.slane %v2947, 1
      %v2949 = vadd.f32 %v2947, %v2948
      %v2950 = vsel %vm317, %v2940, 0.0
      %v2951 = vrot.slane %v2950, 4
      %v2952 = vadd.f32 %v2950, %v2951
      %v2953 = vrot.slane %v2952, 2
      %v2954 = vadd.f32 %v2952, %v2953
      %v2955 = vrot.slane %v2954, 1
      %v2956 = vadd.f32 %v2954, %v2955
      %v2957 = vsel %vm317, %v2941, 0.0
      %v2958 = vrot.slane %v2957, 4
      %v2959 = vadd.f32 %v2957, %v2958
      %v2960 = vrot.slane %v2959, 2
      %v2961 = vadd.f32 %v2959, %v2960
      %v2962 = vrot.slane %v2961, 1
      %v2963 = vadd.f32 %v2961, %v2962
      %v2964 = vsel %vm317, %v2942, 0.0
      %v2965 = vrot.slane %v2964, 4
      %v2966 = vadd.f32 %v2964, %v2965
      %v2967 = vrot.slane %v2966, 2
      %v2968 = vadd.f32 %v2966, %v2967
      %v2969 = vrot.slane %v2968, 1
      %v2970 = vadd.f32 %v2968, %v2969
      %v2971 = vmul.f32 %v2949, -0.5
      %v2972 = vmul.f32 %v2956, -0.5
      %v2973 = vmul.f32 %v2963, -0.5
      %v2974 = vmul.f32 %v2970, -0.5
      %v2975 = vmul.f32 %v2971, 1.442695
      %v2976 = vpow.pop %v2975
      %v2977 = vmul.f32 %v2972, 1.442695
      %v2978 = vpow.pop %v2977
      %v2979 = vmul.f32 %v2973, 1.442695
      %v2980 = vpow.pop %v2979
      %v2981 = vmul.f32 %v2974, 1.442695
      %v2982 = vpow.pop %v2981
      %v2983 = vmul.f32 %v2976, 0.94595945
      %v2984 = vmul.f32 %v2978, 0.94595945
      %v2985 = vmul.f32 %v2980, 0.94595945
      %v2986 = vmul.f32 %v2982, 0.94595945
      %v2987 = vadd.f32 %v2983, 0.94595945
      %v2988 = vadd.f32 %v2984, 0.94595945
      %v2989 = vadd.f32 %v2985, 0.94595945
      %v2990 = vadd.f32 %v2986, 0.94595945
      %v2991 = vmul.f32 %v2987, %v2933
      %v2992 = vmul.f32 %v2988, %v2932
      %v2993 = vmul.f32 %v2989, %v2931
      %v2994 = vmul.f32 %v2990, %v2934
      %v2995 = vadd.f32 %v2870, %v2991
      %v2996 = vadd.f32 %v2871, %v2992
      %v2997 = vadd.f32 %v2872, %v2993
      %v2998 = vadd.f32 %v2873, %v2994
      %v2999 = vlaneseq
      %v3000 = vshrl.u32 %v2999, 7
      %v3001 = vsub.s32 0, %v3000
      %v3002 = vrot.slane %v2991, %v3001
      %v3003 = vlaneseq
      %v3004 = vshrl.u32 %v3003, 7
      %v3005 = vsub.s32 0, %v3004
      %v3006 = vrot.slane %v2992, %v3005
      %v3007 = vlaneseq
      %v3008 = vshrl.u32 %v3007, 7
      %v3009 = vsub.s32 0, %v3008
      %v3010 = vrot.slane %v2993, %v3009
      %v3011 = vlaneseq
      %v3012 = vshrl.u32 %v3011, 7
      %v3013 = vsub.s32 0, %v3012
      %v3014 = vrot.slane %v2994, %v3013
      %v3015 = vmul.f32 %v3002, %v2909
      %v3016 = vmul.f32 %v3006, %v2908
      %v3017 = vmul.f32 %v3010, %v2907
      %v3018 = vmul.f32 %v3014, %v2910
      %v3019 = vadd.f32 %v2894, %v3015
      %v3020 = vadd.f32 %v2895, %v3016
      %v3021 = vadd.f32 %v2896, %v3017
      %v3022 = vadd.f32 %v2897, %v3018
      %3023 = vrot.lane.b32.xlu0 %v231, 87
      %v3024 = vpop.permute.xlu0 %3023
      %3025 = vrot.lane.b32.xlu0 %v239, 87
      %v3026 = vpop.permute.xlu0 %3025
      %3027 = vrot.lane.b32.xlu0 %v232, 87
      %v3028 = vpop.permute.xlu0 %3027
      %3029 = vrot.lane.b32.xlu0 %v240, 87
      %v3030 = vpop.permute.xlu0 %3029
      %vm3031 = vcmp.lt.s32.totalorder %v252, 87
      %v3032 = vsel %vm3031, %v3028, %v3030
      %v3033 = vsel %vm3031, %v3026, %v3028
      %v3034 = vsel %vm3031, %v3024, %v3026
      %v3035 = vsel %vm3031, %v3030, %v3024
      %3036 = vrot.lane.b32.xlu0 %v233, 87
      %v3037 = vpop.permute.xlu0 %3036
      %3038 = vrot.lane.b32.xlu0 %v260, 87
      %v3039 = vpop.permute.xlu0 %3038
      %3040 = vrot.lane.b32.xlu0 %v234, 87
      %v3041 = vpop.permute.xlu0 %3040
      %3042 = vrot.lane.b32.xlu0 %v261, 87
      %v3043 = vpop.permute.xlu0 %3042
      %v3044 = vsel %vm3031, %v3041, %v3043
      %v3045 = vsel %vm3031, %v3039, %v3041
      %v3046 = vsel %vm3031, %v3037, %v3039
      %v3047 = vsel %vm3031, %v3043, %v3037
      %3048 = vrot.lane.b32.xlu0 %v280, 87
      %v3049 = vpop.permute.xlu0 %3048
      %3050 = vrot.lane.b32.xlu0 %v284, 87
      %v3051 = vpop.permute.xlu0 %3050
      %3052 = vrot.lane.b32.xlu0 %v288, 87
      %v3053 = vpop.permute.xlu0 %3052
      %3054 = vrot.lane.b32.xlu0 %v292, 87
      %v3055 = vpop.permute.xlu0 %3054
      %v3056 = vsel %vm3031, %v3053, %v3055
      %v3057 = vsel %vm3031, %v3051, %v3053
      %v3058 = vsel %vm3031, %v3049, %v3051
      %v3059 = vsel %vm3031, %v3055, %v3049
      %v3060 = vsub.f32 %v3046, %v233
      %v3061 = vsub.f32 %v3045, %v260
      %v3062 = vsub.f32 %v3044, %v234
      %v3063 = vsub.f32 %v3047, %v261
      %v3064 = vmul.f32 %v3060, %v3060
      %v3065 = vmul.f32 %v3061, %v3061
      %v3066 = vmul.f32 %v3062, %v3062
      %v3067 = vmul.f32 %v3063, %v3063
      %v3068 = vsel %vm317, %v3064, 0.0
      %v3069 = vrot.slane %v3068, 4
      %v3070 = vadd.f32 %v3068, %v3069
      %v3071 = vrot.slane %v3070, 2
      %v3072 = vadd.f32 %v3070, %v3071
      %v3073 = vrot.slane %v3072, 1
      %v3074 = vadd.f32 %v3072, %v3073
      %v3075 = vsel %vm317, %v3065, 0.0
      %v3076 = vrot.slane %v3075, 4
      %v3077 = vadd.f32 %v3075, %v3076
      %v3078 = vrot.slane %v3077, 2
      %v3079 = vadd.f32 %v3077, %v3078
      %v3080 = vrot.slane %v3079, 1
      %v3081 = vadd.f32 %v3079, %v3080
      %v3082 = vsel %vm317, %v3066, 0.0
      %v3083 = vrot.slane %v3082, 4
      %v3084 = vadd.f32 %v3082, %v3083
      %v3085 = vrot.slane %v3084, 2
      %v3086 = vadd.f32 %v3084, %v3085
      %v3087 = vrot.slane %v3086, 1
      %v3088 = vadd.f32 %v3086, %v3087
      %v3089 = vsel %vm317, %v3067, 0.0
      %v3090 = vrot.slane %v3089, 4
      %v3091 = vadd.f32 %v3089, %v3090
      %v3092 = vrot.slane %v3091, 2
      %v3093 = vadd.f32 %v3091, %v3092
      %v3094 = vrot.slane %v3093, 1
      %v3095 = vadd.f32 %v3093, %v3094
      %v3096 = vmul.f32 %v3074, -0.5
      %v3097 = vmul.f32 %v3081, -0.5
      %v3098 = vmul.f32 %v3088, -0.5
      %v3099 = vmul.f32 %v3095, -0.5
      %v3100 = vmul.f32 %v3096, 1.442695
      %v3101 = vpow.pop %v3100
      %v3102 = vmul.f32 %v3097, 1.442695
      %v3103 = vpow.pop %v3102
      %v3104 = vmul.f32 %v3098, 1.442695
      %v3105 = vpow.pop %v3104
      %v3106 = vmul.f32 %v3099, 1.442695
      %v3107 = vpow.pop %v3106
      %v3108 = vmul.f32 %v3101, 0.93291193
      %v3109 = vmul.f32 %v3103, 0.93291193
      %v3110 = vmul.f32 %v3105, 0.93291193
      %v3111 = vmul.f32 %v3107, 0.93291193
      %v3112 = vadd.f32 %v3108, 0.93291193
      %v3113 = vadd.f32 %v3109, 0.93291193
      %v3114 = vadd.f32 %v3110, 0.93291193
      %v3115 = vadd.f32 %v3111, 0.93291193
      %v3116 = vmul.f32 %v3112, %v3058
      %v3117 = vmul.f32 %v3113, %v3057
      %v3118 = vmul.f32 %v3114, %v3056
      %v3119 = vmul.f32 %v3115, %v3059
      %v3120 = vadd.f32 %v2995, %v3116
      %v3121 = vadd.f32 %v2996, %v3117
      %v3122 = vadd.f32 %v2997, %v3118
      %v3123 = vadd.f32 %v2998, %v3119
      %v3124 = vlaneseq
      %v3125 = vshrl.u32 %v3124, 7
      %v3126 = vsub.s32 0, %v3125
      %v3127 = vrot.slane %v3116, %v3126
      %v3128 = vlaneseq
      %v3129 = vshrl.u32 %v3128, 7
      %v3130 = vsub.s32 0, %v3129
      %v3131 = vrot.slane %v3117, %v3130
      %v3132 = vlaneseq
      %v3133 = vshrl.u32 %v3132, 7
      %v3134 = vsub.s32 0, %v3133
      %v3135 = vrot.slane %v3118, %v3134
      %v3136 = vlaneseq
      %v3137 = vshrl.u32 %v3136, 7
      %v3138 = vsub.s32 0, %v3137
      %v3139 = vrot.slane %v3119, %v3138
      %v3140 = vmul.f32 %v3127, %v3034
      %v3141 = vmul.f32 %v3131, %v3033
      %v3142 = vmul.f32 %v3135, %v3032
      %v3143 = vmul.f32 %v3139, %v3035
      %v3144 = vadd.f32 %v3019, %v3140
      %v3145 = vadd.f32 %v3020, %v3141
      %v3146 = vadd.f32 %v3021, %v3142
      %v3147 = vadd.f32 %v3022, %v3143
      %3148 = vrot.lane.b32.xlu0 %v231, 86
      %v3149 = vpop.permute.xlu0 %3148
      %3150 = vrot.lane.b32.xlu0 %v239, 86
      %v3151 = vpop.permute.xlu0 %3150
      %3152 = vrot.lane.b32.xlu0 %v232, 86
      %v3153 = vpop.permute.xlu0 %3152
      %3154 = vrot.lane.b32.xlu0 %v240, 86
      %v3155 = vpop.permute.xlu0 %3154
      %vm3156 = vcmp.lt.s32.totalorder %v252, 86
      %v3157 = vsel %vm3156, %v3153, %v3155
      %v3158 = vsel %vm3156, %v3151, %v3153
      %v3159 = vsel %vm3156, %v3149, %v3151
      %v3160 = vsel %vm3156, %v3155, %v3149
      %3161 = vrot.lane.b32.xlu0 %v233, 86
      %v3162 = vpop.permute.xlu0 %3161
      %3163 = vrot.lane.b32.xlu0 %v260, 86
      %v3164 = vpop.permute.xlu0 %3163
      %3165 = vrot.lane.b32.xlu0 %v234, 86
      %v3166 = vpop.permute.xlu0 %3165
      %3167 = vrot.lane.b32.xlu0 %v261, 86
      %v3168 = vpop.permute.xlu0 %3167
      %v3169 = vsel %vm3156, %v3166, %v3168
      %v3170 = vsel %vm3156, %v3164, %v3166
      %v3171 = vsel %vm3156, %v3162, %v3164
      %v3172 = vsel %vm3156, %v3168, %v3162
      %3173 = vrot.lane.b32.xlu0 %v280, 86
      %v3174 = vpop.permute.xlu0 %3173
      %3175 = vrot.lane.b32.xlu0 %v284, 86
      %v3176 = vpop.permute.xlu0 %3175
      %3177 = vrot.lane.b32.xlu0 %v288, 86
      %v3178 = vpop.permute.xlu0 %3177
      %3179 = vrot.lane.b32.xlu0 %v292, 86
      %v3180 = vpop.permute.xlu0 %3179
      %v3181 = vsel %vm3156, %v3178, %v3180
      %v3182 = vsel %vm3156, %v3176, %v3178
      %v3183 = vsel %vm3156, %v3174, %v3176
      %v3184 = vsel %vm3156, %v3180, %v3174
      %v3185 = vsub.f32 %v3171, %v233
      %v3186 = vsub.f32 %v3170, %v260
      %v3187 = vsub.f32 %v3169, %v234
      %v3188 = vsub.f32 %v3172, %v261
      %v3189 = vmul.f32 %v3185, %v3185
      %v3190 = vmul.f32 %v3186, %v3186
      %v3191 = vmul.f32 %v3187, %v3187
      %v3192 = vmul.f32 %v3188, %v3188
      %v3193 = vsel %vm317, %v3189, 0.0
      %v3194 = vrot.slane %v3193, 4
      %v3195 = vadd.f32 %v3193, %v3194
      %v3196 = vrot.slane %v3195, 2
      %v3197 = vadd.f32 %v3195, %v3196
      %v3198 = vrot.slane %v3197, 1
      %v3199 = vadd.f32 %v3197, %v3198
      %v3200 = vsel %vm317, %v3190, 0.0
      %v3201 = vrot.slane %v3200, 4
      %v3202 = vadd.f32 %v3200, %v3201
      %v3203 = vrot.slane %v3202, 2
      %v3204 = vadd.f32 %v3202, %v3203
      %v3205 = vrot.slane %v3204, 1
      %v3206 = vadd.f32 %v3204, %v3205
      %v3207 = vsel %vm317, %v3191, 0.0
      %v3208 = vrot.slane %v3207, 4
      %v3209 = vadd.f32 %v3207, %v3208
      %v3210 = vrot.slane %v3209, 2
      %v3211 = vadd.f32 %v3209, %v3210
      %v3212 = vrot.slane %v3211, 1
      %v3213 = vadd.f32 %v3211, %v3212
      %v3214 = vsel %vm317, %v3192, 0.0
      %v3215 = vrot.slane %v3214, 4
      %v3216 = vadd.f32 %v3214, %v3215
      %v3217 = vrot.slane %v3216, 2
      %v3218 = vadd.f32 %v3216, %v3217
      %v3219 = vrot.slane %v3218, 1
      %v3220 = vadd.f32 %v3218, %v3219
      %v3221 = vmul.f32 %v3199, -0.5
      %v3222 = vmul.f32 %v3206, -0.5
      %v3223 = vmul.f32 %v3213, -0.5
      %v3224 = vmul.f32 %v3220, -0.5
      %v3225 = vmul.f32 %v3221, 1.442695
      %v3226 = vpow.pop %v3225
      %v3227 = vmul.f32 %v3222, 1.442695
      %v3228 = vpow.pop %v3227
      %v3229 = vmul.f32 %v3223, 1.442695
      %v3230 = vpow.pop %v3229
      %v3231 = vmul.f32 %v3224, 1.442695
      %v3232 = vpow.pop %v3231
      %v3233 = vmul.f32 %v3226, 0.89483935
      %v3234 = vmul.f32 %v3228, 0.89483935
      %v3235 = vmul.f32 %v3230, 0.89483935
      %v3236 = vmul.f32 %v3232, 0.89483935
      %v3237 = vadd.f32 %v3233, 0.89483935
      %v3238 = vadd.f32 %v3234, 0.89483935
      %v3239 = vadd.f32 %v3235, 0.89483935
      %v3240 = vadd.f32 %v3236, 0.89483935
      %v3241 = vmul.f32 %v3237, %v3183
      %v3242 = vmul.f32 %v3238, %v3182
      %v3243 = vmul.f32 %v3239, %v3181
      %v3244 = vmul.f32 %v3240, %v3184
      %v3245 = vadd.f32 %v3120, %v3241
      %v3246 = vadd.f32 %v3121, %v3242
      %v3247 = vadd.f32 %v3122, %v3243
      %v3248 = vadd.f32 %v3123, %v3244
      %v3249 = vlaneseq
      %v3250 = vshrl.u32 %v3249, 7
      %v3251 = vsub.s32 0, %v3250
      %v3252 = vrot.slane %v3241, %v3251
      %v3253 = vlaneseq
      %v3254 = vshrl.u32 %v3253, 7
      %v3255 = vsub.s32 0, %v3254
      %v3256 = vrot.slane %v3242, %v3255
      %v3257 = vlaneseq
      %v3258 = vshrl.u32 %v3257, 7
      %v3259 = vsub.s32 0, %v3258
      %v3260 = vrot.slane %v3243, %v3259
      %v3261 = vlaneseq
      %v3262 = vshrl.u32 %v3261, 7
      %v3263 = vsub.s32 0, %v3262
      %v3264 = vrot.slane %v3244, %v3263
      %v3265 = vmul.f32 %v3252, %v3159
      %v3266 = vmul.f32 %v3256, %v3158
      %v3267 = vmul.f32 %v3260, %v3157
      %v3268 = vmul.f32 %v3264, %v3160
      %v3269 = vadd.f32 %v3144, %v3265
      %v3270 = vadd.f32 %v3145, %v3266
      %v3271 = vadd.f32 %v3146, %v3267
      %v3272 = vadd.f32 %v3147, %v3268
      %v3274 = vlaneseq
      %v3275 = vshrl.u32 %v3274, 7
      %v3276 = vsub.s32 0, %v3275
      %v3277 = vrot.slane %v236, %v3276
      %v3278 = vlaneseq
      %v3279 = vshrl.u32 %v3278, 7
      %v3280 = vsub.s32 1, %v3279
      %v3281 = vrot.slane %v236, %v3280
      %v3282 = vlaneseq
      %v3283 = vshrl.u32 %v3282, 7
      %v3284 = vsub.s32 2, %v3283
      %v3285 = vrot.slane %v236, %v3284
      %v3286 = vlaneseq
      %v3287 = vshrl.u32 %v3286, 7
      %v3288 = vsub.s32 3, %v3287
      %v3289 = vrot.slane %v236, %v3288
      %v3294 = vmul.f32 %v3245, %v3277
      %v3295 = vmul.f32 %v3246, %v3281
      %v3296 = vmul.f32 %v3247, %v3285
      %v3297 = vmul.f32 %v3248, %v3289
      %vm3298 = vcmask 1040384
      %v3299 = vsel %vm3298, %v3294, 0.0
      %v3300 = vsel %vm3298, %v3295, 0.0
      %v3301 = vadd.f32 %v3299, %v3300
      %v3302 = vsel %vm3298, %v3296, 0.0
      %v3303 = vadd.f32 %v3301, %v3302
      %v3304 = vsel %vm3298, %v3297, 0.0
      %v3305 = vadd.f32 %v3303, %v3304
      %3306 = vadd.xlane.f32.xlu0 %v3305
      %v3307 = vpop.xlane.xlu0 %3306
      %v3308 = vrot.slane %v3307, 4
      %v3309 = vadd.f32 %v3307, %v3308
      %v3310 = vrot.slane %v3309, 2
      %v3311 = vadd.f32 %v3309, %v3310
      %v3312 = vrot.slane %v3311, 1
      %v3313 = vadd.f32 %v3311, %v3312
      %s3314 = vtos %v3313
      %v3315 = vstv %s3314
      %v3320 = vcombine.low %v3269, %v3270
      %v3321 = vcombine.low %v3271, %v3272
      %v3324 = vmul.f32 %v231, %v3320
      %v3325 = vmul.f32 %v232, %v3321
      %v3328 = vcombine.high %v3324, %v3324
      %v3329 = vcombine.high %v3325, %v3325
      %vm3332 = vcmask 1043456
      %v3333 = vsel %vm3332, %v3324, 0.0
      %v3334 = vsel %vm3332, %v3328, 0.0
      %v3335 = vadd.f32 %v3333, %v3334
      %v3336 = vsel %vm3332, %v3325, 0.0
      %v3337 = vadd.f32 %v3335, %v3336
      %v3338 = vsel %vm3332, %v3329, 0.0
      %v3339 = vadd.f32 %v3337, %v3338
      %3340 = vadd.xlane.f32.xlu0 %v3339
      %v3341 = vpop.xlane.xlu0 %3340
      %v3342 = vrot.slane %v3341, 4
      %v3343 = vadd.f32 %v3341, %v3342
      %v3344 = vrot.slane %v3343, 2
      %v3345 = vadd.f32 %v3343, %v3344
      %v3346 = vrot.slane %v3345, 1
      %v3347 = vadd.f32 %v3345, %v3346
      %s3348 = vtos %v3347
      %v3349 = vstv %s3348
      %v3350 = vsub.f32 %v3315, %v3349
      %vm3351 = vcmask 0
      %3352 = vst.msk [vmem:[%s230] sm:$0x1] %vm3351, %v3350
      %p3353 = scmp.lt.s32.totalorder %s15, 1
      %s3354 = scalar_select %p3353, %s15, 1
      %s3355 = scalar_lea.vmem %s4, %s3354
      // Predicated region
      $region37: #{tpu_custom_call.1} parent=35 // pred_check
        %p3356 = pneg %p132
      $region38: #{tpu_custom_call.1} parent=35 // pred_check_branch
        %3358 = sbr.rel (%p3356) target = $region40
      $region39: #{tpu_custom_call.1} parent=35 // pred_region
        _
      $region40: #{tpu_custom_call.1} parent=35 // pred_fallthru
        _
    $region36: #{tpu_custom_call.1} parent=5 // pred_fallthru
      _
    %p3359 = scmp.le.s32.totalorder 2, %s10
    // Predicated region
    $region41: #{tpu_custom_call.1} parent=5 // pred_check
      %p3360 = pneg %p3359
    $region42: #{tpu_custom_call.1} parent=5 // pred_check_branch
      %3362 = sbr.rel (%p3360) target = $region44
    $region43: #{tpu_custom_call.1} parent=5 // pred_region
      %s3363 = ssub.s32 %s10, 2
      // Predicated region
      $region45: #{tpu_custom_call.1} parent=43 // pred_check
        %p3364 = pneg %p138
      $region46: #{tpu_custom_call.1} parent=43 // pred_check_branch
        %3366 = sbr.rel (%p3364) target = $region48
      $region47: #{tpu_custom_call.1} parent=43 // pred_region
        %p3367 = scmp.lt.s32.totalorder %s16, 1
        %s3368 = scalar_select %p3367, %s16, 1
        %s3369 = scalar_lea.vmem %s4, %s3368
      $region48: #{tpu_custom_call.1} parent=43 // pred_fallthru
        _
    $region44: #{tpu_custom_call.1} parent=5 // pred_fallthru
      _
  $region6: #{tpu_custom_call.1} parent=0 // loop_footer
    %s14 = sadd.s32 1, %s10
  $region7: #{tpu_custom_call.1} parent=0 // loop_footer_branch
    %9 = sbr.rel target = $region3
  $region8: #{tpu_custom_call.1} parent=0 // loop_exit
    _

</llo_original>
